<compile_context>
chip_gen: v7x
topology: tpu7x:2x2x1
jax: 0.10.0
libtpu: 0.0.40
codegen_flags: <defaults>
</compile_context>

<pallas_src>
import functools

import jax
import jax.numpy as jnp
from jax.experimental import pallas as pl
from jax.experimental.pallas import tpu as pltpu

F_IN = 784

# (in, out) per layer; weights stored [in, out] so the hot path is x @ W + b.
LAYER_DIMS = [
    (784, 128), (128, 64), (64, 12), (12, 3),    # encoder
    (3, 12), (12, 64), (64, 128), (128, 784),    # decoder
]


def autoencoder_kernel(
    x_ref,                                           # [TB, 784]  f32
    w1_ref, w2_ref, w3_ref, w4_ref,                  # encoder weights
    w5_ref, w6_ref, w7_ref, w8_ref,                  # decoder weights
    b_ref,                                           # [8, 784]   f32 packed biases
    eout_ref,                                        # [TB, 3]    f32
    dout_ref,                                        # [TB, 784]  bf16
):
    def bias(layer, out_dim):
        return b_ref[layer:layer + 1, :out_dim]      # (1, out_dim) f32, broadcasts

    def relu(h):
        return jnp.maximum(h, 0.0)

    def dot(a, w_ref):
        return jnp.dot(a, w_ref[...], preferred_element_type=jnp.float32)

    # ----- encoder -----
    x = x_ref[...].astype(jnp.bfloat16)                 # f32 -> bf16 cast in VMEM
    h = relu(dot(x, w1_ref) + bias(0, 128))             # bf16 x bf16 -> f32 [TB,128]
    h = relu(dot(h, w2_ref) + bias(1, 64))
    h = relu(dot(h, w3_ref) + bias(2, 12))
    e = dot(h, w4_ref) + bias(3, 3)                     # [TB, 3], no activation
    eout_ref[...] = e.astype(eout_ref.dtype)

    # ----- decoder -----
    d = relu(dot(e, w5_ref) + bias(4, 12))
    d = relu(dot(d, w6_ref) + bias(5, 64))
    d = relu(dot(d, w7_ref) + bias(6, 128))
    d = dot(d.astype(jnp.bfloat16), w8_ref) + bias(7, F_IN)     # bf16 x bf16 -> f32 [TB,784]
    # sigmoid(x) == 0.5*tanh(0.5*x) + 0.5 : a single EUP op + cheap VPU mul/add,
    # exact (no approx reciprocal) and no exp overflow concerns.
    d = 0.5 * jnp.tanh(0.5 * d) + 0.5
    dout_ref[...] = d.astype(dout_ref.dtype)            # bf16 store, lane width 784


@functools.partial(jax.jit, static_argnames=("tb",))
def autoencoder_forward(x, params, *, tb=1024):
    """x: [B, 784] f32; params: list of 8 (W[in,out] f32, b[1,out] f32) pairs.

    Returns (eoutput [B,3] f32, doutput [B,784] bf16).

    tb: batch-tile rows per grid step.  VMEM budget per tile is roughly
    2*tb*(3136 + 1568) B double-buffered I/O + ~tb*3136 B f32 pre-sigmoid
    intermediate:  tb=1024 ~= 13 MiB, tb=2048 ~= 26 MiB.  48 MiB scoped limit
    keeps tb<=2048 comfortable on v7x (64 MiB VMEM) and trivially on
    v5e/v6e (128 MiB).
    """
    B = x.shape[0]
    grid_b = pl.cdiv(B, tb)
    b_pad = grid_b * tb

    ws = [w for w, _ in params]

    # Only pad the batch dim (no feature pad / no wrapper-side dtype cast of x).
    xp = jnp.pad(x, ((0, b_pad - B), (0, 0)))

    # Cast the two big weight matrices to bf16 (MXU-native, halves residency).
    w1 = ws[0].astype(jnp.bfloat16)                      # [784, 128]
    w8 = ws[7].astype(jnp.bfloat16)                      # [128, 784]
    w_list = [w1, ws[1], ws[2], ws[3], ws[4], ws[5], ws[6], w8]

    # Pack the 8 tiny biases into a single (8, 784) f32 table (1 DMA, resident).
    b_packed = jnp.stack(
        [jnp.pad(b[0], (0, F_IN - b.shape[1])) for _, b in params], axis=0)

    # Resident (non-tiled) spec: constant index_map -> same block every grid
    # step -> stays in VMEM, no re-DMA across batch tiles.
    def resident(shape):
        return pl.BlockSpec(shape, lambda i: (0, 0))

    flops_per_row = 2 * sum(fi * fo for fi, fo in LAYER_DIMS)
    weight_bytes = (2 * (784 * 128 + 128 * 784)                  # bf16 w1, w8
                    + 4 * sum(fi * fo for fi, fo in LAYER_DIMS[1:7])
                    + 4 * 8 * F_IN)                              # bias table
    cost = pl.CostEstimate(
        flops=flops_per_row * b_pad,
        transcendentals=b_pad * F_IN,                            # one tanh / element
        bytes_accessed=b_pad * (4 * F_IN + 2 * F_IN + 4 * 3) + weight_bytes,
    )

    eout_p, dout_p = pl.pallas_call(
        autoencoder_kernel,
        out_shape=(
            jax.ShapeDtypeStruct((b_pad, 3), jnp.float32),
            jax.ShapeDtypeStruct((b_pad, F_IN), jnp.bfloat16),
        ),
        grid=(grid_b,),
        in_specs=(
            [pl.BlockSpec((tb, F_IN), lambda i: (i, 0))]         # x: batch-tiled, raw f32
            + [resident(w.shape) for w in w_list]                # weights: resident
            + [resident((8, F_IN))]                              # packed biases
        ),
        out_specs=(
            pl.BlockSpec((tb, 3), lambda i: (i, 0)),
            pl.BlockSpec((tb, F_IN), lambda i: (i, 0)),
        ),
        compiler_params=pltpu.CompilerParams(
            dimension_semantics=("parallel",),
            vmem_limit_bytes=48 << 20,                           # safe on 64-MiB v7x
        ),
        cost_estimate=cost,
    )(xp, *w_list, b_packed)

    return eout_p[:B], dout_p[:B]


def init_params(key):
    """nn.Linear-style init, weights pre-transposed to [in_features, out_features]."""
    params = []
    for fan_in, fan_out in LAYER_DIMS:
        key, kw, kb = jax.random.split(key, 3)
        bound = 1.0 / jnp.sqrt(jnp.float32(fan_in))
        w = jax.random.uniform(kw, (fan_in, fan_out), jnp.float32, -bound, bound)
        b = jax.random.uniform(kb, (1, fan_out), jnp.float32, -bound, bound)
        params.append((w, b))
    return params


def reference_forward(x, params):
    """Pure-JAX reference mirroring the kernel's bf16 usage on layers 1 and 8."""
    ws = [w for w, _ in params]
    bs = [b for _, b in params]
    w1 = ws[0].astype(jnp.bfloat16)
    w8 = ws[7].astype(jnp.bfloat16)

    h = jnp.dot(x.astype(jnp.bfloat16), w1, preferred_element_type=jnp.float32) + bs[0]
    h = jnp.maximum(h, 0.0)
    h = jnp.maximum(h @ ws[1] + bs[1], 0.0)
    h = jnp.maximum(h @ ws[2] + bs[2], 0.0)
    e = h @ ws[3] + bs[3]

    d = jnp.maximum(e @ ws[4] + bs[4], 0.0)
    d = jnp.maximum(d @ ws[5] + bs[5], 0.0)
    d = jnp.maximum(d @ ws[6] + bs[6], 0.0)
    d = jnp.dot(d.astype(jnp.bfloat16), w8, preferred_element_type=jnp.float32) + bs[7]
    d = jax.nn.sigmoid(d)
    return e, d


if __name__ == "__main__":
    key = jax.random.PRNGKey(0)
    key, kx = jax.random.split(key)

    # Small test that still exercises multiple grid steps + batch padding:
    # B=200 with tb=128 -> grid of 2, batch padded to 256.
    B = 200
    x = jax.random.uniform(kx, (B, 784), jnp.float32)   # MNIST-like flattened input
    params = init_params(key)

    eout, dout = autoencoder_forward(x, params, tb=128)
    jax.block_until_ready((eout, dout))

    e_ref, d_ref = reference_forward(x, params)
    assert eout.shape == (B, 3) and dout.shape == (B, 784)
    # bf16 matmuls + bf16 dout output -> loosened tolerances vs the reference.
    assert jnp.allclose(eout, e_ref, atol=1e-2, rtol=1e-2), \
        float(jnp.max(jnp.abs(eout - e_ref)))
    assert jnp.allclose(dout.astype(jnp.float32), d_ref, atol=2e-2, rtol=2e-2), \
        float(jnp.max(jnp.abs(dout.astype(jnp.float32) - d_ref)))

    print("KERNEL_OK")
</pallas_src>

<mosaic_0001>
module attributes {stable_mosaic.version = 11 : i64} {
  func.func @autoencoder_kernel(%arg0: i32, %arg1: memref<128x784xf32, #tpu.memory_space<vmem>>, %arg2: memref<784x128xbf16, #tpu.memory_space<vmem>>, %arg3: memref<128x64xf32, #tpu.memory_space<vmem>>, %arg4: memref<64x12xf32, #tpu.memory_space<vmem>>, %arg5: memref<12x3xf32, #tpu.memory_space<vmem>>, %arg6: memref<3x12xf32, #tpu.memory_space<vmem>>, %arg7: memref<12x64xf32, #tpu.memory_space<vmem>>, %arg8: memref<64x128xf32, #tpu.memory_space<vmem>>, %arg9: memref<128x784xbf16, #tpu.memory_space<vmem>>, %arg10: memref<8x784xf32, #tpu.memory_space<vmem>>, %arg11: memref<128x3xf32, #tpu.memory_space<vmem>>, %arg12: memref<128x784xbf16, #tpu.memory_space<vmem>>) attributes {dimension_semantics = [#tpu.dimension_semantics<parallel>], iteration_bounds = array<i64: 2>, scalar_prefetch = 0 : i64, scratch_operands = 0 : i64, tpu.core_type = #tpu.core_type<tc>, window_params = [{transform_indices = @transform_0, window_bounds = array<i64: 128, 784>}, {pipeline_mode = #tpu.pipeline_mode<synchronous>, transform_indices = @transform_1, window_bounds = array<i64: 784, 128>}, {pipeline_mode = #tpu.pipeline_mode<synchronous>, transform_indices = @transform_2, window_bounds = array<i64: 128, 64>}, {pipeline_mode = #tpu.pipeline_mode<synchronous>, transform_indices = @transform_3, window_bounds = array<i64: 64, 12>}, {pipeline_mode = #tpu.pipeline_mode<synchronous>, transform_indices = @transform_4, window_bounds = array<i64: 12, 3>}, {pipeline_mode = #tpu.pipeline_mode<synchronous>, transform_indices = @transform_5, window_bounds = array<i64: 3, 12>}, {pipeline_mode = #tpu.pipeline_mode<synchronous>, transform_indices = @transform_6, window_bounds = array<i64: 12, 64>}, {pipeline_mode = #tpu.pipeline_mode<synchronous>, transform_indices = @transform_7, window_bounds = array<i64: 64, 128>}, {pipeline_mode = #tpu.pipeline_mode<synchronous>, transform_indices = @transform_8, window_bounds = array<i64: 128, 784>}, {pipeline_mode = #tpu.pipeline_mode<synchronous>, transform_indices = @transform_9, window_bounds = array<i64: 8, 784>}, {transform_indices = @transform_10, window_bounds = array<i64: 128, 3>}, {transform_indices = @transform_11, window_bounds = array<i64: 128, 784>}]} {
    %c0 = arith.constant 0 : index
    %c0_0 = arith.constant 0 : index
    %0 = vector.load %arg1[%c0, %c0_0] : memref<128x784xf32, #tpu.memory_space<vmem>>, vector<128x784xf32>
    %1 = arith.truncf %0 : vector<128x784xf32> to vector<128x784xbf16>
    %c0_1 = arith.constant 0 : index
    %c0_2 = arith.constant 0 : index
    %2 = vector.load %arg2[%c0_1, %c0_2] : memref<784x128xbf16, #tpu.memory_space<vmem>>, vector<784x128xbf16>
    %cst = arith.constant dense<0.000000e+00> : vector<128x128xf32>
    %3 = tpu.matmul %1, %2, %cst {dimension_numbers = #tpu.dot_dimension_numbers<[1], [0], [0], [1], [0, 0, 1, 1], [], []>} : vector<128x784xbf16>, vector<784x128xbf16>, vector<128x128xf32> -> vector<128x128xf32>
    %c0_3 = arith.constant 0 : index
    %c0_4 = arith.constant 0 : index
    %4 = vector.load %arg10[%c0_3, %c0_4] : memref<8x784xf32, #tpu.memory_space<vmem>>, vector<1x128xf32>
    %5 = vector.broadcast %4 : vector<1x128xf32> to vector<128x128xf32>
    %6 = arith.addf %3, %5 : vector<128x128xf32>
    %cst_5 = arith.constant 0.000000e+00 : f32
    %7 = vector.broadcast %cst_5 : f32 to vector<128x128xf32>
    %8 = arith.maximumf %6, %7 : vector<128x128xf32>
    %c0_6 = arith.constant 0 : index
    %c0_7 = arith.constant 0 : index
    %9 = vector.load %arg3[%c0_6, %c0_7] : memref<128x64xf32, #tpu.memory_space<vmem>>, vector<128x64xf32>
    %cst_8 = arith.constant dense<0.000000e+00> : vector<128x64xf32>
    %10 = tpu.matmul %8, %9, %cst_8 {dimension_numbers = #tpu.dot_dimension_numbers<[1], [0], [0], [1], [0, 0, 1, 1], [], []>} : vector<128x128xf32>, vector<128x64xf32>, vector<128x64xf32> -> vector<128x64xf32>
    %c1 = arith.constant 1 : index
    %c0_9 = arith.constant 0 : index
    %11 = vector.load %arg10[%c1, %c0_9] : memref<8x784xf32, #tpu.memory_space<vmem>>, vector<1x64xf32>
    %12 = vector.broadcast %11 : vector<1x64xf32> to vector<128x64xf32>
    %13 = arith.addf %10, %12 : vector<128x64xf32>
    %cst_10 = arith.constant 0.000000e+00 : f32
    %14 = vector.broadcast %cst_10 : f32 to vector<128x64xf32>
    %15 = arith.maximumf %13, %14 : vector<128x64xf32>
    %c0_11 = arith.constant 0 : index
    %c0_12 = arith.constant 0 : index
    %16 = vector.load %arg4[%c0_11, %c0_12] : memref<64x12xf32, #tpu.memory_space<vmem>>, vector<64x12xf32>
    %cst_13 = arith.constant dense<0.000000e+00> : vector<128x12xf32>
    %17 = tpu.matmul %15, %16, %cst_13 {dimension_numbers = #tpu.dot_dimension_numbers<[1], [0], [0], [1], [0, 0, 1, 1], [], []>} : vector<128x64xf32>, vector<64x12xf32>, vector<128x12xf32> -> vector<128x12xf32>
    %c2 = arith.constant 2 : index
    %c0_14 = arith.constant 0 : index
    %18 = vector.load %arg10[%c2, %c0_14] : memref<8x784xf32, #tpu.memory_space<vmem>>, vector<1x12xf32>
    %19 = vector.broadcast %18 : vector<1x12xf32> to vector<128x12xf32>
    %20 = arith.addf %17, %19 : vector<128x12xf32>
    %cst_15 = arith.constant 0.000000e+00 : f32
    %21 = vector.broadcast %cst_15 : f32 to vector<128x12xf32>
    %22 = arith.maximumf %20, %21 : vector<128x12xf32>
    %c0_16 = arith.constant 0 : index
    %c0_17 = arith.constant 0 : index
    %23 = vector.load %arg5[%c0_16, %c0_17] : memref<12x3xf32, #tpu.memory_space<vmem>>, vector<12x3xf32>
    %cst_18 = arith.constant dense<0.000000e+00> : vector<128x3xf32>
    %24 = tpu.matmul %22, %23, %cst_18 {dimension_numbers = #tpu.dot_dimension_numbers<[1], [0], [0], [1], [0, 0, 1, 1], [], []>} : vector<128x12xf32>, vector<12x3xf32>, vector<128x3xf32> -> vector<128x3xf32>
    %c3 = arith.constant 3 : index
    %c0_19 = arith.constant 0 : index
    %25 = vector.load %arg10[%c3, %c0_19] : memref<8x784xf32, #tpu.memory_space<vmem>>, vector<1x3xf32>
    %26 = vector.broadcast %25 : vector<1x3xf32> to vector<128x3xf32>
    %27 = arith.addf %24, %26 : vector<128x3xf32>
    %c0_20 = arith.constant 0 : index
    %c0_21 = arith.constant 0 : index
    %28 = vector.load %arg11[%c0_20, %c0_21] : memref<128x3xf32, #tpu.memory_space<vmem>>, vector<128x3xf32>
    tpu.vector_store %arg11[%c0_20, %c0_21], %27 {strides = array<i32>} : memref<128x3xf32, #tpu.memory_space<vmem>>, vector<128x3xf32>,
    %c0_22 = arith.constant 0 : index
    %c0_23 = arith.constant 0 : index
    %29 = vector.load %arg6[%c0_22, %c0_23] : memref<3x12xf32, #tpu.memory_space<vmem>>, vector<3x12xf32>
    %cst_24 = arith.constant dense<0.000000e+00> : vector<128x12xf32>
    %30 = tpu.matmul %27, %29, %cst_24 {dimension_numbers = #tpu.dot_dimension_numbers<[1], [0], [0], [1], [0, 0, 1, 1], [], []>} : vector<128x3xf32>, vector<3x12xf32>, vector<128x12xf32> -> vector<128x12xf32>
    %c4 = arith.constant 4 : index
    %c0_25 = arith.constant 0 : index
    %31 = vector.load %arg10[%c4, %c0_25] : memref<8x784xf32, #tpu.memory_space<vmem>>, vector<1x12xf32>
    %32 = vector.broadcast %31 : vector<1x12xf32> to vector<128x12xf32>
    %33 = arith.addf %30, %32 : vector<128x12xf32>
    %cst_26 = arith.constant 0.000000e+00 : f32
    %34 = vector.broadcast %cst_26 : f32 to vector<128x12xf32>
    %35 = arith.maximumf %33, %34 : vector<128x12xf32>
    %c0_27 = arith.constant 0 : index
    %c0_28 = arith.constant 0 : index
    %36 = vector.load %arg7[%c0_27, %c0_28] : memref<12x64xf32, #tpu.memory_space<vmem>>, vector<12x64xf32>
    %cst_29 = arith.constant dense<0.000000e+00> : vector<128x64xf32>
    %37 = tpu.matmul %35, %36, %cst_29 {dimension_numbers = #tpu.dot_dimension_numbers<[1], [0], [0], [1], [0, 0, 1, 1], [], []>} : vector<128x12xf32>, vector<12x64xf32>, vector<128x64xf32> -> vector<128x64xf32>
    %c5 = arith.constant 5 : index
    %c0_30 = arith.constant 0 : index
    %38 = vector.load %arg10[%c5, %c0_30] : memref<8x784xf32, #tpu.memory_space<vmem>>, vector<1x64xf32>
    %39 = vector.broadcast %38 : vector<1x64xf32> to vector<128x64xf32>
    %40 = arith.addf %37, %39 : vector<128x64xf32>
    %cst_31 = arith.constant 0.000000e+00 : f32
    %41 = vector.broadcast %cst_31 : f32 to vector<128x64xf32>
    %42 = arith.maximumf %40, %41 : vector<128x64xf32>
    %c0_32 = arith.constant 0 : index
    %c0_33 = arith.constant 0 : index
    %43 = vector.load %arg8[%c0_32, %c0_33] : memref<64x128xf32, #tpu.memory_space<vmem>>, vector<64x128xf32>
    %cst_34 = arith.constant dense<0.000000e+00> : vector<128x128xf32>
    %44 = tpu.matmul %42, %43, %cst_34 {dimension_numbers = #tpu.dot_dimension_numbers<[1], [0], [0], [1], [0, 0, 1, 1], [], []>} : vector<128x64xf32>, vector<64x128xf32>, vector<128x128xf32> -> vector<128x128xf32>
    %c6 = arith.constant 6 : index
    %c0_35 = arith.constant 0 : index
    %45 = vector.load %arg10[%c6, %c0_35] : memref<8x784xf32, #tpu.memory_space<vmem>>, vector<1x128xf32>
    %46 = vector.broadcast %45 : vector<1x128xf32> to vector<128x128xf32>
    %47 = arith.addf %44, %46 : vector<128x128xf32>
    %cst_36 = arith.constant 0.000000e+00 : f32
    %48 = vector.broadcast %cst_36 : f32 to vector<128x128xf32>
    %49 = arith.maximumf %47, %48 : vector<128x128xf32>
    %50 = arith.truncf %49 : vector<128x128xf32> to vector<128x128xbf16>
    %c0_37 = arith.constant 0 : index
    %c0_38 = arith.constant 0 : index
    %51 = vector.load %arg9[%c0_37, %c0_38] : memref<128x784xbf16, #tpu.memory_space<vmem>>, vector<128x784xbf16>
    %cst_39 = arith.constant dense<0.000000e+00> : vector<128x784xf32>
    %52 = tpu.matmul %50, %51, %cst_39 {dimension_numbers = #tpu.dot_dimension_numbers<[1], [0], [0], [1], [0, 0, 1, 1], [], []>} : vector<128x128xbf16>, vector<128x784xbf16>, vector<128x784xf32> -> vector<128x784xf32>
    %c7 = arith.constant 7 : index
    %c0_40 = arith.constant 0 : index
    %53 = vector.load %arg10[%c7, %c0_40] : memref<8x784xf32, #tpu.memory_space<vmem>>, vector<1x784xf32>
    %54 = vector.broadcast %53 : vector<1x784xf32> to vector<128x784xf32>
    %55 = arith.addf %52, %54 : vector<128x784xf32>
    %cst_41 = arith.constant 5.000000e-01 : f32
    %56 = vector.broadcast %cst_41 : f32 to vector<128x784xf32>
    %57 = arith.mulf %56, %55 : vector<128x784xf32>
    %58 = math.tanh %57 : vector<128x784xf32>
    %cst_42 = arith.constant 5.000000e-01 : f32
    %59 = vector.broadcast %cst_42 : f32 to vector<128x784xf32>
    %60 = arith.mulf %59, %58 : vector<128x784xf32>
    %cst_43 = arith.constant 5.000000e-01 : f32
    %61 = vector.broadcast %cst_43 : f32 to vector<128x784xf32>
    %62 = arith.addf %60, %61 : vector<128x784xf32>
    %63 = arith.truncf %62 : vector<128x784xf32> to vector<128x784xbf16>
    %c0_44 = arith.constant 0 : index
    %c0_45 = arith.constant 0 : index
    %64 = vector.load %arg12[%c0_44, %c0_45] : memref<128x784xbf16, #tpu.memory_space<vmem>>, vector<128x784xbf16>
    tpu.vector_store %arg12[%c0_44, %c0_45], %63 {strides = array<i32>} : memref<128x784xbf16, #tpu.memory_space<vmem>>, vector<128x784xbf16>,
    return
  }
  func.func @transform_0(%arg0: i32) -> (i32, i32) {
    %c0_i32 = arith.constant 0 : i32
    %c0_i32_0 = arith.constant 0 : i32
    return %arg0, %c0_i32 : i32, i32
  }
  func.func @transform_1(%arg0: i32) -> (i32, i32) {
    %c0_i32 = arith.constant 0 : i32
    %c0_i32_0 = arith.constant 0 : i32
    %c0_i32_1 = arith.constant 0 : i32
    return %c0_i32, %c0_i32_0 : i32, i32
  }
  func.func @transform_2(%arg0: i32) -> (i32, i32) {
    %c0_i32 = arith.constant 0 : i32
    %c0_i32_0 = arith.constant 0 : i32
    %c0_i32_1 = arith.constant 0 : i32
    return %c0_i32, %c0_i32_0 : i32, i32
  }
  func.func @transform_3(%arg0: i32) -> (i32, i32) {
    %c0_i32 = arith.constant 0 : i32
    %c0_i32_0 = arith.constant 0 : i32
    %c0_i32_1 = arith.constant 0 : i32
    return %c0_i32, %c0_i32_0 : i32, i32
  }
  func.func @transform_4(%arg0: i32) -> (i32, i32) {
    %c0_i32 = arith.constant 0 : i32
    %c0_i32_0 = arith.constant 0 : i32
    %c0_i32_1 = arith.constant 0 : i32
    return %c0_i32, %c0_i32_0 : i32, i32
  }
  func.func @transform_5(%arg0: i32) -> (i32, i32) {
    %c0_i32 = arith.constant 0 : i32
    %c0_i32_0 = arith.constant 0 : i32
    %c0_i32_1 = arith.constant 0 : i32
    return %c0_i32, %c0_i32_0 : i32, i32
  }
  func.func @transform_6(%arg0: i32) -> (i32, i32) {
    %c0_i32 = arith.constant 0 : i32
    %c0_i32_0 = arith.constant 0 : i32
    %c0_i32_1 = arith.constant 0 : i32
    return %c0_i32, %c0_i32_0 : i32, i32
  }
  func.func @transform_7(%arg0: i32) -> (i32, i32) {
    %c0_i32 = arith.constant 0 : i32
    %c0_i32_0 = arith.constant 0 : i32
    %c0_i32_1 = arith.constant 0 : i32
    return %c0_i32, %c0_i32_0 : i32, i32
  }
  func.func @transform_8(%arg0: i32) -> (i32, i32) {
    %c0_i32 = arith.constant 0 : i32
    %c0_i32_0 = arith.constant 0 : i32
    %c0_i32_1 = arith.constant 0 : i32
    return %c0_i32, %c0_i32_0 : i32, i32
  }
  func.func @transform_9(%arg0: i32) -> (i32, i32) {
    %c0_i32 = arith.constant 0 : i32
    %c0_i32_0 = arith.constant 0 : i32
    %c0_i32_1 = arith.constant 0 : i32
    return %c0_i32, %c0_i32_0 : i32, i32
  }
  func.func @transform_10(%arg0: i32) -> (i32, i32) {
    %c0_i32 = arith.constant 0 : i32
    %c0_i32_0 = arith.constant 0 : i32
    return %arg0, %c0_i32 : i32, i32
  }
  func.func @transform_11(%arg0: i32) -> (i32, i32) {
    %c0_i32 = arith.constant 0 : i32
    %c0_i32_0 = arith.constant 0 : i32
    return %arg0, %c0_i32 : i32, i32
  }
}

</mosaic_0001>

<llo_original>
// kernel: autoencoder_forward.1
$region0: #{autoencoder_forward.1}
  #allocation0 [shape = 'u32[]', space=smem, size = 0x4, offset = 0x4, fixed_abs, tag = 'smem constant byte address 0x4 - core index']
  #allocation1 [shape = 'u32[144,128]{1,0:T(1,128)}', space=vmem, size = 0x12000, scoped, tag = 'internal scratch']
  %s0 = inlined_call_operand.vmem [shape: f32[256,784], index: 0, kind: input, shape index: {}]
  %s1 = inlined_call_operand.vmem [shape: bf16[784,128], index: 1, kind: input, shape index: {}]
  %s2 = inlined_call_operand.vmem [shape: f32[128,64], index: 2, kind: input, shape index: {}]
  %s3 = inlined_call_operand.vmem [shape: f32[64,12], index: 3, kind: input, shape index: {}]
  %s4 = inlined_call_operand.vmem [shape: f32[12,3], index: 4, kind: input, shape index: {}]
  %s5 = inlined_call_operand.vmem [shape: f32[3,12], index: 5, kind: input, shape index: {}]
  %s6 = inlined_call_operand.vmem [shape: f32[12,64], index: 6, kind: input, shape index: {}]
  %s7 = inlined_call_operand.vmem [shape: f32[64,128], index: 7, kind: input, shape index: {}]
  %s8 = inlined_call_operand.vmem [shape: bf16[128,784], index: 8, kind: input, shape index: {}]
  %s9 = inlined_call_operand.vmem [shape: f32[8,784], index: 9, kind: input, shape index: {}]
  %s10 = inlined_call_operand.vmem [shape: f32[256,3], index: 10, kind: output, shape index: {0}]
  %s11 = inlined_call_operand.vmem [shape: bf16[256,784], index: 11, kind: output, shape index: {1}]
  %12 = xla_tuple %s10, %s11
  %s13 = sld [smem:[#allocation0]]
  $region81: #{autoencoder_forward.1} parent=0
    _
  %s15 = ssub.s32 1, %s13
  %s16 = scalar_select 0, %s15, %s13
  loop: start=0, step=1, limit=4
  $region2: #{autoencoder_forward.1} parent=0 // loop_pre_header
    _
  $region3: #{autoencoder_forward.1} parent=0 // loop_header
    %s18 = sphi 0, %s22
    %p19 = scmp.ge.s32.totalorder %s18, 4
    %s28 = sphi 0, %s30
    %s31 = sphi 0, %s28
    %s32 = sphi 0, %s31
    %s48 = sphi 0, %s32
    %s52 = sphi 0, %s52
    %s54 = sphi 0, %s52
    %s55 = sphi 0, %s54
    %s69 = sphi 0, %s55
    %s73 = sphi 0, %s73
    %s75 = sphi 0, %s73
    %s76 = sphi 0, %s75
    %s90 = sphi 0, %s76
    %s94 = sphi 0, %s94
    %s96 = sphi 0, %s94
    %s97 = sphi 0, %s96
    %s111 = sphi 0, %s97
    %s115 = sphi 0, %s115
    %s117 = sphi 0, %s115
    %s118 = sphi 0, %s117
    %s132 = sphi 0, %s118
    %s136 = sphi 0, %s136
    %s138 = sphi 0, %s136
    %s139 = sphi 0, %s138
    %s153 = sphi 0, %s139
    %s157 = sphi 0, %s157
    %s159 = sphi 0, %s157
    %s160 = sphi 0, %s159
    %s174 = sphi 0, %s160
    %s178 = sphi 0, %s178
    %s180 = sphi 0, %s178
    %s181 = sphi 0, %s180
    %s195 = sphi 0, %s181
    %s199 = sphi 0, %s199
    %s201 = sphi 0, %s199
    %s202 = sphi 0, %s201
    %s216 = sphi 0, %s202
    %s220 = sphi 0, %s220
    %s222 = sphi 0, %s220
    %s223 = sphi 0, %s222
    %s237 = sphi 0, %s223
    %s243 = sphi 0, %s245
    %s246 = sphi 0, %s243
    %s247 = sphi 0, %s246
    %s263 = sphi 0, %s247
    %s269 = sphi 0, %s271
    %s272 = sphi 0, %s269
    %s273 = sphi 0, %s272
    %s289 = sphi 0, %s273
  $region4: #{autoencoder_forward.1} parent=0 // loop_header_branch
    %21 = sbr.rel (%p19) target = $region8
  $region5: #{autoencoder_forward.1} parent=0 // loop_body
    %s23 = ssub.s32 %s18, 1
    %s24 = ssub.s32 %s18, 2
    %s25 = sadd.s32 %s18, 1
    %s26 = ssub.s32 %s18, %s25
    %p27 = scmp.eq.s32.totalorder %s26, 0
    %s29 = sadd.s32 %s28, 1
    %s30 = scalar_select %p27, %s28, %s29
    %p33 = pneg %p27
    %p34 = scmp.eq.s32.totalorder %s18, 1
    %p35 = por %p33, %p34
    %p36 = scmp.ne.s32.totalorder %s28, %s31
    %p37 = scmp.eq.s32.totalorder %s18, 0
    %p38 = por %p36, %p37
    %p39 = scmp.ne.s32.totalorder %s28, %s31
    %p40 = scmp.eq.s32.totalorder %s23, 1
    %p41 = por %p39, %p40
    %p42 = scmp.ne.s32.totalorder %s31, %s32
    %p43 = scmp.eq.s32.totalorder %s23, 0
    %p44 = por %p42, %p43
    %p45 = scmp.ne.s32.totalorder %s31, %s32
    %p46 = scmp.eq.s32.totalorder %s24, 1
    %p47 = por %p45, %p46
    %p49 = scmp.ne.s32.totalorder %s32, %s48
    %p50 = scmp.eq.s32.totalorder %s24, 0
    %p51 = por %p49, %p50
    %s53 = sadd.s32 %s52, 1
    %p56 = scmp.eq.s32.totalorder %s18, 1
    %p57 = scmp.ne.s32.totalorder %s52, %s54
    %p58 = scmp.eq.s32.totalorder %s18, 0
    %p59 = por %p57, %p58
    %p60 = scmp.ne.s32.totalorder %s52, %s54
    %p61 = scmp.eq.s32.totalorder %s23, 1
    %p62 = por %p60, %p61
    %p63 = scmp.ne.s32.totalorder %s54, %s55
    %p64 = scmp.eq.s32.totalorder %s23, 0
    %p65 = por %p63, %p64
    %p66 = scmp.ne.s32.totalorder %s54, %s55
    %p67 = scmp.eq.s32.totalorder %s24, 1
    %p68 = por %p66, %p67
    %p70 = scmp.ne.s32.totalorder %s55, %s69
    %p71 = scmp.eq.s32.totalorder %s24, 0
    %p72 = por %p70, %p71
    %s74 = sadd.s32 %s73, 1
    %p77 = scmp.eq.s32.totalorder %s18, 1
    %p78 = scmp.ne.s32.totalorder %s73, %s75
    %p79 = scmp.eq.s32.totalorder %s18, 0
    %p80 = por %p78, %p79
    %p81 = scmp.ne.s32.totalorder %s73, %s75
    %p82 = scmp.eq.s32.totalorder %s23, 1
    %p83 = por %p81, %p82
    %p84 = scmp.ne.s32.totalorder %s75, %s76
    %p85 = scmp.eq.s32.totalorder %s23, 0
    %p86 = por %p84, %p85
    %p87 = scmp.ne.s32.totalorder %s75, %s76
    %p88 = scmp.eq.s32.totalorder %s24, 1
    %p89 = por %p87, %p88
    %p91 = scmp.ne.s32.totalorder %s76, %s90
    %p92 = scmp.eq.s32.totalorder %s24, 0
    %p93 = por %p91, %p92
    %s95 = sadd.s32 %s94, 1
    %p98 = scmp.eq.s32.totalorder %s18, 1
    %p99 = scmp.ne.s32.totalorder %s94, %s96
    %p100 = scmp.eq.s32.totalorder %s18, 0
    %p101 = por %p99, %p100
    %p102 = scmp.ne.s32.totalorder %s94, %s96
    %p103 = scmp.eq.s32.totalorder %s23, 1
    %p104 = por %p102, %p103
    %p105 = scmp.ne.s32.totalorder %s96, %s97
    %p106 = scmp.eq.s32.totalorder %s23, 0
    %p107 = por %p105, %p106
    %p108 = scmp.ne.s32.totalorder %s96, %s97
    %p109 = scmp.eq.s32.totalorder %s24, 1
    %p110 = por %p108, %p109
    %p112 = scmp.ne.s32.totalorder %s97, %s111
    %p113 = scmp.eq.s32.totalorder %s24, 0
    %p114 = por %p112, %p113
    %s116 = sadd.s32 %s115, 1
    %p119 = scmp.eq.s32.totalorder %s18, 1
    %p120 = scmp.ne.s32.totalorder %s115, %s117
    %p121 = scmp.eq.s32.totalorder %s18, 0
    %p122 = por %p120, %p121
    %p123 = scmp.ne.s32.totalorder %s115, %s117
    %p124 = scmp.eq.s32.totalorder %s23, 1
    %p125 = por %p123, %p124
    %p126 = scmp.ne.s32.totalorder %s117, %s118
    %p127 = scmp.eq.s32.totalorder %s23, 0
    %p128 = por %p126, %p127
    %p129 = scmp.ne.s32.totalorder %s117, %s118
    %p130 = scmp.eq.s32.totalorder %s24, 1
    %p131 = por %p129, %p130
    %p133 = scmp.ne.s32.totalorder %s118, %s132
    %p134 = scmp.eq.s32.totalorder %s24, 0
    %p135 = por %p133, %p134
    %s137 = sadd.s32 %s136, 1
    %p140 = scmp.eq.s32.totalorder %s18, 1
    %p141 = scmp.ne.s32.totalorder %s136, %s138
    %p142 = scmp.eq.s32.totalorder %s18, 0
    %p143 = por %p141, %p142
    %p144 = scmp.ne.s32.totalorder %s136, %s138
    %p145 = scmp.eq.s32.totalorder %s23, 1
    %p146 = por %p144, %p145
    %p147 = scmp.ne.s32.totalorder %s138, %s139
    %p148 = scmp.eq.s32.totalorder %s23, 0
    %p149 = por %p147, %p148
    %p150 = scmp.ne.s32.totalorder %s138, %s139
    %p151 = scmp.eq.s32.totalorder %s24, 1
    %p152 = por %p150, %p151
    %p154 = scmp.ne.s32.totalorder %s139, %s153
    %p155 = scmp.eq.s32.totalorder %s24, 0
    %p156 = por %p154, %p155
    %s158 = sadd.s32 %s157, 1
    %p161 = scmp.eq.s32.totalorder %s18, 1
    %p162 = scmp.ne.s32.totalorder %s157, %s159
    %p163 = scmp.eq.s32.totalorder %s18, 0
    %p164 = por %p162, %p163
    %p165 = scmp.ne.s32.totalorder %s157, %s159
    %p166 = scmp.eq.s32.totalorder %s23, 1
    %p167 = por %p165, %p166
    %p168 = scmp.ne.s32.totalorder %s159, %s160
    %p169 = scmp.eq.s32.totalorder %s23, 0
    %p170 = por %p168, %p169
    %p171 = scmp.ne.s32.totalorder %s159, %s160
    %p172 = scmp.eq.s32.totalorder %s24, 1
    %p173 = por %p171, %p172
    %p175 = scmp.ne.s32.totalorder %s160, %s174
    %p176 = scmp.eq.s32.totalorder %s24, 0
    %p177 = por %p175, %p176
    %s179 = sadd.s32 %s178, 1
    %p182 = scmp.eq.s32.totalorder %s18, 1
    %p183 = scmp.ne.s32.totalorder %s178, %s180
    %p184 = scmp.eq.s32.totalorder %s18, 0
    %p185 = por %p183, %p184
    %p186 = scmp.ne.s32.totalorder %s178, %s180
    %p187 = scmp.eq.s32.totalorder %s23, 1
    %p188 = por %p186, %p187
    %p189 = scmp.ne.s32.totalorder %s180, %s181
    %p190 = scmp.eq.s32.totalorder %s23, 0
    %p191 = por %p189, %p190
    %p192 = scmp.ne.s32.totalorder %s180, %s181
    %p193 = scmp.eq.s32.totalorder %s24, 1
    %p194 = por %p192, %p193
    %p196 = scmp.ne.s32.totalorder %s181, %s195
    %p197 = scmp.eq.s32.totalorder %s24, 0
    %p198 = por %p196, %p197
    %s200 = sadd.s32 %s199, 1
    %p203 = scmp.eq.s32.totalorder %s18, 1
    %p204 = scmp.ne.s32.totalorder %s199, %s201
    %p205 = scmp.eq.s32.totalorder %s18, 0
    %p206 = por %p204, %p205
    %p207 = scmp.ne.s32.totalorder %s199, %s201
    %p208 = scmp.eq.s32.totalorder %s23, 1
    %p209 = por %p207, %p208
    %p210 = scmp.ne.s32.totalorder %s201, %s202
    %p211 = scmp.eq.s32.totalorder %s23, 0
    %p212 = por %p210, %p211
    %p213 = scmp.ne.s32.totalorder %s201, %s202
    %p214 = scmp.eq.s32.totalorder %s24, 1
    %p215 = por %p213, %p214
    %p217 = scmp.ne.s32.totalorder %s202, %s216
    %p218 = scmp.eq.s32.totalorder %s24, 0
    %p219 = por %p217, %p218
    %s221 = sadd.s32 %s220, 1
    %p224 = scmp.eq.s32.totalorder %s18, 1
    %p225 = scmp.ne.s32.totalorder %s220, %s222
    %p226 = scmp.eq.s32.totalorder %s18, 0
    %p227 = por %p225, %p226
    %p228 = scmp.ne.s32.totalorder %s220, %s222
    %p229 = scmp.eq.s32.totalorder %s23, 1
    %p230 = por %p228, %p229
    %p231 = scmp.ne.s32.totalorder %s222, %s223
    %p232 = scmp.eq.s32.totalorder %s23, 0
    %p233 = por %p231, %p232
    %p234 = scmp.ne.s32.totalorder %s222, %s223
    %p235 = scmp.eq.s32.totalorder %s24, 1
    %p236 = por %p234, %p235
    %p238 = scmp.ne.s32.totalorder %s223, %s237
    %p239 = scmp.eq.s32.totalorder %s24, 0
    %p240 = por %p238, %p239
    %s241 = ssub.s32 %s18, %s25
    %p242 = scmp.eq.s32.totalorder %s241, 0
    %s244 = sadd.s32 %s243, 1
    %s245 = scalar_select %p242, %s243, %s244
    %p248 = pneg %p242
    %p249 = scmp.eq.s32.totalorder %s18, 1
    %p250 = por %p248, %p249
    %p251 = scmp.ne.s32.totalorder %s243, %s246
    %p252 = scmp.eq.s32.totalorder %s18, 0
    %p253 = por %p251, %p252
    %p254 = scmp.ne.s32.totalorder %s243, %s246
    %p255 = scmp.eq.s32.totalorder %s23, 1
    %p256 = por %p254, %p255
    %p257 = scmp.ne.s32.totalorder %s246, %s247
    %p258 = scmp.eq.s32.totalorder %s23, 0
    %p259 = por %p257, %p258
    %p260 = scmp.ne.s32.totalorder %s246, %s247
    %p261 = scmp.eq.s32.totalorder %s24, 1
    %p262 = por %p260, %p261
    %p264 = scmp.ne.s32.totalorder %s247, %s263
    %p265 = scmp.eq.s32.totalorder %s24, 0
    %p266 = por %p264, %p265
    %s267 = ssub.s32 %s18, %s25
    %p268 = scmp.eq.s32.totalorder %s267, 0
    %s270 = sadd.s32 %s269, 1
    %s271 = scalar_select %p268, %s269, %s270
    %p274 = pneg %p268
    %p275 = scmp.eq.s32.totalorder %s18, 1
    %p276 = por %p274, %p275
    %p277 = scmp.ne.s32.totalorder %s269, %s272
    %p278 = scmp.eq.s32.totalorder %s18, 0
    %p279 = por %p277, %p278
    %p280 = scmp.ne.s32.totalorder %s269, %s272
    %p281 = scmp.eq.s32.totalorder %s23, 1
    %p282 = por %p280, %p281
    %p283 = scmp.ne.s32.totalorder %s272, %s273
    %p284 = scmp.eq.s32.totalorder %s23, 0
    %p285 = por %p283, %p284
    %p286 = scmp.ne.s32.totalorder %s272, %s273
    %p287 = scmp.eq.s32.totalorder %s24, 1
    %p288 = por %p286, %p287
    %p290 = scmp.ne.s32.totalorder %s273, %s289
    %p291 = scmp.eq.s32.totalorder %s24, 0
    %p292 = por %p290, %p291
    %p293 = scmp.le.s32.totalorder 1, %s18
    %p294 = scmp.lt.s32.totalorder %s18, 3
    %p295 = pnand %p293, %p294
    %p296 = pneg %p295
    // Predicated region
    $region9: #{autoencoder_forward.1} parent=5 // pred_check
      _
    $region10: #{autoencoder_forward.1} parent=5 // pred_check_branch
      %298 = sbr.rel (%p295) target = $region12
    $region11: #{autoencoder_forward.1} parent=5 // pred_region
      %s299 = ssub.s32 %s18, 1
      // Predicated region
      $region13: #{autoencoder_forward.1} parent=11 // pred_check
        %p300 = pneg %p65
      $region14: #{autoencoder_forward.1} parent=11 // pred_check_branch
        %302 = sbr.rel (%p300) target = $region16
      $region15: #{autoencoder_forward.1} parent=11 // pred_region
        _
      $region16: #{autoencoder_forward.1} parent=11 // pred_fallthru
        _
      // Predicated region
      $region17: #{autoencoder_forward.1} parent=11 // pred_check
        %p303 = pneg %p86
      $region18: #{autoencoder_forward.1} parent=11 // pred_check_branch
        %305 = sbr.rel (%p303) target = $region20
      $region19: #{autoencoder_forward.1} parent=11 // pred_region
        _
      $region20: #{autoencoder_forward.1} parent=11 // pred_fallthru
        _
      // Predicated region
      $region21: #{autoencoder_forward.1} parent=11 // pred_check
        %p306 = pneg %p107
      $region22: #{autoencoder_forward.1} parent=11 // pred_check_branch
        %308 = sbr.rel (%p306) target = $region24
      $region23: #{autoencoder_forward.1} parent=11 // pred_region
        _
      $region24: #{autoencoder_forward.1} parent=11 // pred_fallthru
        _
      // Predicated region
      $region25: #{autoencoder_forward.1} parent=11 // pred_check
        %p309 = pneg %p128
      $region26: #{autoencoder_forward.1} parent=11 // pred_check_branch
        %311 = sbr.rel (%p309) target = $region28
      $region27: #{autoencoder_forward.1} parent=11 // pred_region
        _
      $region28: #{autoencoder_forward.1} parent=11 // pred_fallthru
        _
      // Predicated region
      $region29: #{autoencoder_forward.1} parent=11 // pred_check
        %p312 = pneg %p149
      $region30: #{autoencoder_forward.1} parent=11 // pred_check_branch
        %314 = sbr.rel (%p312) target = $region32
      $region31: #{autoencoder_forward.1} parent=11 // pred_region
        _
      $region32: #{autoencoder_forward.1} parent=11 // pred_fallthru
        _
      // Predicated region
      $region33: #{autoencoder_forward.1} parent=11 // pred_check
        %p315 = pneg %p170
      $region34: #{autoencoder_forward.1} parent=11 // pred_check_branch
        %317 = sbr.rel (%p315) target = $region36
      $region35: #{autoencoder_forward.1} parent=11 // pred_region
        _
      $region36: #{autoencoder_forward.1} parent=11 // pred_fallthru
        _
      // Predicated region
      $region37: #{autoencoder_forward.1} parent=11 // pred_check
        %p318 = pneg %p191
      $region38: #{autoencoder_forward.1} parent=11 // pred_check_branch
        %320 = sbr.rel (%p318) target = $region40
      $region39: #{autoencoder_forward.1} parent=11 // pred_region
        _
      $region40: #{autoencoder_forward.1} parent=11 // pred_fallthru
        _
      // Predicated region
      $region41: #{autoencoder_forward.1} parent=11 // pred_check
        %p321 = pneg %p212
      $region42: #{autoencoder_forward.1} parent=11 // pred_check_branch
        %323 = sbr.rel (%p321) target = $region44
      $region43: #{autoencoder_forward.1} parent=11 // pred_region
        _
      $region44: #{autoencoder_forward.1} parent=11 // pred_fallthru
        _
      // Predicated region
      $region45: #{autoencoder_forward.1} parent=11 // pred_check
        %p324 = pneg %p233
      $region46: #{autoencoder_forward.1} parent=11 // pred_check_branch
        %326 = sbr.rel (%p324) target = $region48
      $region47: #{autoencoder_forward.1} parent=11 // pred_region
        _
      $region48: #{autoencoder_forward.1} parent=11 // pred_fallthru
        _
    $region12: #{autoencoder_forward.1} parent=5 // pred_fallthru
      _
    %p327 = scmp.lt.s32.totalorder %s18, 2
    // Predicated region
    $region49: #{autoencoder_forward.1} parent=5 // pred_check
      %p328 = pneg %p327
    $region50: #{autoencoder_forward.1} parent=5 // pred_check_branch
      %330 = sbr.rel (%p328) target = $region52
    $region51: #{autoencoder_forward.1} parent=5 // pred_region
      // Predicated region
      $region53: #{autoencoder_forward.1} parent=51 // pred_check
        %p331 = pneg %p38
      $region54: #{autoencoder_forward.1} parent=51 // pred_check_branch
        %333 = sbr.rel (%p331) target = $region56
      $region55: #{autoencoder_forward.1} parent=51 // pred_region
        %s334 = smul.u32 16, %s18
        %p335 = scmp.lt.s32.totalorder %s334, 31
        %s336 = scalar_select %p335, %s334, 31
        %s337 = smul.addr %s336, 7
        %s338 = smul.addr %s337, 8
        %s339 = scalar_lea.vmem %s0, %s338
        %s340 = smul.u32 16, %s18
      $region56: #{autoencoder_forward.1} parent=51 // pred_fallthru
        _
    $region52: #{autoencoder_forward.1} parent=5 // pred_fallthru
      _
    %p341 = scmp.le.s32.totalorder 1, %s18
    %p342 = scmp.lt.s32.totalorder %s18, 3
    %p343 = pnand %p341, %p342
    %p344 = pneg %p343
    // Predicated region
    $region57: #{autoencoder_forward.1} parent=5 // pred_check
      _
    $region58: #{autoencoder_forward.1} parent=5 // pred_check_branch
      %346 = sbr.rel (%p343) target = $region60
    $region59: #{autoencoder_forward.1} parent=5 // pred_region
      %s347 = ssub.s32 %s18, 1
      %s348 = smul.u32 16, %s23
      %p349 = scmp.lt.s32.totalorder %s348, 31
      %s350 = scalar_select %p349, %s348, 31
      %s351 = smul.addr %s350, 7
      %s352 = smul.addr %s351, 8
      %s353 = scalar_lea.vmem %s0, %s352
      %p354 = pneg %p44
      %p355 = pneg %p41
      %p356 = pneg %p65
      %p357 = pneg %p62
      %p358 = pneg %p86
      %p359 = pneg %p83
      %p360 = pneg %p107
      %p361 = pneg %p104
      %p362 = pneg %p128
      %p363 = pneg %p125
      %p364 = pneg %p149
      %p365 = pneg %p146
      %p366 = pneg %p170
      %p367 = pneg %p167
      %p368 = pneg %p191
      %p369 = pneg %p188
      %p370 = pneg %p212
      %p371 = pneg %p209
      %p372 = pneg %p233
      %p373 = pneg %p230
      %p374 = pneg %p259
      %p375 = pneg %p256
      %s376 = smul.u32 16, %s23
      %p377 = scmp.lt.s32.totalorder %s376, 31
      %s378 = scalar_select %p377, %s376, 31
      %s379 = smul.addr %s378, 8
      %s380 = scalar_lea.vmem %s10, %s379
      %p381 = pneg %p285
      %p382 = pneg %p282
      %s383 = smul.u32 16, %s23
      %p384 = scmp.lt.s32.totalorder %s383, 31
      %s385 = scalar_select %p384, %s383, 31
      %s386 = smul.addr %s385, 7
      %s387 = smul.addr %s386, 4
      %s388 = scalar_lea.vmem %s11, %s387
      %s389 = smul.u32 16, %s23
      %p390 = scmp.lt.s32.totalorder %s389, 31
      %s391 = scalar_select %p390, %s389, 31
      %s392 = smul.addr %s391, 7
      %s393 = smul.addr %s392, 8
      %s394 = scalar_lea.vmem %s0, %s393
      %s395 = smul.u32 16, %s23
      %s396 = smul.u32 16, %s23
      %p397 = scmp.lt.s32.totalorder %s396, 31
      %s398 = scalar_select %p397, %s396, 31
      %s399 = smul.addr %s398, 8
      %s400 = scalar_lea.vmem %s10, %s399
      %s401 = smul.u32 16, %s23
      %s402 = smul.u32 16, %s23
      %p403 = scmp.lt.s32.totalorder %s402, 31
      %s404 = scalar_select %p403, %s402, 31
      %s405 = smul.addr %s404, 7
      %s406 = smul.addr %s405, 4
      %s407 = scalar_lea.vmem %s11, %s406
      %s408 = smul.u32 16, %s23
      %v410 = vld [vmem:[%s394] sm:$0xff]
      %v411 = vld [vmem:[%s394 + $0x8] sm:$0xff]
      %v412 = vld [vmem:[%s394 + $0x10] sm:$0xff]
      %v413 = vld [vmem:[%s394 + $0x18] sm:$0xff]
      %v414 = vld [vmem:[%s394 + $0x20] sm:$0xff]
      %v415 = vld [vmem:[%s394 + $0x28] sm:$0xff]
      %v416 = vld [vmem:[%s394 + $0x30] sm:$0xff]
      %v417 = vld [vmem:[%s394 + $0x38] sm:$0xff]
      %v418 = vld [vmem:[%s394 + $0x40] sm:$0xff]
      %v419 = vld [vmem:[%s394 + $0x48] sm:$0xff]
      %v420 = vld [vmem:[%s394 + $0x50] sm:$0xff]
      %v421 = vld [vmem:[%s394 + $0x58] sm:$0xff]
      %v422 = vld [vmem:[%s394 + $0x60] sm:$0xff]
      %v423 = vld [vmem:[%s394 + $0x68] sm:$0xff]
      %v424 = vld [vmem:[%s394 + $0x70] sm:$0xff]
      %v425 = vld [vmem:[%s394 + $0x78] sm:$0xff]
      %v426 = vld [vmem:[%s394 + $0x80] sm:$0xff]
      %v427 = vld [vmem:[%s394 + $0x88] sm:$0xff]
      %v428 = vld [vmem:[%s394 + $0x90] sm:$0xff]
      %v429 = vld [vmem:[%s394 + $0x98] sm:$0xff]
      %v430 = vld [vmem:[%s394 + $0xa0] sm:$0xff]
      %v431 = vld [vmem:[%s394 + $0xa8] sm:$0xff]
      %v432 = vld [vmem:[%s394 + $0xb0] sm:$0xff]
      %v433 = vld [vmem:[%s394 + $0xb8] sm:$0xff]
      %v434 = vld [vmem:[%s394 + $0xc0] sm:$0xff]
      %v435 = vld [vmem:[%s394 + $0xc8] sm:$0xff]
      %v436 = vld [vmem:[%s394 + $0xd0] sm:$0xff]
      %v437 = vld [vmem:[%s394 + $0xd8] sm:$0xff]
      %v438 = vld [vmem:[%s394 + $0xe0] sm:$0xff]
      %v439 = vld [vmem:[%s394 + $0xe8] sm:$0xff]
      %v440 = vld [vmem:[%s394 + $0xf0] sm:$0xff]
      %v441 = vld [vmem:[%s394 + $0xf8] sm:$0xff]
      %v442 = vld [vmem:[%s394 + $0x100] sm:$0xff]
      %v443 = vld [vmem:[%s394 + $0x108] sm:$0xff]
      %v444 = vld [vmem:[%s394 + $0x110] sm:$0xff]
      %v445 = vld [vmem:[%s394 + $0x118] sm:$0xff]
      %v446 = vld [vmem:[%s394 + $0x120] sm:$0xff]
      %v447 = vld [vmem:[%s394 + $0x128] sm:$0xff]
      %v448 = vld [vmem:[%s394 + $0x130] sm:$0xff]
      %v449 = vld [vmem:[%s394 + $0x138] sm:$0xff]
      %v450 = vld [vmem:[%s394 + $0x140] sm:$0xff]
      %v451 = vld [vmem:[%s394 + $0x148] sm:$0xff]
      %v452 = vld [vmem:[%s394 + $0x150] sm:$0xff]
      %v453 = vld [vmem:[%s394 + $0x158] sm:$0xff]
      %v454 = vld [vmem:[%s394 + $0x160] sm:$0xff]
      %v455 = vld [vmem:[%s394 + $0x168] sm:$0xff]
      %v456 = vld [vmem:[%s394 + $0x170] sm:$0xff]
      %v457 = vld [vmem:[%s394 + $0x178] sm:$0xff]
      %v458 = vld [vmem:[%s394 + $0x180] sm:$0xff]
      %v459 = vld [vmem:[%s394 + $0x188] sm:$0xff]
      %v460 = vld [vmem:[%s394 + $0x190] sm:$0xff]
      %v461 = vld [vmem:[%s394 + $0x198] sm:$0xff]
      %v462 = vld [vmem:[%s394 + $0x1a0] sm:$0xff]
      %v463 = vld [vmem:[%s394 + $0x1a8] sm:$0xff]
      %v464 = vld [vmem:[%s394 + $0x1b0] sm:$0xff]
      %v465 = vld [vmem:[%s394 + $0x1b8] sm:$0xff]
      %v466 = vld [vmem:[%s394 + $0x1c0] sm:$0xff]
      %v467 = vld [vmem:[%s394 + $0x1c8] sm:$0xff]
      %v468 = vld [vmem:[%s394 + $0x1d0] sm:$0xff]
      %v469 = vld [vmem:[%s394 + $0x1d8] sm:$0xff]
      %v470 = vld [vmem:[%s394 + $0x1e0] sm:$0xff]
      %v471 = vld [vmem:[%s394 + $0x1e8] sm:$0xff]
      %v472 = vld [vmem:[%s394 + $0x1f0] sm:$0xff]
      %v473 = vld [vmem:[%s394 + $0x1f8] sm:$0xff]
      %v474 = vld [vmem:[%s394 + $0x200] sm:$0xff]
      %v475 = vld [vmem:[%s394 + $0x208] sm:$0xff]
      %v476 = vld [vmem:[%s394 + $0x210] sm:$0xff]
      %v477 = vld [vmem:[%s394 + $0x218] sm:$0xff]
      %v478 = vld [vmem:[%s394 + $0x220] sm:$0xff]
      %v479 = vld [vmem:[%s394 + $0x228] sm:$0xff]
      %v480 = vld [vmem:[%s394 + $0x230] sm:$0xff]
      %v481 = vld [vmem:[%s394 + $0x238] sm:$0xff]
      %v482 = vld [vmem:[%s394 + $0x240] sm:$0xff]
      %v483 = vld [vmem:[%s394 + $0x248] sm:$0xff]
      %v484 = vld [vmem:[%s394 + $0x250] sm:$0xff]
      %v485 = vld [vmem:[%s394 + $0x258] sm:$0xff]
      %v486 = vld [vmem:[%s394 + $0x260] sm:$0xff]
      %v487 = vld [vmem:[%s394 + $0x268] sm:$0xff]
      %v488 = vld [vmem:[%s394 + $0x270] sm:$0xff]
      %v489 = vld [vmem:[%s394 + $0x278] sm:$0xff]
      %v490 = vld [vmem:[%s394 + $0x280] sm:$0xff]
      %v491 = vld [vmem:[%s394 + $0x288] sm:$0xff]
      %v492 = vld [vmem:[%s394 + $0x290] sm:$0xff]
      %v493 = vld [vmem:[%s394 + $0x298] sm:$0xff]
      %v494 = vld [vmem:[%s394 + $0x2a0] sm:$0xff]
      %v495 = vld [vmem:[%s394 + $0x2a8] sm:$0xff]
      %v496 = vld [vmem:[%s394 + $0x2b0] sm:$0xff]
      %v497 = vld [vmem:[%s394 + $0x2b8] sm:$0xff]
      %v498 = vld [vmem:[%s394 + $0x2c0] sm:$0xff]
      %v499 = vld [vmem:[%s394 + $0x2c8] sm:$0xff]
      %v500 = vld [vmem:[%s394 + $0x2d0] sm:$0xff]
      %v501 = vld [vmem:[%s394 + $0x2d8] sm:$0xff]
      %v502 = vld [vmem:[%s394 + $0x2e0] sm:$0xff]
      %v503 = vld [vmem:[%s394 + $0x2e8] sm:$0xff]
      %v504 = vld [vmem:[%s394 + $0x2f0] sm:$0xff]
      %v505 = vld [vmem:[%s394 + $0x2f8] sm:$0xff]
      %v506 = vld [vmem:[%s394 + $0x300] sm:$0xff]
      %v507 = vld [vmem:[%s394 + $0x308] sm:$0xff]
      %v508 = vld [vmem:[%s394 + $0x310] sm:$0xff]
      %v509 = vld [vmem:[%s394 + $0x318] sm:$0xff]
      %v510 = vld [vmem:[%s394 + $0x320] sm:$0xff]
      %v511 = vld [vmem:[%s394 + $0x328] sm:$0xff]
      %v512 = vld [vmem:[%s394 + $0x330] sm:$0xff]
      %v513 = vld [vmem:[%s394 + $0x338] sm:$0xff]
      %v514 = vld [vmem:[%s394 + $0x340] sm:$0xff]
      %v515 = vld [vmem:[%s394 + $0x348] sm:$0xff]
      %v516 = vld [vmem:[%s394 + $0x350] sm:$0xff]
      %v517 = vld [vmem:[%s394 + $0x358] sm:$0xff]
      %v518 = vld [vmem:[%s394 + $0x360] sm:$0xff]
      %v519 = vld [vmem:[%s394 + $0x368] sm:$0xff]
      %v520 = vld [vmem:[%s394 + $0x370] sm:$0xff]
      %v521 = vld [vmem:[%s394 + $0x378] sm:$0xff]
      %v522 = vpack.c.bf16 %v417, %v410
      %v523 = vpack.c.bf16 %v418, %v411
      %v524 = vpack.c.bf16 %v419, %v412
      %v525 = vpack.c.bf16 %v420, %v413
      %v526 = vpack.c.bf16 %v421, %v414
      %v527 = vpack.c.bf16 %v422, %v415
      %v528 = vpack.c.bf16 %v423, %v416
      %v529 = vpack.c.bf16 %v431, %v424
      %v530 = vpack.c.bf16 %v432, %v425
      %v531 = vpack.c.bf16 %v433, %v426
      %v532 = vpack.c.bf16 %v434, %v427
      %v533 = vpack.c.bf16 %v435, %v428
      %v534 = vpack.c.bf16 %v436, %v429
      %v535 = vpack.c.bf16 %v437, %v430
      %v536 = vpack.c.bf16 %v445, %v438
      %v537 = vpack.c.bf16 %v446, %v439
      %v538 = vpack.c.bf16 %v447, %v440
      %v539 = vpack.c.bf16 %v448, %v441
      %v540 = vpack.c.bf16 %v449, %v442
      %v541 = vpack.c.bf16 %v450, %v443
      %v542 = vpack.c.bf16 %v451, %v444
      %v543 = vpack.c.bf16 %v459, %v452
      %v544 = vpack.c.bf16 %v460, %v453
      %v545 = vpack.c.bf16 %v461, %v454
      %v546 = vpack.c.bf16 %v462, %v455
      %v547 = vpack.c.bf16 %v463, %v456
      %v548 = vpack.c.bf16 %v464, %v457
      %v549 = vpack.c.bf16 %v465, %v458
      %v550 = vpack.c.bf16 %v473, %v466
      %v551 = vpack.c.bf16 %v474, %v467
      %v552 = vpack.c.bf16 %v475, %v468
      %v553 = vpack.c.bf16 %v476, %v469
      %v554 = vpack.c.bf16 %v477, %v470
      %v555 = vpack.c.bf16 %v478, %v471
      %v556 = vpack.c.bf16 %v479, %v472
      %v557 = vpack.c.bf16 %v487, %v480
      %v558 = vpack.c.bf16 %v488, %v481
      %v559 = vpack.c.bf16 %v489, %v482
      %v560 = vpack.c.bf16 %v490, %v483
      %v561 = vpack.c.bf16 %v491, %v484
      %v562 = vpack.c.bf16 %v492, %v485
      %v563 = vpack.c.bf16 %v493, %v486
      %v564 = vpack.c.bf16 %v501, %v494
      %v565 = vpack.c.bf16 %v502, %v495
      %v566 = vpack.c.bf16 %v503, %v496
      %v567 = vpack.c.bf16 %v504, %v497
      %v568 = vpack.c.bf16 %v505, %v498
      %v569 = vpack.c.bf16 %v506, %v499
      %v570 = vpack.c.bf16 %v507, %v500
      %v571 = vpack.c.bf16 %v515, %v508
      %v572 = vpack.c.bf16 %v516, %v509
      %v573 = vpack.c.bf16 %v517, %v510
      %v574 = vpack.c.bf16 %v518, %v511
      %v575 = vpack.c.bf16 %v519, %v512
      %v576 = vpack.c.bf16 %v520, %v513
      %v577 = vpack.c.bf16 %v521, %v514
      %v578 = vld [vmem:[%s1] sm:$0xf]
      %v579 = vld [vmem:[%s1 + $0x4] sm:$0xf]
      %v580 = vld [vmem:[%s1 + $0x8] sm:$0xf]
      %v581 = vld [vmem:[%s1 + $0xc] sm:$0xf]
      %v582 = vld [vmem:[%s1 + $0x10] sm:$0xf]
      %v583 = vld [vmem:[%s1 + $0x14] sm:$0xf]
      %v584 = vld [vmem:[%s1 + $0x18] sm:$0xf]
      %v585 = vld [vmem:[%s1 + $0x1c] sm:$0xf]
      %v586 = vld [vmem:[%s1 + $0x20] sm:$0xf]
      %v587 = vld [vmem:[%s1 + $0x24] sm:$0xf]
      %v588 = vld [vmem:[%s1 + $0x28] sm:$0xf]
      %v589 = vld [vmem:[%s1 + $0x2c] sm:$0xf]
      %v590 = vld [vmem:[%s1 + $0x30] sm:$0xf]
      %v591 = vld [vmem:[%s1 + $0x34] sm:$0xf]
      %v592 = vld [vmem:[%s1 + $0x38] sm:$0xf]
      %v593 = vld [vmem:[%s1 + $0x3c] sm:$0xf]
      %v594 = vld [vmem:[%s1 + $0x40] sm:$0xf]
      %v595 = vld [vmem:[%s1 + $0x44] sm:$0xf]
      %v596 = vld [vmem:[%s1 + $0x48] sm:$0xf]
      %v597 = vld [vmem:[%s1 + $0x4c] sm:$0xf]
      %v598 = vld [vmem:[%s1 + $0x50] sm:$0xf]
      %v599 = vld [vmem:[%s1 + $0x54] sm:$0xf]
      %v600 = vld [vmem:[%s1 + $0x58] sm:$0xf]
      %v601 = vld [vmem:[%s1 + $0x5c] sm:$0xf]
      %v602 = vld [vmem:[%s1 + $0x60] sm:$0xf]
      %v603 = vld [vmem:[%s1 + $0x64] sm:$0xf]
      %v604 = vld [vmem:[%s1 + $0x68] sm:$0xf]
      %v605 = vld [vmem:[%s1 + $0x6c] sm:$0xf]
      %v606 = vld [vmem:[%s1 + $0x70] sm:$0xf]
      %v607 = vld [vmem:[%s1 + $0x74] sm:$0xf]
      %v608 = vld [vmem:[%s1 + $0x78] sm:$0xf]
      %v609 = vld [vmem:[%s1 + $0x7c] sm:$0xf]
      %v610 = vld [vmem:[%s1 + $0x80] sm:$0xf]
      %v611 = vld [vmem:[%s1 + $0x84] sm:$0xf]
      %v612 = vld [vmem:[%s1 + $0x88] sm:$0xf]
      %v613 = vld [vmem:[%s1 + $0x8c] sm:$0xf]
      %v614 = vld [vmem:[%s1 + $0x90] sm:$0xf]
      %v615 = vld [vmem:[%s1 + $0x94] sm:$0xf]
      %v616 = vld [vmem:[%s1 + $0x98] sm:$0xf]
      %v617 = vld [vmem:[%s1 + $0x9c] sm:$0xf]
      %v618 = vld [vmem:[%s1 + $0xa0] sm:$0xf]
      %v619 = vld [vmem:[%s1 + $0xa4] sm:$0xf]
      %v620 = vld [vmem:[%s1 + $0xa8] sm:$0xf]
      %v621 = vld [vmem:[%s1 + $0xac] sm:$0xf]
      %v622 = vld [vmem:[%s1 + $0xb0] sm:$0xf]
      %v623 = vld [vmem:[%s1 + $0xb4] sm:$0xf]
      %v624 = vld [vmem:[%s1 + $0xb8] sm:$0xf]
      %v625 = vld [vmem:[%s1 + $0xbc] sm:$0xf]
      %v626 = vld [vmem:[%s1 + $0xc0] sm:$0xf]
      %v627 = vld [vmem:[%s1 + $0xc4] sm:$0xf]
      %v628 = vld [vmem:[%s1 + $0xc8] sm:$0xf]
      %v629 = vld [vmem:[%s1 + $0xcc] sm:$0xf]
      %v630 = vld [vmem:[%s1 + $0xd0] sm:$0xf]
      %v631 = vld [vmem:[%s1 + $0xd4] sm:$0xf]
      %v632 = vld [vmem:[%s1 + $0xd8] sm:$0xf]
      %v633 = vld [vmem:[%s1 + $0xdc] sm:$0xf]
      %v634 = vld [vmem:[%s1 + $0xe0] sm:$0xf]
      %v635 = vld [vmem:[%s1 + $0xe4] sm:$0xf]
      %v636 = vld [vmem:[%s1 + $0xe8] sm:$0xf]
      %v637 = vld [vmem:[%s1 + $0xec] sm:$0xf]
      %v638 = vld [vmem:[%s1 + $0xf0] sm:$0xf]
      %v639 = vld [vmem:[%s1 + $0xf4] sm:$0xf]
      %v640 = vld [vmem:[%s1 + $0xf8] sm:$0xf]
      %v641 = vld [vmem:[%s1 + $0xfc] sm:$0xf]
      %v642 = vld [vmem:[%s1 + $0x100] sm:$0xf]
      %v643 = vld [vmem:[%s1 + $0x104] sm:$0xf]
      %v644 = vld [vmem:[%s1 + $0x108] sm:$0xf]
      %v645 = vld [vmem:[%s1 + $0x10c] sm:$0xf]
      %v646 = vld [vmem:[%s1 + $0x110] sm:$0xf]
      %v647 = vld [vmem:[%s1 + $0x114] sm:$0xf]
      %v648 = vld [vmem:[%s1 + $0x118] sm:$0xf]
      %v649 = vld [vmem:[%s1 + $0x11c] sm:$0xf]
      %v650 = vld [vmem:[%s1 + $0x120] sm:$0xf]
      %v651 = vld [vmem:[%s1 + $0x124] sm:$0xf]
      %v652 = vld [vmem:[%s1 + $0x128] sm:$0xf]
      %v653 = vld [vmem:[%s1 + $0x12c] sm:$0xf]
      %v654 = vld [vmem:[%s1 + $0x130] sm:$0xf]
      %v655 = vld [vmem:[%s1 + $0x134] sm:$0xf]
      %v656 = vld [vmem:[%s1 + $0x138] sm:$0xf]
      %v657 = vld [vmem:[%s1 + $0x13c] sm:$0xf]
      %v658 = vld [vmem:[%s1 + $0x140] sm:$0xf]
      %v659 = vld [vmem:[%s1 + $0x144] sm:$0xf]
      %v660 = vld [vmem:[%s1 + $0x148] sm:$0xf]
      %v661 = vld [vmem:[%s1 + $0x14c] sm:$0xf]
      %v662 = vld [vmem:[%s1 + $0x150] sm:$0xf]
      %v663 = vld [vmem:[%s1 + $0x154] sm:$0xf]
      %v664 = vld [vmem:[%s1 + $0x158] sm:$0xf]
      %v665 = vld [vmem:[%s1 + $0x15c] sm:$0xf]
      %v666 = vld [vmem:[%s1 + $0x160] sm:$0xf]
      %v667 = vld [vmem:[%s1 + $0x164] sm:$0xf]
      %v668 = vld [vmem:[%s1 + $0x168] sm:$0xf]
      %v669 = vld [vmem:[%s1 + $0x16c] sm:$0xf]
      %v670 = vld [vmem:[%s1 + $0x170] sm:$0xf]
      %v671 = vld [vmem:[%s1 + $0x174] sm:$0xf]
      %v672 = vld [vmem:[%s1 + $0x178] sm:$0xf]
      %v673 = vld [vmem:[%s1 + $0x17c] sm:$0xf]
      %v674 = vld [vmem:[%s1 + $0x180] sm:$0xf]
      %v675 = vld [vmem:[%s1 + $0x184] sm:$0xf]
      %v676 = vld [vmem:[%s9] ss:$0 sm:$0xff]
      %v775 = vunpack.c.l.b16 %v578
      %v776 = vunpack.c.l.b16 %v579
      %v777 = vunpack.c.l.b16 %v580
      %v778 = vunpack.c.l.b16 %v581
      %v779 = vunpack.c.l.b16 %v582
      %v780 = vunpack.c.l.b16 %v583
      %v781 = vunpack.c.l.b16 %v584
      %v782 = vunpack.c.l.b16 %v585
      %v783 = vunpack.c.l.b16 %v586
      %v784 = vunpack.c.l.b16 %v587
      %v785 = vunpack.c.l.b16 %v588
      %v786 = vunpack.c.l.b16 %v589
      %v787 = vunpack.c.l.b16 %v590
      %v788 = vunpack.c.l.b16 %v591
      %v789 = vunpack.c.l.b16 %v592
      %v790 = vunpack.c.l.b16 %v593
      %v791 = vunpack.c.l.b16 %v594
      %v792 = vunpack.c.l.b16 %v595
      %v793 = vunpack.c.l.b16 %v596
      %v794 = vunpack.c.l.b16 %v597
      %v795 = vunpack.c.l.b16 %v598
      %v796 = vunpack.c.l.b16 %v599
      %v797 = vunpack.c.l.b16 %v600
      %v798 = vunpack.c.l.b16 %v601
      %v799 = vunpack.c.l.b16 %v602
      %v800 = vunpack.c.l.b16 %v603
      %v801 = vunpack.c.l.b16 %v604
      %v802 = vunpack.c.l.b16 %v605
      %v803 = vunpack.c.l.b16 %v606
      %v804 = vunpack.c.l.b16 %v607
      %v805 = vunpack.c.l.b16 %v608
      %v806 = vunpack.c.l.b16 %v609
      %v807 = vunpack.c.l.b16 %v610
      %v808 = vunpack.c.l.b16 %v611
      %v809 = vunpack.c.l.b16 %v612
      %v810 = vunpack.c.l.b16 %v613
      %v811 = vunpack.c.l.b16 %v614
      %v812 = vunpack.c.l.b16 %v615
      %v813 = vunpack.c.l.b16 %v616
      %v814 = vunpack.c.l.b16 %v617
      %v815 = vunpack.c.l.b16 %v618
      %v816 = vunpack.c.l.b16 %v619
      %v817 = vunpack.c.l.b16 %v620
      %v818 = vunpack.c.l.b16 %v621
      %v819 = vunpack.c.l.b16 %v622
      %v820 = vunpack.c.l.b16 %v623
      %v821 = vunpack.c.l.b16 %v624
      %v822 = vunpack.c.l.b16 %v625
      %v823 = vunpack.c.l.b16 %v626
      %v824 = vunpack.c.l.b16 %v627
      %v825 = vunpack.c.l.b16 %v628
      %v826 = vunpack.c.l.b16 %v629
      %v827 = vunpack.c.l.b16 %v630
      %v828 = vunpack.c.l.b16 %v631
      %v829 = vunpack.c.l.b16 %v632
      %v830 = vunpack.c.l.b16 %v633
      %v831 = vunpack.c.l.b16 %v634
      %v832 = vunpack.c.l.b16 %v635
      %v833 = vunpack.c.l.b16 %v636
      %v834 = vunpack.c.l.b16 %v637
      %v835 = vunpack.c.l.b16 %v638
      %v836 = vunpack.c.l.b16 %v639
      %v837 = vunpack.c.l.b16 %v640
      %v838 = vunpack.c.l.b16 %v641
      %v839 = vunpack.c.l.b16 %v642
      %v840 = vunpack.c.l.b16 %v643
      %v841 = vunpack.c.l.b16 %v644
      %v842 = vunpack.c.l.b16 %v645
      %v843 = vunpack.c.l.b16 %v646
      %v844 = vunpack.c.l.b16 %v647
      %v845 = vunpack.c.l.b16 %v648
      %v846 = vunpack.c.l.b16 %v649
      %v847 = vunpack.c.l.b16 %v650
      %v848 = vunpack.c.l.b16 %v651
      %v849 = vunpack.c.l.b16 %v652
      %v850 = vunpack.c.l.b16 %v653
      %v851 = vunpack.c.l.b16 %v654
      %v852 = vunpack.c.l.b16 %v655
      %v853 = vunpack.c.l.b16 %v656
      %v854 = vunpack.c.l.b16 %v657
      %v855 = vunpack.c.l.b16 %v658
      %v856 = vunpack.c.l.b16 %v659
      %v857 = vunpack.c.l.b16 %v660
      %v858 = vunpack.c.l.b16 %v661
      %v859 = vunpack.c.l.b16 %v662
      %v860 = vunpack.c.l.b16 %v663
      %v861 = vunpack.c.l.b16 %v664
      %v862 = vunpack.c.l.b16 %v665
      %v863 = vunpack.c.l.b16 %v666
      %v864 = vunpack.c.l.b16 %v667
      %v865 = vunpack.c.l.b16 %v668
      %v866 = vunpack.c.l.b16 %v669
      %v867 = vunpack.c.l.b16 %v670
      %v868 = vunpack.c.l.b16 %v671
      %v869 = vunpack.c.l.b16 %v672
      %v870 = vunpack.c.l.b16 %v673
      %v871 = vunpack.c.l.b16 %v674
      %v872 = vunpack.c.l.b16 %v675
      %v873 = vpack.c.b16 %v776, %v775
      %v874 = vpack.c.b16 %v778, %v777
      %v875 = vpack.c.b16 %v780, %v779
      %v876 = vpack.c.b16 %v782, %v781
      %v877 = vpack.c.b16 %v784, %v783
      %v878 = vpack.c.b16 %v786, %v785
      %v879 = vpack.c.b16 %v788, %v787
      %v880 = vpack.c.b16 %v790, %v789
      %v881 = vpack.c.b16 %v792, %v791
      %v882 = vpack.c.b16 %v794, %v793
      %v883 = vpack.c.b16 %v796, %v795
      %v884 = vpack.c.b16 %v798, %v797
      %v885 = vpack.c.b16 %v800, %v799
      %v886 = vpack.c.b16 %v802, %v801
      %v887 = vpack.c.b16 %v804, %v803
      %v888 = vpack.c.b16 %v806, %v805
      %v889 = vpack.c.b16 %v808, %v807
      %v890 = vpack.c.b16 %v810, %v809
      %v891 = vpack.c.b16 %v812, %v811
      %v892 = vpack.c.b16 %v814, %v813
      %v893 = vpack.c.b16 %v816, %v815
      %v894 = vpack.c.b16 %v818, %v817
      %v895 = vpack.c.b16 %v820, %v819
      %v896 = vpack.c.b16 %v822, %v821
      %v897 = vpack.c.b16 %v824, %v823
      %v898 = vpack.c.b16 %v826, %v825
      %v899 = vpack.c.b16 %v828, %v827
      %v900 = vpack.c.b16 %v830, %v829
      %v901 = vpack.c.b16 %v832, %v831
      %v902 = vpack.c.b16 %v834, %v833
      %v903 = vpack.c.b16 %v836, %v835
      %v904 = vpack.c.b16 %v838, %v837
      %v905 = vpack.c.b16 %v840, %v839
      %v906 = vpack.c.b16 %v842, %v841
      %v907 = vpack.c.b16 %v844, %v843
      %v908 = vpack.c.b16 %v846, %v845
      %v909 = vpack.c.b16 %v848, %v847
      %v910 = vpack.c.b16 %v850, %v849
      %v911 = vpack.c.b16 %v852, %v851
      %v912 = vpack.c.b16 %v854, %v853
      %v913 = vpack.c.b16 %v856, %v855
      %v914 = vpack.c.b16 %v858, %v857
      %v915 = vpack.c.b16 %v860, %v859
      %v916 = vpack.c.b16 %v862, %v861
      %v917 = vpack.c.b16 %v864, %v863
      %v918 = vpack.c.b16 %v866, %v865
      %v919 = vpack.c.b16 %v868, %v867
      %v920 = vpack.c.b16 %v870, %v869
      %v921 = vpack.c.b16 %v872, %v871
      %vm971 = vcmask 130048
      %v973 = vsel %vm971, %v528, 0
      %v976 = vsel %vm971, %v535, 0
      %v979 = vsel %vm971, %v542, 0
      %v982 = vsel %vm971, %v549, 0
      %v985 = vsel %vm971, %v556, 0
      %v988 = vsel %vm971, %v563, 0
      %v991 = vsel %vm971, %v570, 0
      %v994 = vsel %vm971, %v577, 0
      %996 = vmatprep.subr.bf16.mxu0 0
      %997 = vmatpush1.bf16.msra.mxu0 %v873
      %998 = vmatprep.subr.bf16.mxu0 0
      %999 = vmatpush1.bf16.msra.mxu0 %v874
      %1000 = vmatprep.subr.bf16.mxu0 0
      %1001 = vmatpush1.bf16.msra.mxu0 %v875
      %1002 = vmatprep.subr.bf16.mxu0 0
      %1003 = vmatpush1.bf16.msra.mxu0 %v876
      %1004 = vmatprep.subr.bf16.mxu0 0
      %1005 = vmatpush1.bf16.msra.mxu0 %v877
      %1006 = vmatprep.subr.bf16.mxu0 0
      %1007 = vmatpush1.bf16.msra.mxu0 %v878
      %1008 = vmatprep.subr.bf16.mxu0 0
      %1009 = vmatpush1.bf16.msra.mxu0 %v879
      %1010 = vmatprep.subr.bf16.mxu0 0
      %1011 = vmatpush1.bf16.msra.mxu0 %v880
      %1012 = vmatprep.subr.bf16.mxu0 0
      %1013 = vmatpush1.bf16.msra.mxu0 %v881
      %1014 = vmatprep.subr.bf16.mxu0 0
      %1015 = vmatpush1.bf16.msra.mxu0 %v882
      %1016 = vmatprep.subr.bf16.mxu0 0
      %1017 = vmatpush1.bf16.msra.mxu0 %v883
      %1018 = vmatprep.subr.bf16.mxu0 0
      %1019 = vmatpush1.bf16.msra.mxu0 %v884
      %1020 = vmatprep.subr.bf16.mxu0 0
      %1021 = vmatpush1.bf16.msra.mxu0 %v885
      %1022 = vmatprep.subr.bf16.mxu0 0
      %1023 = vmatpush1.bf16.msra.mxu0 %v886
      %1024 = vmatprep.subr.bf16.mxu0 0
      %1025 = vmatpush1.bf16.msra.mxu0 %v887
      %1026 = vmatprep.subr.bf16.mxu0 0
      %1027 = vmatpush1.bf16.msra.mxu0 %v888
      %1028 = vmatprep.mubr.bf16.mxu0 %v523
      %1029 = vmatmul.mubr.bf16.gmra.mrb[0].mxu0 %v522
      %v1030 = vpop.f32.mrb[0].mxu0
      %v1031 = vadd.f32 %v676, %v1030
      %v1032 = vpop.f32.mrb[0].mxu0
      %v1033 = vpop.f32.mrb[0].mxu0
      %v1034 = vadd.f32 %v676, %v1033
      %v1035 = vpop.f32.mrb[0].mxu0
      %1036 = vmatprep.mubr.bf16.mxu0 %v530
      %1037 = vmatmul.mubr.bf16.gmra.mrb[0].mxu0 %v529
      %v1038 = vpop.f32.mrb[0].mxu0
      %v1039 = vadd.f32 %v676, %v1038
      %v1040 = vpop.f32.mrb[0].mxu0
      %v1041 = vpop.f32.mrb[0].mxu0
      %v1042 = vadd.f32 %v676, %v1041
      %v1043 = vpop.f32.mrb[0].mxu0
      %1044 = vmatprep.mubr.bf16.mxu0 %v537
      %1045 = vmatmul.mubr.bf16.gmra.mrb[0].mxu0 %v536
      %v1046 = vpop.f32.mrb[0].mxu0
      %v1047 = vadd.f32 %v676, %v1046
      %v1048 = vpop.f32.mrb[0].mxu0
      %v1049 = vpop.f32.mrb[0].mxu0
      %v1050 = vadd.f32 %v676, %v1049
      %v1051 = vpop.f32.mrb[0].mxu0
      %1052 = vmatprep.mubr.bf16.mxu0 %v544
      %1053 = vmatmul.mubr.bf16.gmra.mrb[0].mxu0 %v543
      %v1054 = vpop.f32.mrb[0].mxu0
      %v1055 = vadd.f32 %v676, %v1054
      %v1056 = vpop.f32.mrb[0].mxu0
      %v1057 = vpop.f32.mrb[0].mxu0
      %v1058 = vadd.f32 %v676, %v1057
      %v1059 = vpop.f32.mrb[0].mxu0
      %1060 = vmatprep.mubr.bf16.mxu0 %v551
      %1061 = vmatmul.mubr.bf16.gmra.mrb[0].mxu0 %v550
      %v1062 = vpop.f32.mrb[0].mxu0
      %v1063 = vadd.f32 %v676, %v1062
      %v1064 = vpop.f32.mrb[0].mxu0
      %v1065 = vpop.f32.mrb[0].mxu0
      %v1066 = vadd.f32 %v676, %v1065
      %v1067 = vpop.f32.mrb[0].mxu0
      %1068 = vmatprep.mubr.bf16.mxu0 %v558
      %1069 = vmatmul.mubr.bf16.gmra.mrb[0].mxu0 %v557
      %v1070 = vpop.f32.mrb[0].mxu0
      %v1071 = vadd.f32 %v676, %v1070
      %v1072 = vpop.f32.mrb[0].mxu0
      %v1073 = vpop.f32.mrb[0].mxu0
      %v1074 = vadd.f32 %v676, %v1073
      %v1075 = vpop.f32.mrb[0].mxu0
      %1076 = vmatprep.mubr.bf16.mxu0 %v565
      %1077 = vmatmul.mubr.bf16.gmra.mrb[0].mxu0 %v564
      %v1078 = vpop.f32.mrb[0].mxu0
      %v1079 = vadd.f32 %v676, %v1078
      %v1080 = vpop.f32.mrb[0].mxu0
      %v1081 = vpop.f32.mrb[0].mxu0
      %v1082 = vadd.f32 %v676, %v1081
      %v1083 = vpop.f32.mrb[0].mxu0
      %1084 = vmatprep.mubr.bf16.mxu0 %v572
      %1085 = vmatmul.mubr.bf16.gmra.mrb[0].mxu0 %v571
      %v1086 = vpop.f32.mrb[0].mxu0
      %v1087 = vadd.f32 %v676, %v1086
      %v1088 = vpop.f32.mrb[0].mxu0
      %v1089 = vpop.f32.mrb[0].mxu0
      %v1090 = vadd.f32 %v676, %v1089
      %v1091 = vpop.f32.mrb[0].mxu0
      %1092 = vdwg.mxu0
      %1093 = vmatprep.subr.bf16.mxu0 0
      %1094 = vmatpush1.bf16.msra.mxu0 %v889
      %1095 = vmatprep.subr.bf16.mxu0 0
      %1096 = vmatpush1.bf16.msra.mxu0 %v890
      %1097 = vmatprep.subr.bf16.mxu0 0
      %1098 = vmatpush1.bf16.msra.mxu0 %v891
      %1099 = vmatprep.subr.bf16.mxu0 0
      %1100 = vmatpush1.bf16.msra.mxu0 %v892
      %1101 = vmatprep.subr.bf16.mxu0 0
      %1102 = vmatpush1.bf16.msra.mxu0 %v893
      %1103 = vmatprep.subr.bf16.mxu0 0
      %1104 = vmatpush1.bf16.msra.mxu0 %v894
      %1105 = vmatprep.subr.bf16.mxu0 0
      %1106 = vmatpush1.bf16.msra.mxu0 %v895
      %1107 = vmatprep.subr.bf16.mxu0 0
      %1108 = vmatpush1.bf16.msra.mxu0 %v896
      %1109 = vmatprep.subr.bf16.mxu0 0
      %1110 = vmatpush1.bf16.msra.mxu0 %v897
      %1111 = vmatprep.subr.bf16.mxu0 0
      %1112 = vmatpush1.bf16.msra.mxu0 %v898
      %1113 = vmatprep.subr.bf16.mxu0 0
      %1114 = vmatpush1.bf16.msra.mxu0 %v899
      %1115 = vmatprep.subr.bf16.mxu0 0
      %1116 = vmatpush1.bf16.msra.mxu0 %v900
      %1117 = vmatprep.subr.bf16.mxu0 0
      %1118 = vmatpush1.bf16.msra.mxu0 %v901
      %1119 = vmatprep.subr.bf16.mxu0 0
      %1120 = vmatpush1.bf16.msra.mxu0 %v902
      %1121 = vmatprep.subr.bf16.mxu0 0
      %1122 = vmatpush1.bf16.msra.mxu0 %v903
      %1123 = vmatprep.subr.bf16.mxu0 0
      %1124 = vmatpush1.bf16.msra.mxu0 %v904
      %1125 = vmatprep.mubr.bf16.mxu0 %v525
      %1126 = vmatmul.mubr.bf16.gmra.mrb[0].mxu0 %v524
      %v1127 = vpop.f32.mrb[0].mxu0
      %v1128 = vadd.f32 %v1031, %v1127
      %v1129 = vpop.f32.mrb[0].mxu0
      %v1130 = vpop.f32.mrb[0].mxu0
      %v1131 = vadd.f32 %v1034, %v1130
      %v1132 = vpop.f32.mrb[0].mxu0
      %1133 = vmatprep.mubr.bf16.mxu0 %v532
      %1134 = vmatmul.mubr.bf16.gmra.mrb[0].mxu0 %v531
      %v1135 = vpop.f32.mrb[0].mxu0
      %v1136 = vadd.f32 %v1039, %v1135
      %v1137 = vpop.f32.mrb[0].mxu0
      %v1138 = vpop.f32.mrb[0].mxu0
      %v1139 = vadd.f32 %v1042, %v1138
      %v1140 = vpop.f32.mrb[0].mxu0
      %1141 = vmatprep.mubr.bf16.mxu0 %v539
      %1142 = vmatmul.mubr.bf16.gmra.mrb[0].mxu0 %v538
      %v1143 = vpop.f32.mrb[0].mxu0
      %v1144 = vadd.f32 %v1047, %v1143
      %v1145 = vpop.f32.mrb[0].mxu0
      %v1146 = vpop.f32.mrb[0].mxu0
      %v1147 = vadd.f32 %v1050, %v1146
      %v1148 = vpop.f32.mrb[0].mxu0
      %1149 = vmatprep.mubr.bf16.mxu0 %v546
      %1150 = vmatmul.mubr.bf16.gmra.mrb[0].mxu0 %v545
      %v1151 = vpop.f32.mrb[0].mxu0
      %v1152 = vadd.f32 %v1055, %v1151
      %v1153 = vpop.f32.mrb[0].mxu0
      %v1154 = vpop.f32.mrb[0].mxu0
      %v1155 = vadd.f32 %v1058, %v1154
      %v1156 = vpop.f32.mrb[0].mxu0
      %1157 = vmatprep.mubr.bf16.mxu0 %v553
      %1158 = vmatmul.mubr.bf16.gmra.mrb[0].mxu0 %v552
      %v1159 = vpop.f32.mrb[0].mxu0
      %v1160 = vadd.f32 %v1063, %v1159
      %v1161 = vpop.f32.mrb[0].mxu0
      %v1162 = vpop.f32.mrb[0].mxu0
      %v1163 = vadd.f32 %v1066, %v1162
      %v1164 = vpop.f32.mrb[0].mxu0
      %1165 = vmatprep.mubr.bf16.mxu0 %v560
      %1166 = vmatmul.mubr.bf16.gmra.mrb[0].mxu0 %v559
      %v1167 = vpop.f32.mrb[0].mxu0
      %v1168 = vadd.f32 %v1071, %v1167
      %v1169 = vpop.f32.mrb[0].mxu0
      %v1170 = vpop.f32.mrb[0].mxu0
      %v1171 = vadd.f32 %v1074, %v1170
      %v1172 = vpop.f32.mrb[0].mxu0
      %1173 = vmatprep.mubr.bf16.mxu0 %v567
      %1174 = vmatmul.mubr.bf16.gmra.mrb[0].mxu0 %v566
      %v1175 = vpop.f32.mrb[0].mxu0
      %v1176 = vadd.f32 %v1079, %v1175
      %v1177 = vpop.f32.mrb[0].mxu0
      %v1178 = vpop.f32.mrb[0].mxu0
      %v1179 = vadd.f32 %v1082, %v1178
      %v1180 = vpop.f32.mrb[0].mxu0
      %1181 = vmatprep.mubr.bf16.mxu0 %v574
      %1182 = vmatmul.mubr.bf16.gmra.mrb[0].mxu0 %v573
      %v1183 = vpop.f32.mrb[0].mxu0
      %v1184 = vadd.f32 %v1087, %v1183
      %v1185 = vpop.f32.mrb[0].mxu0
      %v1186 = vpop.f32.mrb[0].mxu0
      %v1187 = vadd.f32 %v1090, %v1186
      %v1188 = vpop.f32.mrb[0].mxu0
      %1189 = vdwg.mxu0
      %1190 = vmatprep.subr.bf16.mxu0 0
      %1191 = vmatpush1.bf16.msra.mxu0 %v905
      %1192 = vmatprep.subr.bf16.mxu0 0
      %1193 = vmatpush1.bf16.msra.mxu0 %v906
      %1194 = vmatprep.subr.bf16.mxu0 0
      %1195 = vmatpush1.bf16.msra.mxu0 %v907
      %1196 = vmatprep.subr.bf16.mxu0 0
      %1197 = vmatpush1.bf16.msra.mxu0 %v908
      %1198 = vmatprep.subr.bf16.mxu0 0
      %1199 = vmatpush1.bf16.msra.mxu0 %v909
      %1200 = vmatprep.subr.bf16.mxu0 0
      %1201 = vmatpush1.bf16.msra.mxu0 %v910
      %1202 = vmatprep.subr.bf16.mxu0 0
      %1203 = vmatpush1.bf16.msra.mxu0 %v911
      %1204 = vmatprep.subr.bf16.mxu0 0
      %1205 = vmatpush1.bf16.msra.mxu0 %v912
      %1206 = vmatprep.subr.bf16.mxu0 0
      %1207 = vmatpush1.bf16.msra.mxu0 %v913
      %1208 = vmatprep.subr.bf16.mxu0 0
      %1209 = vmatpush1.bf16.msra.mxu0 %v914
      %1210 = vmatprep.subr.bf16.mxu0 0
      %1211 = vmatpush1.bf16.msra.mxu0 %v915
      %1212 = vmatprep.subr.bf16.mxu0 0
      %1213 = vmatpush1.bf16.msra.mxu0 %v916
      %1214 = vmatprep.subr.bf16.mxu0 0
      %1215 = vmatpush1.bf16.msra.mxu0 %v917
      %1216 = vmatprep.subr.bf16.mxu0 0
      %1217 = vmatpush1.bf16.msra.mxu0 %v918
      %1218 = vmatprep.subr.bf16.mxu0 0
      %1219 = vmatpush1.bf16.msra.mxu0 %v919
      %1220 = vmatprep.subr.bf16.mxu0 0
      %1221 = vmatpush1.bf16.msra.mxu0 %v920
      %1222 = vmatprep.mubr.bf16.mxu0 %v527
      %1223 = vmatmul.mubr.bf16.gmra.mrb[0].mxu0 %v526
      %v1224 = vpop.f32.mrb[0].mxu0
      %v1225 = vadd.f32 %v1128, %v1224
      %v1226 = vpop.f32.mrb[0].mxu0
      %v1227 = vpop.f32.mrb[0].mxu0
      %v1228 = vadd.f32 %v1131, %v1227
      %v1229 = vpop.f32.mrb[0].mxu0
      %1230 = vmatprep.mubr.bf16.mxu0 %v534
      %1231 = vmatmul.mubr.bf16.gmra.mrb[0].mxu0 %v533
      %v1232 = vpop.f32.mrb[0].mxu0
      %v1233 = vadd.f32 %v1136, %v1232
      %v1234 = vpop.f32.mrb[0].mxu0
      %v1235 = vpop.f32.mrb[0].mxu0
      %v1236 = vadd.f32 %v1139, %v1235
      %v1237 = vpop.f32.mrb[0].mxu0
      %1238 = vmatprep.mubr.bf16.mxu0 %v541
      %1239 = vmatmul.mubr.bf16.gmra.mrb[0].mxu0 %v540
      %v1240 = vpop.f32.mrb[0].mxu0
      %v1241 = vadd.f32 %v1144, %v1240
      %v1242 = vpop.f32.mrb[0].mxu0
      %v1243 = vpop.f32.mrb[0].mxu0
      %v1244 = vadd.f32 %v1147, %v1243
      %v1245 = vpop.f32.mrb[0].mxu0
      %1246 = vmatprep.mubr.bf16.mxu0 %v548
      %1247 = vmatmul.mubr.bf16.gmra.mrb[0].mxu0 %v547
      %v1248 = vpop.f32.mrb[0].mxu0
      %v1249 = vadd.f32 %v1152, %v1248
      %v1250 = vpop.f32.mrb[0].mxu0
      %v1251 = vpop.f32.mrb[0].mxu0
      %v1252 = vadd.f32 %v1155, %v1251
      %v1253 = vpop.f32.mrb[0].mxu0
      %1254 = vmatprep.mubr.bf16.mxu0 %v555
      %1255 = vmatmul.mubr.bf16.gmra.mrb[0].mxu0 %v554
      %v1256 = vpop.f32.mrb[0].mxu0
      %v1257 = vadd.f32 %v1160, %v1256
      %v1258 = vpop.f32.mrb[0].mxu0
      %v1259 = vpop.f32.mrb[0].mxu0
      %v1260 = vadd.f32 %v1163, %v1259
      %v1261 = vpop.f32.mrb[0].mxu0
      %1262 = vmatprep.mubr.bf16.mxu0 %v562
      %1263 = vmatmul.mubr.bf16.gmra.mrb[0].mxu0 %v561
      %v1264 = vpop.f32.mrb[0].mxu0
      %v1265 = vadd.f32 %v1168, %v1264
      %v1266 = vpop.f32.mrb[0].mxu0
      %v1267 = vpop.f32.mrb[0].mxu0
      %v1268 = vadd.f32 %v1171, %v1267
      %v1269 = vpop.f32.mrb[0].mxu0
      %1270 = vmatprep.mubr.bf16.mxu0 %v569
      %1271 = vmatmul.mubr.bf16.gmra.mrb[0].mxu0 %v568
      %v1272 = vpop.f32.mrb[0].mxu0
      %v1273 = vadd.f32 %v1176, %v1272
      %v1274 = vpop.f32.mrb[0].mxu0
      %v1275 = vpop.f32.mrb[0].mxu0
      %v1276 = vadd.f32 %v1179, %v1275
      %v1277 = vpop.f32.mrb[0].mxu0
      %1278 = vmatprep.mubr.bf16.mxu0 %v576
      %1279 = vmatmul.mubr.bf16.gmra.mrb[0].mxu0 %v575
      %v1280 = vpop.f32.mrb[0].mxu0
      %v1281 = vadd.f32 %v1184, %v1280
      %v1282 = vpop.f32.mrb[0].mxu0
      %v1283 = vpop.f32.mrb[0].mxu0
      %v1284 = vadd.f32 %v1187, %v1283
      %v1285 = vpop.f32.mrb[0].mxu0
      %1286 = vdwg.mxu0
      %1287 = vmatprep.subr.bf16.mxu0 0
      %1288 = vmatpush1.bf16.msra.mxu0 %v921
      %1289 = vmatprep.subr.bf16.mxu0 0
      %1290 = vmatpush1.bf16.msra.mxu0 0
      %1291 = vmatprep.subr.bf16.mxu0 0
      %1292 = vmatpush1.bf16.msra.mxu0 0
      %1293 = vmatprep.subr.bf16.mxu0 0
      %1294 = vmatpush1.bf16.msra.mxu0 0
      %1295 = vmatprep.subr.bf16.mxu0 0
      %1296 = vmatpush1.bf16.msra.mxu0 0
      %1297 = vmatprep.subr.bf16.mxu0 0
      %1298 = vmatpush1.bf16.msra.mxu0 0
      %1299 = vmatprep.subr.bf16.mxu0 0
      %1300 = vmatpush1.bf16.msra.mxu0 0
      %1301 = vmatprep.subr.bf16.mxu0 0
      %1302 = vmatpush1.bf16.msra.mxu0 0
      %1303 = vmatprep.subr.bf16.mxu0 0
      %1304 = vmatpush1.bf16.msra.mxu0 0
      %1305 = vmatprep.subr.bf16.mxu0 0
      %1306 = vmatpush1.bf16.msra.mxu0 0
      %1307 = vmatprep.subr.bf16.mxu0 0
      %1308 = vmatpush1.bf16.msra.mxu0 0
      %1309 = vmatprep.subr.bf16.mxu0 0
      %1310 = vmatpush1.bf16.msra.mxu0 0
      %1311 = vmatprep.subr.bf16.mxu0 0
      %1312 = vmatpush1.bf16.msra.mxu0 0
      %1313 = vmatprep.subr.bf16.mxu0 0
      %1314 = vmatpush1.bf16.msra.mxu0 0
      %1315 = vmatprep.subr.bf16.mxu0 0
      %1316 = vmatpush1.bf16.msra.mxu0 0
      %1317 = vmatprep.subr.bf16.mxu0 0
      %1318 = vmatpush1.bf16.msra.mxu0 0
      %1319 = vmatprep.mubr.bf16.mxu0 0
      %1320 = vmatmul.mubr.bf16.gmra.mrb[0].mxu0 %v973
      %v1321 = vpop.f32.mrb[0].mxu0
      %v1322 = vadd.f32 %v1225, %v1321
      %v1323 = vpop.f32.mrb[0].mxu0
      %v1324 = vpop.f32.mrb[0].mxu0
      %v1325 = vadd.f32 %v1228, %v1324
      %v1326 = vpop.f32.mrb[0].mxu0
      %1327 = vmatprep.mubr.bf16.mxu0 0
      %1328 = vmatmul.mubr.bf16.gmra.mrb[0].mxu0 %v976
      %v1329 = vpop.f32.mrb[0].mxu0
      %v1330 = vadd.f32 %v1233, %v1329
      %v1331 = vpop.f32.mrb[0].mxu0
      %v1332 = vpop.f32.mrb[0].mxu0
      %v1333 = vadd.f32 %v1236, %v1332
      %v1334 = vpop.f32.mrb[0].mxu0
      %1335 = vmatprep.mubr.bf16.mxu0 0
      %1336 = vmatmul.mubr.bf16.gmra.mrb[0].mxu0 %v979
      %v1337 = vpop.f32.mrb[0].mxu0
      %v1338 = vadd.f32 %v1241, %v1337
      %v1339 = vpop.f32.mrb[0].mxu0
      %v1340 = vpop.f32.mrb[0].mxu0
      %v1341 = vadd.f32 %v1244, %v1340
      %v1342 = vpop.f32.mrb[0].mxu0
      %1343 = vmatprep.mubr.bf16.mxu0 0
      %1344 = vmatmul.mubr.bf16.gmra.mrb[0].mxu0 %v982
      %v1345 = vpop.f32.mrb[0].mxu0
      %v1346 = vadd.f32 %v1249, %v1345
      %v1347 = vpop.f32.mrb[0].mxu0
      %v1348 = vpop.f32.mrb[0].mxu0
      %v1349 = vadd.f32 %v1252, %v1348
      %v1350 = vpop.f32.mrb[0].mxu0
      %1351 = vmatprep.mubr.bf16.mxu0 0
      %1352 = vmatmul.mubr.bf16.gmra.mrb[0].mxu0 %v985
      %v1353 = vpop.f32.mrb[0].mxu0
      %v1354 = vadd.f32 %v1257, %v1353
      %v1355 = vpop.f32.mrb[0].mxu0
      %v1356 = vpop.f32.mrb[0].mxu0
      %v1357 = vadd.f32 %v1260, %v1356
      %v1358 = vpop.f32.mrb[0].mxu0
      %1359 = vmatprep.mubr.bf16.mxu0 0
      %1360 = vmatmul.mubr.bf16.gmra.mrb[0].mxu0 %v988
      %v1361 = vpop.f32.mrb[0].mxu0
      %v1362 = vadd.f32 %v1265, %v1361
      %v1363 = vpop.f32.mrb[0].mxu0
      %v1364 = vpop.f32.mrb[0].mxu0
      %v1365 = vadd.f32 %v1268, %v1364
      %v1366 = vpop.f32.mrb[0].mxu0
      %1367 = vmatprep.mubr.bf16.mxu0 0
      %1368 = vmatmul.mubr.bf16.gmra.mrb[0].mxu0 %v991
      %v1369 = vpop.f32.mrb[0].mxu0
      %v1370 = vadd.f32 %v1273, %v1369
      %v1371 = vpop.f32.mrb[0].mxu0
      %v1372 = vpop.f32.mrb[0].mxu0
      %v1373 = vadd.f32 %v1276, %v1372
      %v1374 = vpop.f32.mrb[0].mxu0
      %1375 = vmatprep.mubr.bf16.mxu0 0
      %1376 = vmatmul.mubr.bf16.gmra.mrb[0].mxu0 %v994
      %v1377 = vpop.f32.mrb[0].mxu0
      %v1378 = vadd.f32 %v1281, %v1377
      %v1379 = vpop.f32.mrb[0].mxu0
      %v1380 = vpop.f32.mrb[0].mxu0
      %v1381 = vadd.f32 %v1284, %v1380
      %v1382 = vpop.f32.mrb[0].mxu0
      %1383 = vdwg.mxu0
      %v1384 = vmax.f32 %v1322, 0.0
      %v1385 = vmax.f32 %v1325, 0.0
      %v1386 = vmax.f32 %v1330, 0.0
      %v1387 = vmax.f32 %v1333, 0.0
      %v1388 = vmax.f32 %v1338, 0.0
      %v1389 = vmax.f32 %v1341, 0.0
      %v1390 = vmax.f32 %v1346, 0.0
      %v1391 = vmax.f32 %v1349, 0.0
      %v1392 = vmax.f32 %v1354, 0.0
      %v1393 = vmax.f32 %v1357, 0.0
      %v1394 = vmax.f32 %v1362, 0.0
      %v1395 = vmax.f32 %v1365, 0.0
      %v1396 = vmax.f32 %v1370, 0.0
      %v1397 = vmax.f32 %v1373, 0.0
      %v1398 = vmax.f32 %v1378, 0.0
      %v1399 = vmax.f32 %v1381, 0.0
      %v1400 = vld [vmem:[%s2] sm:$0xff]
      %v1401 = vld [vmem:[%s2 + $0x8] sm:$0xff]
      %v1402 = vld [vmem:[%s2 + $0x10] sm:$0xff]
      %v1403 = vld [vmem:[%s2 + $0x18] sm:$0xff]
      %v1404 = vld [vmem:[%s2 + $0x20] sm:$0xff]
      %v1405 = vld [vmem:[%s2 + $0x28] sm:$0xff]
      %v1406 = vld [vmem:[%s2 + $0x30] sm:$0xff]
      %v1407 = vld [vmem:[%s2 + $0x38] sm:$0xff]
      %v1408 = vld [vmem:[%s2 + $0x40] sm:$0xff]
      %v1409 = vld [vmem:[%s2 + $0x48] sm:$0xff]
      %v1410 = vld [vmem:[%s2 + $0x50] sm:$0xff]
      %v1411 = vld [vmem:[%s2 + $0x58] sm:$0xff]
      %v1412 = vld [vmem:[%s2 + $0x60] sm:$0xff]
      %v1413 = vld [vmem:[%s2 + $0x68] sm:$0xff]
      %v1414 = vld [vmem:[%s2 + $0x70] sm:$0xff]
      %v1415 = vld [vmem:[%s2 + $0x78] sm:$0xff]
      %v1416 = vld [vmem:[%s9 + $0x1] ss:$0 sm:$0xff]
      %1417 = vmatprep.subr.mxu0 0.0
      %1418 = vmatpush1.msra.mxu0 %v1400
      %1419 = vmatprep.subr.mxu0 0.0
      %1420 = vmatpush1.msra.mxu0 %v1401
      %1421 = vmatprep.subr.mxu0 0.0
      %1422 = vmatpush1.msra.mxu0 %v1402
      %1423 = vmatprep.subr.mxu0 0.0
      %1424 = vmatpush1.msra.mxu0 %v1403
      %1425 = vmatprep.subr.mxu0 0.0
      %1426 = vmatpush1.msra.mxu0 %v1404
      %1427 = vmatprep.subr.mxu0 0.0
      %1428 = vmatpush1.msra.mxu0 %v1405
      %1429 = vmatprep.subr.mxu0 0.0
      %1430 = vmatpush1.msra.mxu0 %v1406
      %1431 = vmatprep.subr.mxu0 0.0
      %1432 = vmatpush1.msra.mxu0 %v1407
      %1433 = vmatprep.subr.mxu0 0.0
      %1434 = vmatpush1.msra.mxu0 %v1408
      %1435 = vmatprep.subr.mxu0 0.0
      %1436 = vmatpush1.msra.mxu0 %v1409
      %1437 = vmatprep.subr.mxu0 0.0
      %1438 = vmatpush1.msra.mxu0 %v1410
      %1439 = vmatprep.subr.mxu0 0.0
      %1440 = vmatpush1.msra.mxu0 %v1411
      %1441 = vmatprep.subr.mxu0 0.0
      %1442 = vmatpush1.msra.mxu0 %v1412
      %1443 = vmatprep.subr.mxu0 0.0
      %1444 = vmatpush1.msra.mxu0 %v1413
      %1445 = vmatprep.subr.mxu0 0.0
      %1446 = vmatpush1.msra.mxu0 %v1414
      %1447 = vmatprep.subr.mxu0 0.0
      %1448 = vmatpush1.msra.mxu0 %v1415
      %1449 = vmatprep.subr.mxu0 0.0
      %1450 = vmatpush1.msra.mxu0 0.0
      %1451 = vmatprep.subr.mxu0 0.0
      %1452 = vmatpush1.msra.mxu0 0.0
      %1453 = vmatprep.subr.mxu0 0.0
      %1454 = vmatpush1.msra.mxu0 0.0
      %1455 = vmatprep.subr.mxu0 0.0
      %1456 = vmatpush1.msra.mxu0 0.0
      %1457 = vmatprep.subr.mxu0 0.0
      %1458 = vmatpush1.msra.mxu0 0.0
      %1459 = vmatprep.subr.mxu0 0.0
      %1460 = vmatpush1.msra.mxu0 0.0
      %1461 = vmatprep.subr.mxu0 0.0
      %1462 = vmatpush1.msra.mxu0 0.0
      %1463 = vmatprep.subr.mxu0 0.0
      %1464 = vmatpush1.msra.mxu0 0.0
      %1465 = vmatprep.subr.mxu0 0.0
      %1466 = vmatpush1.msra.mxu0 0.0
      %1467 = vmatprep.subr.mxu0 0.0
      %1468 = vmatpush1.msra.mxu0 0.0
      %1469 = vmatprep.subr.mxu0 0.0
      %1470 = vmatpush1.msra.mxu0 0.0
      %1471 = vmatprep.subr.mxu0 0.0
      %1472 = vmatpush1.msra.mxu0 0.0
      %1473 = vmatprep.subr.mxu0 0.0
      %1474 = vmatpush1.msra.mxu0 0.0
      %1475 = vmatprep.subr.mxu0 0.0
      %1476 = vmatpush1.msra.mxu0 0.0
      %1477 = vmatprep.subr.mxu0 0.0
      %1478 = vmatpush1.msra.mxu0 0.0
      %1479 = vmatprep.subr.mxu0 0.0
      %1480 = vmatpush1.msra.mxu0 0.0
      %1481 = vmatprep.mubr.f32.mxu0 0.0
      %1482 = vmatmul.mubr.f32.gmra.mrb[0].mxu0 %v1384
      %v1483 = vpop.f32.mrb[0].mxu0
      %v1484 = vadd.f32 %v1416, %v1483
      %v1485 = vpop.f32.mrb[0].mxu0
      %1486 = vmatprep.mubr.f32.mxu0 0.0
      %1487 = vmatmul.mubr.f32.gmra.mrb[0].mxu0 %v1385
      %v1488 = vpop.f32.mrb[0].mxu0
      %v1489 = vadd.f32 %v1416, %v1488
      %v1490 = vpop.f32.mrb[0].mxu0
      %1491 = vmatprep.mubr.f32.mxu0 0.0
      %1492 = vmatmul.mubr.f32.gmra.mrb[0].mxu0 %v1386
      %v1493 = vpop.f32.mrb[0].mxu0
      %v1494 = vadd.f32 %v1416, %v1493
      %v1495 = vpop.f32.mrb[0].mxu0
      %1496 = vmatprep.mubr.f32.mxu0 0.0
      %1497 = vmatmul.mubr.f32.gmra.mrb[0].mxu0 %v1387
      %v1498 = vpop.f32.mrb[0].mxu0
      %v1499 = vadd.f32 %v1416, %v1498
      %v1500 = vpop.f32.mrb[0].mxu0
      %1501 = vmatprep.mubr.f32.mxu0 0.0
      %1502 = vmatmul.mubr.f32.gmra.mrb[0].mxu0 %v1388
      %v1503 = vpop.f32.mrb[0].mxu0
      %v1504 = vadd.f32 %v1416, %v1503
      %v1505 = vpop.f32.mrb[0].mxu0
      %1506 = vmatprep.mubr.f32.mxu0 0.0
      %1507 = vmatmul.mubr.f32.gmra.mrb[0].mxu0 %v1389
      %v1508 = vpop.f32.mrb[0].mxu0
      %v1509 = vadd.f32 %v1416, %v1508
      %v1510 = vpop.f32.mrb[0].mxu0
      %1511 = vmatprep.mubr.f32.mxu0 0.0
      %1512 = vmatmul.mubr.f32.gmra.mrb[0].mxu0 %v1390
      %v1513 = vpop.f32.mrb[0].mxu0
      %v1514 = vadd.f32 %v1416, %v1513
      %v1515 = vpop.f32.mrb[0].mxu0
      %1516 = vmatprep.mubr.f32.mxu0 0.0
      %1517 = vmatmul.mubr.f32.gmra.mrb[0].mxu0 %v1391
      %v1518 = vpop.f32.mrb[0].mxu0
      %v1519 = vadd.f32 %v1416, %v1518
      %v1520 = vpop.f32.mrb[0].mxu0
      %1521 = vmatprep.mubr.f32.mxu0 0.0
      %1522 = vmatmul.mubr.f32.gmra.mrb[0].mxu0 %v1392
      %v1523 = vpop.f32.mrb[0].mxu0
      %v1524 = vadd.f32 %v1416, %v1523
      %v1525 = vpop.f32.mrb[0].mxu0
      %1526 = vmatprep.mubr.f32.mxu0 0.0
      %1527 = vmatmul.mubr.f32.gmra.mrb[0].mxu0 %v1393
      %v1528 = vpop.f32.mrb[0].mxu0
      %v1529 = vadd.f32 %v1416, %v1528
      %v1530 = vpop.f32.mrb[0].mxu0
      %1531 = vmatprep.mubr.f32.mxu0 0.0
      %1532 = vmatmul.mubr.f32.gmra.mrb[0].mxu0 %v1394
      %v1533 = vpop.f32.mrb[0].mxu0
      %v1534 = vadd.f32 %v1416, %v1533
      %v1535 = vpop.f32.mrb[0].mxu0
      %1536 = vmatprep.mubr.f32.mxu0 0.0
      %1537 = vmatmul.mubr.f32.gmra.mrb[0].mxu0 %v1395
      %v1538 = vpop.f32.mrb[0].mxu0
      %v1539 = vadd.f32 %v1416, %v1538
      %v1540 = vpop.f32.mrb[0].mxu0
      %1541 = vmatprep.mubr.f32.mxu0 0.0
      %1542 = vmatmul.mubr.f32.gmra.mrb[0].mxu0 %v1396
      %v1543 = vpop.f32.mrb[0].mxu0
      %v1544 = vadd.f32 %v1416, %v1543
      %v1545 = vpop.f32.mrb[0].mxu0
      %1546 = vmatprep.mubr.f32.mxu0 0.0
      %1547 = vmatmul.mubr.f32.gmra.mrb[0].mxu0 %v1397
      %v1548 = vpop.f32.mrb[0].mxu0
      %v1549 = vadd.f32 %v1416, %v1548
      %v1550 = vpop.f32.mrb[0].mxu0
      %1551 = vmatprep.mubr.f32.mxu0 0.0
      %1552 = vmatmul.mubr.f32.gmra.mrb[0].mxu0 %v1398
      %v1553 = vpop.f32.mrb[0].mxu0
      %v1554 = vadd.f32 %v1416, %v1553
      %v1555 = vpop.f32.mrb[0].mxu0
      %1556 = vmatprep.mubr.f32.mxu0 0.0
      %1557 = vmatmul.mubr.f32.gmra.mrb[0].mxu0 %v1399
      %v1558 = vpop.f32.mrb[0].mxu0
      %v1559 = vadd.f32 %v1416, %v1558
      %v1560 = vpop.f32.mrb[0].mxu0
      %1561 = vdwg.mxu0
      %v1562 = vmax.f32 %v1484, 0.0
      %v1563 = vmax.f32 %v1489, 0.0
      %v1564 = vmax.f32 %v1494, 0.0
      %v1565 = vmax.f32 %v1499, 0.0
      %v1566 = vmax.f32 %v1504, 0.0
      %v1567 = vmax.f32 %v1509, 0.0
      %v1568 = vmax.f32 %v1514, 0.0
      %v1569 = vmax.f32 %v1519, 0.0
      %v1570 = vmax.f32 %v1524, 0.0
      %v1571 = vmax.f32 %v1529, 0.0
      %v1572 = vmax.f32 %v1534, 0.0
      %v1573 = vmax.f32 %v1539, 0.0
      %v1574 = vmax.f32 %v1544, 0.0
      %v1575 = vmax.f32 %v1549, 0.0
      %v1576 = vmax.f32 %v1554, 0.0
      %v1577 = vmax.f32 %v1559, 0.0
      %v1578 = vld [vmem:[%s3] sm:$0xff]
      %v1579 = vld [vmem:[%s3 + $0x8] sm:$0xff]
      %v1580 = vld [vmem:[%s3 + $0x10] sm:$0xff]
      %v1581 = vld [vmem:[%s3 + $0x18] sm:$0xff]
      %v1582 = vld [vmem:[%s3 + $0x20] sm:$0xff]
      %v1583 = vld [vmem:[%s3 + $0x28] sm:$0xff]
      %v1584 = vld [vmem:[%s3 + $0x30] sm:$0xff]
      %v1585 = vld [vmem:[%s3 + $0x38] sm:$0xff]
      %v1586 = vld [vmem:[%s9 + $0x2] ss:$0 sm:$0xff]
      %vm1587 = vcmask 523264
      %v1589 = vsel %vm1587, %v1562, 0
      %v1592 = vsel %vm1587, %v1563, 0
      %v1595 = vsel %vm1587, %v1564, 0
      %v1598 = vsel %vm1587, %v1565, 0
      %v1601 = vsel %vm1587, %v1566, 0
      %v1604 = vsel %vm1587, %v1567, 0
      %v1607 = vsel %vm1587, %v1568, 0
      %v1610 = vsel %vm1587, %v1569, 0
      %v1613 = vsel %vm1587, %v1570, 0
      %v1616 = vsel %vm1587, %v1571, 0
      %v1619 = vsel %vm1587, %v1572, 0
      %v1622 = vsel %vm1587, %v1573, 0
      %v1625 = vsel %vm1587, %v1574, 0
      %v1628 = vsel %vm1587, %v1575, 0
      %v1631 = vsel %vm1587, %v1576, 0
      %v1634 = vsel %vm1587, %v1577, 0
      %1636 = vmatprep.subr.mxu0 0.0
      %1637 = vmatpush1.msra.mxu0 %v1578
      %1638 = vmatprep.subr.mxu0 0.0
      %1639 = vmatpush1.msra.mxu0 %v1579
      %1640 = vmatprep.subr.mxu0 0.0
      %1641 = vmatpush1.msra.mxu0 %v1580
      %1642 = vmatprep.subr.mxu0 0.0
      %1643 = vmatpush1.msra.mxu0 %v1581
      %1644 = vmatprep.subr.mxu0 0.0
      %1645 = vmatpush1.msra.mxu0 %v1582
      %1646 = vmatprep.subr.mxu0 0.0
      %1647 = vmatpush1.msra.mxu0 %v1583
      %1648 = vmatprep.subr.mxu0 0.0
      %1649 = vmatpush1.msra.mxu0 %v1584
      %1650 = vmatprep.subr.mxu0 0.0
      %1651 = vmatpush1.msra.mxu0 %v1585
      %1652 = vmatprep.subr.mxu0 0.0
      %1653 = vmatpush1.msra.mxu0 0.0
      %1654 = vmatprep.subr.mxu0 0.0
      %1655 = vmatpush1.msra.mxu0 0.0
      %1656 = vmatprep.subr.mxu0 0.0
      %1657 = vmatpush1.msra.mxu0 0.0
      %1658 = vmatprep.subr.mxu0 0.0
      %1659 = vmatpush1.msra.mxu0 0.0
      %1660 = vmatprep.subr.mxu0 0.0
      %1661 = vmatpush1.msra.mxu0 0.0
      %1662 = vmatprep.subr.mxu0 0.0
      %1663 = vmatpush1.msra.mxu0 0.0
      %1664 = vmatprep.subr.mxu0 0.0
      %1665 = vmatpush1.msra.mxu0 0.0
      %1666 = vmatprep.subr.mxu0 0.0
      %1667 = vmatpush1.msra.mxu0 0.0
      %1668 = vmatprep.subr.mxu0 0.0
      %1669 = vmatpush1.msra.mxu0 0.0
      %1670 = vmatprep.subr.mxu0 0.0
      %1671 = vmatpush1.msra.mxu0 0.0
      %1672 = vmatprep.subr.mxu0 0.0
      %1673 = vmatpush1.msra.mxu0 0.0
      %1674 = vmatprep.subr.mxu0 0.0
      %1675 = vmatpush1.msra.mxu0 0.0
      %1676 = vmatprep.subr.mxu0 0.0
      %1677 = vmatpush1.msra.mxu0 0.0
      %1678 = vmatprep.subr.mxu0 0.0
      %1679 = vmatpush1.msra.mxu0 0.0
      %1680 = vmatprep.subr.mxu0 0.0
      %1681 = vmatpush1.msra.mxu0 0.0
      %1682 = vmatprep.subr.mxu0 0.0
      %1683 = vmatpush1.msra.mxu0 0.0
      %1684 = vmatprep.subr.mxu0 0.0
      %1685 = vmatpush1.msra.mxu0 0.0
      %1686 = vmatprep.subr.mxu0 0.0
      %1687 = vmatpush1.msra.mxu0 0.0
      %1688 = vmatprep.subr.mxu0 0.0
      %1689 = vmatpush1.msra.mxu0 0.0
      %1690 = vmatprep.subr.mxu0 0.0
      %1691 = vmatpush1.msra.mxu0 0.0
      %1692 = vmatprep.subr.mxu0 0.0
      %1693 = vmatpush1.msra.mxu0 0.0
      %1694 = vmatprep.subr.mxu0 0.0
      %1695 = vmatpush1.msra.mxu0 0.0
      %1696 = vmatprep.subr.mxu0 0.0
      %1697 = vmatpush1.msra.mxu0 0.0
      %1698 = vmatprep.subr.mxu0 0.0
      %1699 = vmatpush1.msra.mxu0 0.0
      %1700 = vmatprep.mubr.f32.mxu0 0.0
      %1701 = vmatmul.mubr.f32.gmra.mrb[0].mxu0 %v1589
      %v1702 = vpop.f32.mrb[0].mxu0
      %v1703 = vadd.f32 %v1586, %v1702
      %v1704 = vpop.f32.mrb[0].mxu0
      %1705 = vmatprep.mubr.f32.mxu0 0.0
      %1706 = vmatmul.mubr.f32.gmra.mrb[0].mxu0 %v1592
      %v1707 = vpop.f32.mrb[0].mxu0
      %v1708 = vadd.f32 %v1586, %v1707
      %v1709 = vpop.f32.mrb[0].mxu0
      %1710 = vmatprep.mubr.f32.mxu0 0.0
      %1711 = vmatmul.mubr.f32.gmra.mrb[0].mxu0 %v1595
      %v1712 = vpop.f32.mrb[0].mxu0
      %v1713 = vadd.f32 %v1586, %v1712
      %v1714 = vpop.f32.mrb[0].mxu0
      %1715 = vmatprep.mubr.f32.mxu0 0.0
      %1716 = vmatmul.mubr.f32.gmra.mrb[0].mxu0 %v1598
      %v1717 = vpop.f32.mrb[0].mxu0
      %v1718 = vadd.f32 %v1586, %v1717
      %v1719 = vpop.f32.mrb[0].mxu0
      %1720 = vmatprep.mubr.f32.mxu0 0.0
      %1721 = vmatmul.mubr.f32.gmra.mrb[0].mxu0 %v1601
      %v1722 = vpop.f32.mrb[0].mxu0
      %v1723 = vadd.f32 %v1586, %v1722
      %v1724 = vpop.f32.mrb[0].mxu0
      %1725 = vmatprep.mubr.f32.mxu0 0.0
      %1726 = vmatmul.mubr.f32.gmra.mrb[0].mxu0 %v1604
      %v1727 = vpop.f32.mrb[0].mxu0
      %v1728 = vadd.f32 %v1586, %v1727
      %v1729 = vpop.f32.mrb[0].mxu0
      %1730 = vmatprep.mubr.f32.mxu0 0.0
      %1731 = vmatmul.mubr.f32.gmra.mrb[0].mxu0 %v1607
      %v1732 = vpop.f32.mrb[0].mxu0
      %v1733 = vadd.f32 %v1586, %v1732
      %v1734 = vpop.f32.mrb[0].mxu0
      %1735 = vmatprep.mubr.f32.mxu0 0.0
      %1736 = vmatmul.mubr.f32.gmra.mrb[0].mxu0 %v1610
      %v1737 = vpop.f32.mrb[0].mxu0
      %v1738 = vadd.f32 %v1586, %v1737
      %v1739 = vpop.f32.mrb[0].mxu0
      %1740 = vmatprep.mubr.f32.mxu0 0.0
      %1741 = vmatmul.mubr.f32.gmra.mrb[0].mxu0 %v1613
      %v1742 = vpop.f32.mrb[0].mxu0
      %v1743 = vadd.f32 %v1586, %v1742
      %v1744 = vpop.f32.mrb[0].mxu0
      %1745 = vmatprep.mubr.f32.mxu0 0.0
      %1746 = vmatmul.mubr.f32.gmra.mrb[0].mxu0 %v1616
      %v1747 = vpop.f32.mrb[0].mxu0
      %v1748 = vadd.f32 %v1586, %v1747
      %v1749 = vpop.f32.mrb[0].mxu0
      %1750 = vmatprep.mubr.f32.mxu0 0.0
      %1751 = vmatmul.mubr.f32.gmra.mrb[0].mxu0 %v1619
      %v1752 = vpop.f32.mrb[0].mxu0
      %v1753 = vadd.f32 %v1586, %v1752
      %v1754 = vpop.f32.mrb[0].mxu0
      %1755 = vmatprep.mubr.f32.mxu0 0.0
      %1756 = vmatmul.mubr.f32.gmra.mrb[0].mxu0 %v1622
      %v1757 = vpop.f32.mrb[0].mxu0
      %v1758 = vadd.f32 %v1586, %v1757
      %v1759 = vpop.f32.mrb[0].mxu0
      %1760 = vmatprep.mubr.f32.mxu0 0.0
      %1761 = vmatmul.mubr.f32.gmra.mrb[0].mxu0 %v1625
      %v1762 = vpop.f32.mrb[0].mxu0
      %v1763 = vadd.f32 %v1586, %v1762
      %v1764 = vpop.f32.mrb[0].mxu0
      %1765 = vmatprep.mubr.f32.mxu0 0.0
      %1766 = vmatmul.mubr.f32.gmra.mrb[0].mxu0 %v1628
      %v1767 = vpop.f32.mrb[0].mxu0
      %v1768 = vadd.f32 %v1586, %v1767
      %v1769 = vpop.f32.mrb[0].mxu0
      %1770 = vmatprep.mubr.f32.mxu0 0.0
      %1771 = vmatmul.mubr.f32.gmra.mrb[0].mxu0 %v1631
      %v1772 = vpop.f32.mrb[0].mxu0
      %v1773 = vadd.f32 %v1586, %v1772
      %v1774 = vpop.f32.mrb[0].mxu0
      %1775 = vmatprep.mubr.f32.mxu0 0.0
      %1776 = vmatmul.mubr.f32.gmra.mrb[0].mxu0 %v1634
      %v1777 = vpop.f32.mrb[0].mxu0
      %v1778 = vadd.f32 %v1586, %v1777
      %v1779 = vpop.f32.mrb[0].mxu0
      %1780 = vdwg.mxu0
      %v1781 = vmax.f32 %v1703, 0.0
      %v1782 = vmax.f32 %v1708, 0.0
      %v1783 = vmax.f32 %v1713, 0.0
      %v1784 = vmax.f32 %v1718, 0.0
      %v1785 = vmax.f32 %v1723, 0.0
      %v1786 = vmax.f32 %v1728, 0.0
      %v1787 = vmax.f32 %v1733, 0.0
      %v1788 = vmax.f32 %v1738, 0.0
      %v1789 = vmax.f32 %v1743, 0.0
      %v1790 = vmax.f32 %v1748, 0.0
      %v1791 = vmax.f32 %v1753, 0.0
      %v1792 = vmax.f32 %v1758, 0.0
      %v1793 = vmax.f32 %v1763, 0.0
      %v1794 = vmax.f32 %v1768, 0.0
      %v1795 = vmax.f32 %v1773, 0.0
      %v1796 = vmax.f32 %v1778, 0.0
      %v1797 = vld [vmem:[%s4] sm:$0xff]
      %v1798 = vld [vmem:[%s4 + $0x8] sm:$0xf]
      %v1799 = vld [vmem:[%s9 + $0x3] ss:$0 sm:$0xff]
      %vm1800 = vcmask 97280
      %v1802 = vsel %vm1800, %v1781, 0
      %v1805 = vsel %vm1800, %v1782, 0
      %v1808 = vsel %vm1800, %v1783, 0
      %v1811 = vsel %vm1800, %v1784, 0
      %v1814 = vsel %vm1800, %v1785, 0
      %v1817 = vsel %vm1800, %v1786, 0
      %v1820 = vsel %vm1800, %v1787, 0
      %v1823 = vsel %vm1800, %v1788, 0
      %v1826 = vsel %vm1800, %v1789, 0
      %v1829 = vsel %vm1800, %v1790, 0
      %v1832 = vsel %vm1800, %v1791, 0
      %v1835 = vsel %vm1800, %v1792, 0
      %v1838 = vsel %vm1800, %v1793, 0
      %v1841 = vsel %vm1800, %v1794, 0
      %v1844 = vsel %vm1800, %v1795, 0
      %v1847 = vsel %vm1800, %v1796, 0
      %vm1849 = vcmask 1043456
      %v1851 = vsel %vm1849, %v1798, 0
      %1853 = vmatprep.subr.mxu0 0.0
      %1854 = vmatpush1.msra.mxu0 %v1797
      %1855 = vmatprep.subr.mxu0 0.0
      %1856 = vmatpush1.msra.mxu0 %v1851
      %1857 = vmatprep.subr.mxu0 0.0
      %1858 = vmatpush1.msra.mxu0 0.0
      %1859 = vmatprep.subr.mxu0 0.0
      %1860 = vmatpush1.msra.mxu0 0.0
      %1861 = vmatprep.subr.mxu0 0.0
      %1862 = vmatpush1.msra.mxu0 0.0
      %1863 = vmatprep.subr.mxu0 0.0
      %1864 = vmatpush1.msra.mxu0 0.0
      %1865 = vmatprep.subr.mxu0 0.0
      %1866 = vmatpush1.msra.mxu0 0.0
      %1867 = vmatprep.subr.mxu0 0.0
      %1868 = vmatpush1.msra.mxu0 0.0
      %1869 = vmatprep.subr.mxu0 0.0
      %1870 = vmatpush1.msra.mxu0 0.0
      %1871 = vmatprep.subr.mxu0 0.0
      %1872 = vmatpush1.msra.mxu0 0.0
      %1873 = vmatprep.subr.mxu0 0.0
      %1874 = vmatpush1.msra.mxu0 0.0
      %1875 = vmatprep.subr.mxu0 0.0
      %1876 = vmatpush1.msra.mxu0 0.0
      %1877 = vmatprep.subr.mxu0 0.0
      %1878 = vmatpush1.msra.mxu0 0.0
      %1879 = vmatprep.subr.mxu0 0.0
      %1880 = vmatpush1.msra.mxu0 0.0
      %1881 = vmatprep.subr.mxu0 0.0
      %1882 = vmatpush1.msra.mxu0 0.0
      %1883 = vmatprep.subr.mxu0 0.0
      %1884 = vmatpush1.msra.mxu0 0.0
      %1885 = vmatprep.subr.mxu0 0.0
      %1886 = vmatpush1.msra.mxu0 0.0
      %1887 = vmatprep.subr.mxu0 0.0
      %1888 = vmatpush1.msra.mxu0 0.0
      %1889 = vmatprep.subr.mxu0 0.0
      %1890 = vmatpush1.msra.mxu0 0.0
      %1891 = vmatprep.subr.mxu0 0.0
      %1892 = vmatpush1.msra.mxu0 0.0
      %1893 = vmatprep.subr.mxu0 0.0
      %1894 = vmatpush1.msra.mxu0 0.0
      %1895 = vmatprep.subr.mxu0 0.0
      %1896 = vmatpush1.msra.mxu0 0.0
      %1897 = vmatprep.subr.mxu0 0.0
      %1898 = vmatpush1.msra.mxu0 0.0
      %1899 = vmatprep.subr.mxu0 0.0
      %1900 = vmatpush1.msra.mxu0 0.0
      %1901 = vmatprep.subr.mxu0 0.0
      %1902 = vmatpush1.msra.mxu0 0.0
      %1903 = vmatprep.subr.mxu0 0.0
      %1904 = vmatpush1.msra.mxu0 0.0
      %1905 = vmatprep.subr.mxu0 0.0
      %1906 = vmatpush1.msra.mxu0 0.0
      %1907 = vmatprep.subr.mxu0 0.0
      %1908 = vmatpush1.msra.mxu0 0.0
      %1909 = vmatprep.subr.mxu0 0.0
      %1910 = vmatpush1.msra.mxu0 0.0
      %1911 = vmatprep.subr.mxu0 0.0
      %1912 = vmatpush1.msra.mxu0 0.0
      %1913 = vmatprep.subr.mxu0 0.0
      %1914 = vmatpush1.msra.mxu0 0.0
      %1915 = vmatprep.subr.mxu0 0.0
      %1916 = vmatpush1.msra.mxu0 0.0
      %1917 = vmatprep.mubr.f32.mxu0 0.0
      %1918 = vmatmul.mubr.f32.gmra.mrb[0].mxu0 %v1802
      %v1919 = vpop.f32.mrb[0].mxu0
      %v1920 = vadd.f32 %v1799, %v1919
      %v1921 = vpop.f32.mrb[0].mxu0
      %1922 = vmatprep.mubr.f32.mxu0 0.0
      %1923 = vmatmul.mubr.f32.gmra.mrb[0].mxu0 %v1805
      %v1924 = vpop.f32.mrb[0].mxu0
      %v1925 = vadd.f32 %v1799, %v1924
      %v1926 = vpop.f32.mrb[0].mxu0
      %1927 = vmatprep.mubr.f32.mxu0 0.0
      %1928 = vmatmul.mubr.f32.gmra.mrb[0].mxu0 %v1808
      %v1929 = vpop.f32.mrb[0].mxu0
      %v1930 = vadd.f32 %v1799, %v1929
      %v1931 = vpop.f32.mrb[0].mxu0
      %1932 = vmatprep.mubr.f32.mxu0 0.0
      %1933 = vmatmul.mubr.f32.gmra.mrb[0].mxu0 %v1811
      %v1934 = vpop.f32.mrb[0].mxu0
      %v1935 = vadd.f32 %v1799, %v1934
      %v1936 = vpop.f32.mrb[0].mxu0
      %1937 = vmatprep.mubr.f32.mxu0 0.0
      %1938 = vmatmul.mubr.f32.gmra.mrb[0].mxu0 %v1814
      %v1939 = vpop.f32.mrb[0].mxu0
      %v1940 = vadd.f32 %v1799, %v1939
      %v1941 = vpop.f32.mrb[0].mxu0
      %1942 = vmatprep.mubr.f32.mxu0 0.0
      %1943 = vmatmul.mubr.f32.gmra.mrb[0].mxu0 %v1817
      %v1944 = vpop.f32.mrb[0].mxu0
      %v1945 = vadd.f32 %v1799, %v1944
      %v1946 = vpop.f32.mrb[0].mxu0
      %1947 = vmatprep.mubr.f32.mxu0 0.0
      %1948 = vmatmul.mubr.f32.gmra.mrb[0].mxu0 %v1820
      %v1949 = vpop.f32.mrb[0].mxu0
      %v1950 = vadd.f32 %v1799, %v1949
      %v1951 = vpop.f32.mrb[0].mxu0
      %1952 = vmatprep.mubr.f32.mxu0 0.0
      %1953 = vmatmul.mubr.f32.gmra.mrb[0].mxu0 %v1823
      %v1954 = vpop.f32.mrb[0].mxu0
      %v1955 = vadd.f32 %v1799, %v1954
      %v1956 = vpop.f32.mrb[0].mxu0
      %1957 = vmatprep.mubr.f32.mxu0 0.0
      %1958 = vmatmul.mubr.f32.gmra.mrb[0].mxu0 %v1826
      %v1959 = vpop.f32.mrb[0].mxu0
      %v1960 = vadd.f32 %v1799, %v1959
      %v1961 = vpop.f32.mrb[0].mxu0
      %1962 = vmatprep.mubr.f32.mxu0 0.0
      %1963 = vmatmul.mubr.f32.gmra.mrb[0].mxu0 %v1829
      %v1964 = vpop.f32.mrb[0].mxu0
      %v1965 = vadd.f32 %v1799, %v1964
      %v1966 = vpop.f32.mrb[0].mxu0
      %1967 = vmatprep.mubr.f32.mxu0 0.0
      %1968 = vmatmul.mubr.f32.gmra.mrb[0].mxu0 %v1832
      %v1969 = vpop.f32.mrb[0].mxu0
      %v1970 = vadd.f32 %v1799, %v1969
      %v1971 = vpop.f32.mrb[0].mxu0
      %1972 = vmatprep.mubr.f32.mxu0 0.0
      %1973 = vmatmul.mubr.f32.gmra.mrb[0].mxu0 %v1835
      %v1974 = vpop.f32.mrb[0].mxu0
      %v1975 = vadd.f32 %v1799, %v1974
      %v1976 = vpop.f32.mrb[0].mxu0
      %1977 = vmatprep.mubr.f32.mxu0 0.0
      %1978 = vmatmul.mubr.f32.gmra.mrb[0].mxu0 %v1838
      %v1979 = vpop.f32.mrb[0].mxu0
      %v1980 = vadd.f32 %v1799, %v1979
      %v1981 = vpop.f32.mrb[0].mxu0
      %1982 = vmatprep.mubr.f32.mxu0 0.0
      %1983 = vmatmul.mubr.f32.gmra.mrb[0].mxu0 %v1841
      %v1984 = vpop.f32.mrb[0].mxu0
      %v1985 = vadd.f32 %v1799, %v1984
      %v1986 = vpop.f32.mrb[0].mxu0
      %1987 = vmatprep.mubr.f32.mxu0 0.0
      %1988 = vmatmul.mubr.f32.gmra.mrb[0].mxu0 %v1844
      %v1989 = vpop.f32.mrb[0].mxu0
      %v1990 = vadd.f32 %v1799, %v1989
      %v1991 = vpop.f32.mrb[0].mxu0
      %1992 = vmatprep.mubr.f32.mxu0 0.0
      %1993 = vmatmul.mubr.f32.gmra.mrb[0].mxu0 %v1847
      %v1994 = vpop.f32.mrb[0].mxu0
      %v1995 = vadd.f32 %v1799, %v1994
      %v1996 = vpop.f32.mrb[0].mxu0
      %1997 = vdwg.mxu0
      %vm1998 = vcmask 23552
      %1999 = vst.msk [vmem:[%s400] sm:$0xff] %vm1998, %v1920
      %2000 = vst.msk [vmem:[%s400 + $0x8] sm:$0xff] %vm1998, %v1925
      %2001 = vst.msk [vmem:[%s400 + $0x10] sm:$0xff] %vm1998, %v1930
      %2002 = vst.msk [vmem:[%s400 + $0x18] sm:$0xff] %vm1998, %v1935
      %2003 = vst.msk [vmem:[%s400 + $0x20] sm:$0xff] %vm1998, %v1940
      %2004 = vst.msk [vmem:[%s400 + $0x28] sm:$0xff] %vm1998, %v1945
      %2005 = vst.msk [vmem:[%s400 + $0x30] sm:$0xff] %vm1998, %v1950
      %2006 = vst.msk [vmem:[%s400 + $0x38] sm:$0xff] %vm1998, %v1955
      %2007 = vst.msk [vmem:[%s400 + $0x40] sm:$0xff] %vm1998, %v1960
      %2008 = vst.msk [vmem:[%s400 + $0x48] sm:$0xff] %vm1998, %v1965
      %2009 = vst.msk [vmem:[%s400 + $0x50] sm:$0xff] %vm1998, %v1970
      %2010 = vst.msk [vmem:[%s400 + $0x58] sm:$0xff] %vm1998, %v1975
      %2011 = vst.msk [vmem:[%s400 + $0x60] sm:$0xff] %vm1998, %v1980
      %2012 = vst.msk [vmem:[%s400 + $0x68] sm:$0xff] %vm1998, %v1985
      %2013 = vst.msk [vmem:[%s400 + $0x70] sm:$0xff] %vm1998, %v1990
      %2014 = vst.msk [vmem:[%s400 + $0x78] sm:$0xff] %vm1998, %v1995
      %v2015 = vld [vmem:[%s5] sm:$0x7]
      %v2016 = vld [vmem:[%s9 + $0x4] ss:$0 sm:$0xff]
      %v2018 = vsel %vm1998, %v1920, 0
      %v2021 = vsel %vm1998, %v1925, 0
      %v2024 = vsel %vm1998, %v1930, 0
      %v2027 = vsel %vm1998, %v1935, 0
      %v2030 = vsel %vm1998, %v1940, 0
      %v2033 = vsel %vm1998, %v1945, 0
      %v2036 = vsel %vm1998, %v1950, 0
      %v2039 = vsel %vm1998, %v1955, 0
      %v2042 = vsel %vm1998, %v1960, 0
      %v2045 = vsel %vm1998, %v1965, 0
      %v2048 = vsel %vm1998, %v1970, 0
      %v2051 = vsel %vm1998, %v1975, 0
      %v2054 = vsel %vm1998, %v1980, 0
      %v2057 = vsel %vm1998, %v1985, 0
      %v2060 = vsel %vm1998, %v1990, 0
      %v2063 = vsel %vm1998, %v1995, 0
      %vm2065 = vcmask 1042432
      %v2067 = vsel %vm2065, %v2015, 0
      %2069 = vmatprep.subr.mxu0 0.0
      %2070 = vmatpush1.msra.mxu0 %v2067
      %2071 = vmatprep.subr.mxu0 0.0
      %2072 = vmatpush1.msra.mxu0 0.0
      %2073 = vmatprep.subr.mxu0 0.0
      %2074 = vmatpush1.msra.mxu0 0.0
      %2075 = vmatprep.subr.mxu0 0.0
      %2076 = vmatpush1.msra.mxu0 0.0
      %2077 = vmatprep.subr.mxu0 0.0
      %2078 = vmatpush1.msra.mxu0 0.0
      %2079 = vmatprep.subr.mxu0 0.0
      %2080 = vmatpush1.msra.mxu0 0.0
      %2081 = vmatprep.subr.mxu0 0.0
      %2082 = vmatpush1.msra.mxu0 0.0
      %2083 = vmatprep.subr.mxu0 0.0
      %2084 = vmatpush1.msra.mxu0 0.0
      %2085 = vmatprep.subr.mxu0 0.0
      %2086 = vmatpush1.msra.mxu0 0.0
      %2087 = vmatprep.subr.mxu0 0.0
      %2088 = vmatpush1.msra.mxu0 0.0
      %2089 = vmatprep.subr.mxu0 0.0
      %2090 = vmatpush1.msra.mxu0 0.0
      %2091 = vmatprep.subr.mxu0 0.0
      %2092 = vmatpush1.msra.mxu0 0.0
      %2093 = vmatprep.subr.mxu0 0.0
      %2094 = vmatpush1.msra.mxu0 0.0
      %2095 = vmatprep.subr.mxu0 0.0
      %2096 = vmatpush1.msra.mxu0 0.0
      %2097 = vmatprep.subr.mxu0 0.0
      %2098 = vmatpush1.msra.mxu0 0.0
      %2099 = vmatprep.subr.mxu0 0.0
      %2100 = vmatpush1.msra.mxu0 0.0
      %2101 = vmatprep.subr.mxu0 0.0
      %2102 = vmatpush1.msra.mxu0 0.0
      %2103 = vmatprep.subr.mxu0 0.0
      %2104 = vmatpush1.msra.mxu0 0.0
      %2105 = vmatprep.subr.mxu0 0.0
      %2106 = vmatpush1.msra.mxu0 0.0
      %2107 = vmatprep.subr.mxu0 0.0
      %2108 = vmatpush1.msra.mxu0 0.0
      %2109 = vmatprep.subr.mxu0 0.0
      %2110 = vmatpush1.msra.mxu0 0.0
      %2111 = vmatprep.subr.mxu0 0.0
      %2112 = vmatpush1.msra.mxu0 0.0
      %2113 = vmatprep.subr.mxu0 0.0
      %2114 = vmatpush1.msra.mxu0 0.0
      %2115 = vmatprep.subr.mxu0 0.0
      %2116 = vmatpush1.msra.mxu0 0.0
      %2117 = vmatprep.subr.mxu0 0.0
      %2118 = vmatpush1.msra.mxu0 0.0
      %2119 = vmatprep.subr.mxu0 0.0
      %2120 = vmatpush1.msra.mxu0 0.0
      %2121 = vmatprep.subr.mxu0 0.0
      %2122 = vmatpush1.msra.mxu0 0.0
      %2123 = vmatprep.subr.mxu0 0.0
      %2124 = vmatpush1.msra.mxu0 0.0
      %2125 = vmatprep.subr.mxu0 0.0
      %2126 = vmatpush1.msra.mxu0 0.0
      %2127 = vmatprep.subr.mxu0 0.0
      %2128 = vmatpush1.msra.mxu0 0.0
      %2129 = vmatprep.subr.mxu0 0.0
      %2130 = vmatpush1.msra.mxu0 0.0
      %2131 = vmatprep.subr.mxu0 0.0
      %2132 = vmatpush1.msra.mxu0 0.0
      %2133 = vmatprep.mubr.f32.mxu0 0.0
      %2134 = vmatmul.mubr.f32.gmra.mrb[0].mxu0 %v2018
      %v2135 = vpop.f32.mrb[0].mxu0
      %v2136 = vadd.f32 %v2016, %v2135
      %v2137 = vpop.f32.mrb[0].mxu0
      %2138 = vmatprep.mubr.f32.mxu0 0.0
      %2139 = vmatmul.mubr.f32.gmra.mrb[0].mxu0 %v2021
      %v2140 = vpop.f32.mrb[0].mxu0
      %v2141 = vadd.f32 %v2016, %v2140
      %v2142 = vpop.f32.mrb[0].mxu0
      %2143 = vmatprep.mubr.f32.mxu0 0.0
      %2144 = vmatmul.mubr.f32.gmra.mrb[0].mxu0 %v2024
      %v2145 = vpop.f32.mrb[0].mxu0
      %v2146 = vadd.f32 %v2016, %v2145
      %v2147 = vpop.f32.mrb[0].mxu0
      %2148 = vmatprep.mubr.f32.mxu0 0.0
      %2149 = vmatmul.mubr.f32.gmra.mrb[0].mxu0 %v2027
      %v2150 = vpop.f32.mrb[0].mxu0
      %v2151 = vadd.f32 %v2016, %v2150
      %v2152 = vpop.f32.mrb[0].mxu0
      %2153 = vmatprep.mubr.f32.mxu0 0.0
      %2154 = vmatmul.mubr.f32.gmra.mrb[0].mxu0 %v2030
      %v2155 = vpop.f32.mrb[0].mxu0
      %v2156 = vadd.f32 %v2016, %v2155
      %v2157 = vpop.f32.mrb[0].mxu0
      %2158 = vmatprep.mubr.f32.mxu0 0.0
      %2159 = vmatmul.mubr.f32.gmra.mrb[0].mxu0 %v2033
      %v2160 = vpop.f32.mrb[0].mxu0
      %v2161 = vadd.f32 %v2016, %v2160
      %v2162 = vpop.f32.mrb[0].mxu0
      %2163 = vmatprep.mubr.f32.mxu0 0.0
      %2164 = vmatmul.mubr.f32.gmra.mrb[0].mxu0 %v2036
      %v2165 = vpop.f32.mrb[0].mxu0
      %v2166 = vadd.f32 %v2016, %v2165
      %v2167 = vpop.f32.mrb[0].mxu0
      %2168 = vmatprep.mubr.f32.mxu0 0.0
      %2169 = vmatmul.mubr.f32.gmra.mrb[0].mxu0 %v2039
      %v2170 = vpop.f32.mrb[0].mxu0
      %v2171 = vadd.f32 %v2016, %v2170
      %v2172 = vpop.f32.mrb[0].mxu0
      %2173 = vmatprep.mubr.f32.mxu0 0.0
      %2174 = vmatmul.mubr.f32.gmra.mrb[0].mxu0 %v2042
      %v2175 = vpop.f32.mrb[0].mxu0
      %v2176 = vadd.f32 %v2016, %v2175
      %v2177 = vpop.f32.mrb[0].mxu0
      %2178 = vmatprep.mubr.f32.mxu0 0.0
      %2179 = vmatmul.mubr.f32.gmra.mrb[0].mxu0 %v2045
      %v2180 = vpop.f32.mrb[0].mxu0
      %v2181 = vadd.f32 %v2016, %v2180
      %v2182 = vpop.f32.mrb[0].mxu0
      %2183 = vmatprep.mubr.f32.mxu0 0.0
      %2184 = vmatmul.mubr.f32.gmra.mrb[0].mxu0 %v2048
      %v2185 = vpop.f32.mrb[0].mxu0
      %v2186 = vadd.f32 %v2016, %v2185
      %v2187 = vpop.f32.mrb[0].mxu0
      %2188 = vmatprep.mubr.f32.mxu0 0.0
      %2189 = vmatmul.mubr.f32.gmra.mrb[0].mxu0 %v2051
      %v2190 = vpop.f32.mrb[0].mxu0
      %v2191 = vadd.f32 %v2016, %v2190
      %v2192 = vpop.f32.mrb[0].mxu0
      %2193 = vmatprep.mubr.f32.mxu0 0.0
      %2194 = vmatmul.mubr.f32.gmra.mrb[0].mxu0 %v2054
      %v2195 = vpop.f32.mrb[0].mxu0
      %v2196 = vadd.f32 %v2016, %v2195
      %v2197 = vpop.f32.mrb[0].mxu0
      %2198 = vmatprep.mubr.f32.mxu0 0.0
      %2199 = vmatmul.mubr.f32.gmra.mrb[0].mxu0 %v2057
      %v2200 = vpop.f32.mrb[0].mxu0
      %v2201 = vadd.f32 %v2016, %v2200
      %v2202 = vpop.f32.mrb[0].mxu0
      %2203 = vmatprep.mubr.f32.mxu0 0.0
      %2204 = vmatmul.mubr.f32.gmra.mrb[0].mxu0 %v2060
      %v2205 = vpop.f32.mrb[0].mxu0
      %v2206 = vadd.f32 %v2016, %v2205
      %v2207 = vpop.f32.mrb[0].mxu0
      %2208 = vmatprep.mubr.f32.mxu0 0.0
      %2209 = vmatmul.mubr.f32.gmra.mrb[0].mxu0 %v2063
      %v2210 = vpop.f32.mrb[0].mxu0
      %v2211 = vadd.f32 %v2016, %v2210
      %v2212 = vpop.f32.mrb[0].mxu0
      %2213 = vdwg.mxu0
      %v2214 = vmax.f32 %v2136, 0.0
      %v2215 = vmax.f32 %v2141, 0.0
      %v2216 = vmax.f32 %v2146, 0.0
      %v2217 = vmax.f32 %v2151, 0.0
      %v2218 = vmax.f32 %v2156, 0.0
      %v2219 = vmax.f32 %v2161, 0.0
      %v2220 = vmax.f32 %v2166, 0.0
      %v2221 = vmax.f32 %v2171, 0.0
      %v2222 = vmax.f32 %v2176, 0.0
      %v2223 = vmax.f32 %v2181, 0.0
      %v2224 = vmax.f32 %v2186, 0.0
      %v2225 = vmax.f32 %v2191, 0.0
      %v2226 = vmax.f32 %v2196, 0.0
      %v2227 = vmax.f32 %v2201, 0.0
      %v2228 = vmax.f32 %v2206, 0.0
      %v2229 = vmax.f32 %v2211, 0.0
      %v2230 = vld [vmem:[%s6] sm:$0xff]
      %v2231 = vld [vmem:[%s6 + $0x8] sm:$0xf]
      %v2232 = vld [vmem:[%s9 + $0x5] ss:$0 sm:$0xff]
      %v2234 = vsel %vm1800, %v2214, 0
      %v2237 = vsel %vm1800, %v2215, 0
      %v2240 = vsel %vm1800, %v2216, 0
      %v2243 = vsel %vm1800, %v2217, 0
      %v2246 = vsel %vm1800, %v2218, 0
      %v2249 = vsel %vm1800, %v2219, 0
      %v2252 = vsel %vm1800, %v2220, 0
      %v2255 = vsel %vm1800, %v2221, 0
      %v2258 = vsel %vm1800, %v2222, 0
      %v2261 = vsel %vm1800, %v2223, 0
      %v2264 = vsel %vm1800, %v2224, 0
      %v2267 = vsel %vm1800, %v2225, 0
      %v2270 = vsel %vm1800, %v2226, 0
      %v2273 = vsel %vm1800, %v2227, 0
      %v2276 = vsel %vm1800, %v2228, 0
      %v2279 = vsel %vm1800, %v2229, 0
      %v2282 = vsel %vm1849, %v2231, 0
      %2284 = vmatprep.subr.mxu0 0.0
      %2285 = vmatpush1.msra.mxu0 %v2230
      %2286 = vmatprep.subr.mxu0 0.0
      %2287 = vmatpush1.msra.mxu0 %v2282
      %2288 = vmatprep.subr.mxu0 0.0
      %2289 = vmatpush1.msra.mxu0 0.0
      %2290 = vmatprep.subr.mxu0 0.0
      %2291 = vmatpush1.msra.mxu0 0.0
      %2292 = vmatprep.subr.mxu0 0.0
      %2293 = vmatpush1.msra.mxu0 0.0
      %2294 = vmatprep.subr.mxu0 0.0
      %2295 = vmatpush1.msra.mxu0 0.0
      %2296 = vmatprep.subr.mxu0 0.0
      %2297 = vmatpush1.msra.mxu0 0.0
      %2298 = vmatprep.subr.mxu0 0.0
      %2299 = vmatpush1.msra.mxu0 0.0
      %2300 = vmatprep.subr.mxu0 0.0
      %2301 = vmatpush1.msra.mxu0 0.0
      %2302 = vmatprep.subr.mxu0 0.0
      %2303 = vmatpush1.msra.mxu0 0.0
      %2304 = vmatprep.subr.mxu0 0.0
      %2305 = vmatpush1.msra.mxu0 0.0
      %2306 = vmatprep.subr.mxu0 0.0
      %2307 = vmatpush1.msra.mxu0 0.0
      %2308 = vmatprep.subr.mxu0 0.0
      %2309 = vmatpush1.msra.mxu0 0.0
      %2310 = vmatprep.subr.mxu0 0.0
      %2311 = vmatpush1.msra.mxu0 0.0
      %2312 = vmatprep.subr.mxu0 0.0
      %2313 = vmatpush1.msra.mxu0 0.0
      %2314 = vmatprep.subr.mxu0 0.0
      %2315 = vmatpush1.msra.mxu0 0.0
      %2316 = vmatprep.subr.mxu0 0.0
      %2317 = vmatpush1.msra.mxu0 0.0
      %2318 = vmatprep.subr.mxu0 0.0
      %2319 = vmatpush1.msra.mxu0 0.0
      %2320 = vmatprep.subr.mxu0 0.0
      %2321 = vmatpush1.msra.mxu0 0.0
      %2322 = vmatprep.subr.mxu0 0.0
      %2323 = vmatpush1.msra.mxu0 0.0
      %2324 = vmatprep.subr.mxu0 0.0
      %2325 = vmatpush1.msra.mxu0 0.0
      %2326 = vmatprep.subr.mxu0 0.0
      %2327 = vmatpush1.msra.mxu0 0.0
      %2328 = vmatprep.subr.mxu0 0.0
      %2329 = vmatpush1.msra.mxu0 0.0
      %2330 = vmatprep.subr.mxu0 0.0
      %2331 = vmatpush1.msra.mxu0 0.0
      %2332 = vmatprep.subr.mxu0 0.0
      %2333 = vmatpush1.msra.mxu0 0.0
      %2334 = vmatprep.subr.mxu0 0.0
      %2335 = vmatpush1.msra.mxu0 0.0
      %2336 = vmatprep.subr.mxu0 0.0
      %2337 = vmatpush1.msra.mxu0 0.0
      %2338 = vmatprep.subr.mxu0 0.0
      %2339 = vmatpush1.msra.mxu0 0.0
      %2340 = vmatprep.subr.mxu0 0.0
      %2341 = vmatpush1.msra.mxu0 0.0
      %2342 = vmatprep.subr.mxu0 0.0
      %2343 = vmatpush1.msra.mxu0 0.0
      %2344 = vmatprep.subr.mxu0 0.0
      %2345 = vmatpush1.msra.mxu0 0.0
      %2346 = vmatprep.subr.mxu0 0.0
      %2347 = vmatpush1.msra.mxu0 0.0
      %2348 = vmatprep.mubr.f32.mxu0 0.0
      %2349 = vmatmul.mubr.f32.gmra.mrb[0].mxu0 %v2234
      %v2350 = vpop.f32.mrb[0].mxu0
      %v2351 = vadd.f32 %v2232, %v2350
      %v2352 = vpop.f32.mrb[0].mxu0
      %2353 = vmatprep.mubr.f32.mxu0 0.0
      %2354 = vmatmul.mubr.f32.gmra.mrb[0].mxu0 %v2237
      %v2355 = vpop.f32.mrb[0].mxu0
      %v2356 = vadd.f32 %v2232, %v2355
      %v2357 = vpop.f32.mrb[0].mxu0
      %2358 = vmatprep.mubr.f32.mxu0 0.0
      %2359 = vmatmul.mubr.f32.gmra.mrb[0].mxu0 %v2240
      %v2360 = vpop.f32.mrb[0].mxu0
      %v2361 = vadd.f32 %v2232, %v2360
      %v2362 = vpop.f32.mrb[0].mxu0
      %2363 = vmatprep.mubr.f32.mxu0 0.0
      %2364 = vmatmul.mubr.f32.gmra.mrb[0].mxu0 %v2243
      %v2365 = vpop.f32.mrb[0].mxu0
      %v2366 = vadd.f32 %v2232, %v2365
      %v2367 = vpop.f32.mrb[0].mxu0
      %2368 = vmatprep.mubr.f32.mxu0 0.0
      %2369 = vmatmul.mubr.f32.gmra.mrb[0].mxu0 %v2246
      %v2370 = vpop.f32.mrb[0].mxu0
      %v2371 = vadd.f32 %v2232, %v2370
      %v2372 = vpop.f32.mrb[0].mxu0
      %2373 = vmatprep.mubr.f32.mxu0 0.0
      %2374 = vmatmul.mubr.f32.gmra.mrb[0].mxu0 %v2249
      %v2375 = vpop.f32.mrb[0].mxu0
      %v2376 = vadd.f32 %v2232, %v2375
      %v2377 = vpop.f32.mrb[0].mxu0
      %2378 = vmatprep.mubr.f32.mxu0 0.0
      %2379 = vmatmul.mubr.f32.gmra.mrb[0].mxu0 %v2252
      %v2380 = vpop.f32.mrb[0].mxu0
      %v2381 = vadd.f32 %v2232, %v2380
      %v2382 = vpop.f32.mrb[0].mxu0
      %2383 = vmatprep.mubr.f32.mxu0 0.0
      %2384 = vmatmul.mubr.f32.gmra.mrb[0].mxu0 %v2255
      %v2385 = vpop.f32.mrb[0].mxu0
      %v2386 = vadd.f32 %v2232, %v2385
      %v2387 = vpop.f32.mrb[0].mxu0
      %2388 = vmatprep.mubr.f32.mxu0 0.0
      %2389 = vmatmul.mubr.f32.gmra.mrb[0].mxu0 %v2258
      %v2390 = vpop.f32.mrb[0].mxu0
      %v2391 = vadd.f32 %v2232, %v2390
      %v2392 = vpop.f32.mrb[0].mxu0
      %2393 = vmatprep.mubr.f32.mxu0 0.0
      %2394 = vmatmul.mubr.f32.gmra.mrb[0].mxu0 %v2261
      %v2395 = vpop.f32.mrb[0].mxu0
      %v2396 = vadd.f32 %v2232, %v2395
      %v2397 = vpop.f32.mrb[0].mxu0
      %2398 = vmatprep.mubr.f32.mxu0 0.0
      %2399 = vmatmul.mubr.f32.gmra.mrb[0].mxu0 %v2264
      %v2400 = vpop.f32.mrb[0].mxu0
      %v2401 = vadd.f32 %v2232, %v2400
      %v2402 = vpop.f32.mrb[0].mxu0
      %2403 = vmatprep.mubr.f32.mxu0 0.0
      %2404 = vmatmul.mubr.f32.gmra.mrb[0].mxu0 %v2267
      %v2405 = vpop.f32.mrb[0].mxu0
      %v2406 = vadd.f32 %v2232, %v2405
      %v2407 = vpop.f32.mrb[0].mxu0
      %2408 = vmatprep.mubr.f32.mxu0 0.0
      %2409 = vmatmul.mubr.f32.gmra.mrb[0].mxu0 %v2270
      %v2410 = vpop.f32.mrb[0].mxu0
      %v2411 = vadd.f32 %v2232, %v2410
      %v2412 = vpop.f32.mrb[0].mxu0
      %2413 = vmatprep.mubr.f32.mxu0 0.0
      %2414 = vmatmul.mubr.f32.gmra.mrb[0].mxu0 %v2273
      %v2415 = vpop.f32.mrb[0].mxu0
      %v2416 = vadd.f32 %v2232, %v2415
      %v2417 = vpop.f32.mrb[0].mxu0
      %2418 = vmatprep.mubr.f32.mxu0 0.0
      %2419 = vmatmul.mubr.f32.gmra.mrb[0].mxu0 %v2276
      %v2420 = vpop.f32.mrb[0].mxu0
      %v2421 = vadd.f32 %v2232, %v2420
      %v2422 = vpop.f32.mrb[0].mxu0
      %2423 = vmatprep.mubr.f32.mxu0 0.0
      %2424 = vmatmul.mubr.f32.gmra.mrb[0].mxu0 %v2279
      %v2425 = vpop.f32.mrb[0].mxu0
      %v2426 = vadd.f32 %v2232, %v2425
      %v2427 = vpop.f32.mrb[0].mxu0
      %2428 = vdwg.mxu0
      %v2429 = vmax.f32 %v2351, 0.0
      %v2430 = vmax.f32 %v2356, 0.0
      %v2431 = vmax.f32 %v2361, 0.0
      %v2432 = vmax.f32 %v2366, 0.0
      %v2433 = vmax.f32 %v2371, 0.0
      %v2434 = vmax.f32 %v2376, 0.0
      %v2435 = vmax.f32 %v2381, 0.0
      %v2436 = vmax.f32 %v2386, 0.0
      %v2437 = vmax.f32 %v2391, 0.0
      %v2438 = vmax.f32 %v2396, 0.0
      %v2439 = vmax.f32 %v2401, 0.0
      %v2440 = vmax.f32 %v2406, 0.0
      %v2441 = vmax.f32 %v2411, 0.0
      %v2442 = vmax.f32 %v2416, 0.0
      %v2443 = vmax.f32 %v2421, 0.0
      %v2444 = vmax.f32 %v2426, 0.0
      %v2445 = vld [vmem:[%s7] sm:$0xff]
      %v2446 = vld [vmem:[%s7 + $0x8] sm:$0xff]
      %v2447 = vld [vmem:[%s7 + $0x10] sm:$0xff]
      %v2448 = vld [vmem:[%s7 + $0x18] sm:$0xff]
      %v2449 = vld [vmem:[%s7 + $0x20] sm:$0xff]
      %v2450 = vld [vmem:[%s7 + $0x28] sm:$0xff]
      %v2451 = vld [vmem:[%s7 + $0x30] sm:$0xff]
      %v2452 = vld [vmem:[%s7 + $0x38] sm:$0xff]
      %v2453 = vld [vmem:[%s9 + $0x6] ss:$0 sm:$0xff]
      %v2455 = vsel %vm1587, %v2429, 0
      %v2458 = vsel %vm1587, %v2430, 0
      %v2461 = vsel %vm1587, %v2431, 0
      %v2464 = vsel %vm1587, %v2432, 0
      %v2467 = vsel %vm1587, %v2433, 0
      %v2470 = vsel %vm1587, %v2434, 0
      %v2473 = vsel %vm1587, %v2435, 0
      %v2476 = vsel %vm1587, %v2436, 0
      %v2479 = vsel %vm1587, %v2437, 0
      %v2482 = vsel %vm1587, %v2438, 0
      %v2485 = vsel %vm1587, %v2439, 0
      %v2488 = vsel %vm1587, %v2440, 0
      %v2491 = vsel %vm1587, %v2441, 0
      %v2494 = vsel %vm1587, %v2442, 0
      %v2497 = vsel %vm1587, %v2443, 0
      %v2500 = vsel %vm1587, %v2444, 0
      %2502 = vmatprep.subr.mxu0 0.0
      %2503 = vmatpush1.msra.mxu0 %v2445
      %2504 = vmatprep.subr.mxu0 0.0
      %2505 = vmatpush1.msra.mxu0 %v2446
      %2506 = vmatprep.subr.mxu0 0.0
      %2507 = vmatpush1.msra.mxu0 %v2447
      %2508 = vmatprep.subr.mxu0 0.0
      %2509 = vmatpush1.msra.mxu0 %v2448
      %2510 = vmatprep.subr.mxu0 0.0
      %2511 = vmatpush1.msra.mxu0 %v2449
      %2512 = vmatprep.subr.mxu0 0.0
      %2513 = vmatpush1.msra.mxu0 %v2450
      %2514 = vmatprep.subr.mxu0 0.0
      %2515 = vmatpush1.msra.mxu0 %v2451
      %2516 = vmatprep.subr.mxu0 0.0
      %2517 = vmatpush1.msra.mxu0 %v2452
      %2518 = vmatprep.subr.mxu0 0.0
      %2519 = vmatpush1.msra.mxu0 0.0
      %2520 = vmatprep.subr.mxu0 0.0
      %2521 = vmatpush1.msra.mxu0 0.0
      %2522 = vmatprep.subr.mxu0 0.0
      %2523 = vmatpush1.msra.mxu0 0.0
      %2524 = vmatprep.subr.mxu0 0.0
      %2525 = vmatpush1.msra.mxu0 0.0
      %2526 = vmatprep.subr.mxu0 0.0
      %2527 = vmatpush1.msra.mxu0 0.0
      %2528 = vmatprep.subr.mxu0 0.0
      %2529 = vmatpush1.msra.mxu0 0.0
      %2530 = vmatprep.subr.mxu0 0.0
      %2531 = vmatpush1.msra.mxu0 0.0
      %2532 = vmatprep.subr.mxu0 0.0
      %2533 = vmatpush1.msra.mxu0 0.0
      %2534 = vmatprep.subr.mxu0 0.0
      %2535 = vmatpush1.msra.mxu0 0.0
      %2536 = vmatprep.subr.mxu0 0.0
      %2537 = vmatpush1.msra.mxu0 0.0
      %2538 = vmatprep.subr.mxu0 0.0
      %2539 = vmatpush1.msra.mxu0 0.0
      %2540 = vmatprep.subr.mxu0 0.0
      %2541 = vmatpush1.msra.mxu0 0.0
      %2542 = vmatprep.subr.mxu0 0.0
      %2543 = vmatpush1.msra.mxu0 0.0
      %2544 = vmatprep.subr.mxu0 0.0
      %2545 = vmatpush1.msra.mxu0 0.0
      %2546 = vmatprep.subr.mxu0 0.0
      %2547 = vmatpush1.msra.mxu0 0.0
      %2548 = vmatprep.subr.mxu0 0.0
      %2549 = vmatpush1.msra.mxu0 0.0
      %2550 = vmatprep.subr.mxu0 0.0
      %2551 = vmatpush1.msra.mxu0 0.0
      %2552 = vmatprep.subr.mxu0 0.0
      %2553 = vmatpush1.msra.mxu0 0.0
      %2554 = vmatprep.subr.mxu0 0.0
      %2555 = vmatpush1.msra.mxu0 0.0
      %2556 = vmatprep.subr.mxu0 0.0
      %2557 = vmatpush1.msra.mxu0 0.0
      %2558 = vmatprep.subr.mxu0 0.0
      %2559 = vmatpush1.msra.mxu0 0.0
      %2560 = vmatprep.subr.mxu0 0.0
      %2561 = vmatpush1.msra.mxu0 0.0
      %2562 = vmatprep.subr.mxu0 0.0
      %2563 = vmatpush1.msra.mxu0 0.0
      %2564 = vmatprep.subr.mxu0 0.0
      %2565 = vmatpush1.msra.mxu0 0.0
      %2566 = vmatprep.mubr.f32.mxu0 0.0
      %2567 = vmatmul.mubr.f32.gmra.mrb[0].mxu0 %v2455
      %v2568 = vpop.f32.mrb[0].mxu0
      %v2569 = vadd.f32 %v2453, %v2568
      %v2570 = vpop.f32.mrb[0].mxu0
      %2571 = vmatprep.mubr.f32.mxu0 0.0
      %2572 = vmatmul.mubr.f32.gmra.mrb[0].mxu0 %v2458
      %v2573 = vpop.f32.mrb[0].mxu0
      %v2574 = vadd.f32 %v2453, %v2573
      %v2575 = vpop.f32.mrb[0].mxu0
      %2576 = vmatprep.mubr.f32.mxu0 0.0
      %2577 = vmatmul.mubr.f32.gmra.mrb[0].mxu0 %v2461
      %v2578 = vpop.f32.mrb[0].mxu0
      %v2579 = vadd.f32 %v2453, %v2578
      %v2580 = vpop.f32.mrb[0].mxu0
      %2581 = vmatprep.mubr.f32.mxu0 0.0
      %2582 = vmatmul.mubr.f32.gmra.mrb[0].mxu0 %v2464
      %v2583 = vpop.f32.mrb[0].mxu0
      %v2584 = vadd.f32 %v2453, %v2583
      %v2585 = vpop.f32.mrb[0].mxu0
      %2586 = vmatprep.mubr.f32.mxu0 0.0
      %2587 = vmatmul.mubr.f32.gmra.mrb[0].mxu0 %v2467
      %v2588 = vpop.f32.mrb[0].mxu0
      %v2589 = vadd.f32 %v2453, %v2588
      %v2590 = vpop.f32.mrb[0].mxu0
      %2591 = vmatprep.mubr.f32.mxu0 0.0
      %2592 = vmatmul.mubr.f32.gmra.mrb[0].mxu0 %v2470
      %v2593 = vpop.f32.mrb[0].mxu0
      %v2594 = vadd.f32 %v2453, %v2593
      %v2595 = vpop.f32.mrb[0].mxu0
      %2596 = vmatprep.mubr.f32.mxu0 0.0
      %2597 = vmatmul.mubr.f32.gmra.mrb[0].mxu0 %v2473
      %v2598 = vpop.f32.mrb[0].mxu0
      %v2599 = vadd.f32 %v2453, %v2598
      %v2600 = vpop.f32.mrb[0].mxu0
      %2601 = vmatprep.mubr.f32.mxu0 0.0
      %2602 = vmatmul.mubr.f32.gmra.mrb[0].mxu0 %v2476
      %v2603 = vpop.f32.mrb[0].mxu0
      %v2604 = vadd.f32 %v2453, %v2603
      %v2605 = vpop.f32.mrb[0].mxu0
      %2606 = vmatprep.mubr.f32.mxu0 0.0
      %2607 = vmatmul.mubr.f32.gmra.mrb[0].mxu0 %v2479
      %v2608 = vpop.f32.mrb[0].mxu0
      %v2609 = vadd.f32 %v2453, %v2608
      %v2610 = vpop.f32.mrb[0].mxu0
      %2611 = vmatprep.mubr.f32.mxu0 0.0
      %2612 = vmatmul.mubr.f32.gmra.mrb[0].mxu0 %v2482
      %v2613 = vpop.f32.mrb[0].mxu0
      %v2614 = vadd.f32 %v2453, %v2613
      %v2615 = vpop.f32.mrb[0].mxu0
      %2616 = vmatprep.mubr.f32.mxu0 0.0
      %2617 = vmatmul.mubr.f32.gmra.mrb[0].mxu0 %v2485
      %v2618 = vpop.f32.mrb[0].mxu0
      %v2619 = vadd.f32 %v2453, %v2618
      %v2620 = vpop.f32.mrb[0].mxu0
      %2621 = vmatprep.mubr.f32.mxu0 0.0
      %2622 = vmatmul.mubr.f32.gmra.mrb[0].mxu0 %v2488
      %v2623 = vpop.f32.mrb[0].mxu0
      %v2624 = vadd.f32 %v2453, %v2623
      %v2625 = vpop.f32.mrb[0].mxu0
      %2626 = vmatprep.mubr.f32.mxu0 0.0
      %2627 = vmatmul.mubr.f32.gmra.mrb[0].mxu0 %v2491
      %v2628 = vpop.f32.mrb[0].mxu0
      %v2629 = vadd.f32 %v2453, %v2628
      %v2630 = vpop.f32.mrb[0].mxu0
      %2631 = vmatprep.mubr.f32.mxu0 0.0
      %2632 = vmatmul.mubr.f32.gmra.mrb[0].mxu0 %v2494
      %v2633 = vpop.f32.mrb[0].mxu0
      %v2634 = vadd.f32 %v2453, %v2633
      %v2635 = vpop.f32.mrb[0].mxu0
      %2636 = vmatprep.mubr.f32.mxu0 0.0
      %2637 = vmatmul.mubr.f32.gmra.mrb[0].mxu0 %v2497
      %v2638 = vpop.f32.mrb[0].mxu0
      %v2639 = vadd.f32 %v2453, %v2638
      %v2640 = vpop.f32.mrb[0].mxu0
      %2641 = vmatprep.mubr.f32.mxu0 0.0
      %2642 = vmatmul.mubr.f32.gmra.mrb[0].mxu0 %v2500
      %v2643 = vpop.f32.mrb[0].mxu0
      %v2644 = vadd.f32 %v2453, %v2643
      %v2645 = vpop.f32.mrb[0].mxu0
      %2646 = vdwg.mxu0
      %v2647 = vmax.f32 %v2569, 0.0
      %v2648 = vmax.f32 %v2574, 0.0
      %v2649 = vmax.f32 %v2579, 0.0
      %v2650 = vmax.f32 %v2584, 0.0
      %v2651 = vmax.f32 %v2589, 0.0
      %v2652 = vmax.f32 %v2594, 0.0
      %v2653 = vmax.f32 %v2599, 0.0
      %v2654 = vmax.f32 %v2604, 0.0
      %v2655 = vmax.f32 %v2609, 0.0
      %v2656 = vmax.f32 %v2614, 0.0
      %v2657 = vmax.f32 %v2619, 0.0
      %v2658 = vmax.f32 %v2624, 0.0
      %v2659 = vmax.f32 %v2629, 0.0
      %v2660 = vmax.f32 %v2634, 0.0
      %v2661 = vmax.f32 %v2639, 0.0
      %v2662 = vmax.f32 %v2644, 0.0
      %v2663 = vpack.c.bf16 %v2648, %v2647
      %v2664 = vpack.c.bf16 %v2650, %v2649
      %v2665 = vpack.c.bf16 %v2652, %v2651
      %v2666 = vpack.c.bf16 %v2654, %v2653
      %v2667 = vpack.c.bf16 %v2656, %v2655
      %v2668 = vpack.c.bf16 %v2658, %v2657
      %v2669 = vpack.c.bf16 %v2660, %v2659
      %v2670 = vpack.c.bf16 %v2662, %v2661
      %v2671 = vld [vmem:[%s8] sm:$0xff]
      %v2672 = vld [vmem:[%s8 + $0x8] sm:$0xff]
      %v2673 = vld [vmem:[%s8 + $0x10] sm:$0xff]
      %v2674 = vld [vmem:[%s8 + $0x18] sm:$0xf]
      %v2675 = vld [vmem:[%s8 + $0x1c] sm:$0xff]
      %v2676 = vld [vmem:[%s8 + $0x24] sm:$0xff]
      %v2677 = vld [vmem:[%s8 + $0x2c] sm:$0xff]
      %v2678 = vld [vmem:[%s8 + $0x34] sm:$0xf]
      %v2679 = vld [vmem:[%s8 + $0x38] sm:$0xff]
      %v2680 = vld [vmem:[%s8 + $0x40] sm:$0xff]
      %v2681 = vld [vmem:[%s8 + $0x48] sm:$0xff]
      %v2682 = vld [vmem:[%s8 + $0x50] sm:$0xf]
      %v2683 = vld [vmem:[%s8 + $0x54] sm:$0xff]
      %v2684 = vld [vmem:[%s8 + $0x5c] sm:$0xff]
      %v2685 = vld [vmem:[%s8 + $0x64] sm:$0xff]
      %v2686 = vld [vmem:[%s8 + $0x6c] sm:$0xf]
      %v2687 = vld [vmem:[%s8 + $0x70] sm:$0xff]
      %v2688 = vld [vmem:[%s8 + $0x78] sm:$0xff]
      %v2689 = vld [vmem:[%s8 + $0x80] sm:$0xff]
      %v2690 = vld [vmem:[%s8 + $0x88] sm:$0xf]
      %v2691 = vld [vmem:[%s8 + $0x8c] sm:$0xff]
      %v2692 = vld [vmem:[%s8 + $0x94] sm:$0xff]
      %v2693 = vld [vmem:[%s8 + $0x9c] sm:$0xff]
      %v2694 = vld [vmem:[%s8 + $0xa4] sm:$0xf]
      %v2695 = vld [vmem:[%s8 + $0xa8] sm:$0xff]
      %v2696 = vld [vmem:[%s8 + $0xb0] sm:$0xff]
      %v2697 = vld [vmem:[%s8 + $0xb8] sm:$0xff]
      %v2698 = vld [vmem:[%s8 + $0xc0] sm:$0xf]
      %v2699 = vld [vmem:[%s8 + $0xc4] sm:$0xff]
      %v2700 = vld [vmem:[%s8 + $0xcc] sm:$0xff]
      %v2701 = vld [vmem:[%s8 + $0xd4] sm:$0xff]
      %v2702 = vld [vmem:[%s8 + $0xdc] sm:$0xf]
      %v2703 = vld [vmem:[%s8 + $0xe0] sm:$0xff]
      %v2704 = vld [vmem:[%s8 + $0xe8] sm:$0xff]
      %v2705 = vld [vmem:[%s8 + $0xf0] sm:$0xff]
      %v2706 = vld [vmem:[%s8 + $0xf8] sm:$0xf]
      %v2707 = vld [vmem:[%s8 + $0xfc] sm:$0xff]
      %v2708 = vld [vmem:[%s8 + $0x104] sm:$0xff]
      %v2709 = vld [vmem:[%s8 + $0x10c] sm:$0xff]
      %v2710 = vld [vmem:[%s8 + $0x114] sm:$0xf]
      %v2711 = vld [vmem:[%s8 + $0x118] sm:$0xff]
      %v2712 = vld [vmem:[%s8 + $0x120] sm:$0xff]
      %v2713 = vld [vmem:[%s8 + $0x128] sm:$0xff]
      %v2714 = vld [vmem:[%s8 + $0x130] sm:$0xf]
      %v2715 = vld [vmem:[%s8 + $0x134] sm:$0xff]
      %v2716 = vld [vmem:[%s8 + $0x13c] sm:$0xff]
      %v2717 = vld [vmem:[%s8 + $0x144] sm:$0xff]
      %v2718 = vld [vmem:[%s8 + $0x14c] sm:$0xf]
      %v2719 = vld [vmem:[%s8 + $0x150] sm:$0xff]
      %v2720 = vld [vmem:[%s8 + $0x158] sm:$0xff]
      %v2721 = vld [vmem:[%s8 + $0x160] sm:$0xff]
      %v2722 = vld [vmem:[%s8 + $0x168] sm:$0xf]
      %v2723 = vld [vmem:[%s8 + $0x16c] sm:$0xff]
      %v2724 = vld [vmem:[%s8 + $0x174] sm:$0xff]
      %v2725 = vld [vmem:[%s8 + $0x17c] sm:$0xff]
      %v2726 = vld [vmem:[%s8 + $0x184] sm:$0xf]
      %v2727 = vld [vmem:[%s8 + $0x188] sm:$0xff]
      %v2728 = vld [vmem:[%s8 + $0x190] sm:$0xff]
      %v2729 = vld [vmem:[%s8 + $0x198] sm:$0xff]
      %v2730 = vld [vmem:[%s8 + $0x1a0] sm:$0xf]
      %v2731 = vld [vmem:[%s8 + $0x1a4] sm:$0xff]
      %v2732 = vld [vmem:[%s8 + $0x1ac] sm:$0xff]
      %v2733 = vld [vmem:[%s8 + $0x1b4] sm:$0xff]
      %v2734 = vld [vmem:[%s8 + $0x1bc] sm:$0xf]
      %s2735 = scalar_lea.vmem %s9, 7
      %v2736 = vld [vmem:[%s2735] ss:$8 sm:$0xf]
      %v2737 = vld [vmem:[%s2735] ss:$8 sm:$0x70]
      %v2738 = vor.u32 %v2736, %v2737
      %v2740 = vlaneseq
      %v2741 = vshrl.u32 %v2740, 7
      %v2742 = vsub.s32 0, %v2741
      %v2743 = vrot.slane %v2738, %v2742
      %v2744 = vlaneseq
      %v2745 = vshrl.u32 %v2744, 7
      %v2746 = vsub.s32 1, %v2745
      %v2747 = vrot.slane %v2738, %v2746
      %v2748 = vlaneseq
      %v2749 = vshrl.u32 %v2748, 7
      %v2750 = vsub.s32 2, %v2749
      %v2751 = vrot.slane %v2738, %v2750
      %v2752 = vlaneseq
      %v2753 = vshrl.u32 %v2752, 7
      %v2754 = vsub.s32 3, %v2753
      %v2755 = vrot.slane %v2738, %v2754
      %v2756 = vlaneseq
      %v2757 = vshrl.u32 %v2756, 7
      %v2758 = vsub.s32 4, %v2757
      %v2759 = vrot.slane %v2738, %v2758
      %v2760 = vlaneseq
      %v2761 = vshrl.u32 %v2760, 7
      %v2762 = vsub.s32 5, %v2761
      %v2763 = vrot.slane %v2738, %v2762
      %v2764 = vlaneseq
      %v2765 = vshrl.u32 %v2764, 7
      %v2766 = vsub.s32 6, %v2765
      %v2767 = vrot.slane %v2738, %v2766
      %v2839 = vunpack.c.l.b16 %v2671
      %v2840 = vunpack.c.h.b16 %v2671
      %v2841 = vunpack.c.l.b16 %v2672
      %v2842 = vunpack.c.h.b16 %v2672
      %v2843 = vunpack.c.l.b16 %v2673
      %v2844 = vunpack.c.h.b16 %v2673
      %v2845 = vunpack.c.l.b16 %v2674
      %v2846 = vunpack.c.l.b16 %v2675
      %v2847 = vunpack.c.h.b16 %v2675
      %v2848 = vunpack.c.l.b16 %v2676
      %v2849 = vunpack.c.h.b16 %v2676
      %v2850 = vunpack.c.l.b16 %v2677
      %v2851 = vunpack.c.h.b16 %v2677
      %v2852 = vunpack.c.l.b16 %v2678
      %v2853 = vunpack.c.l.b16 %v2679
      %v2854 = vunpack.c.h.b16 %v2679
      %v2855 = vunpack.c.l.b16 %v2680
      %v2856 = vunpack.c.h.b16 %v2680
      %v2857 = vunpack.c.l.b16 %v2681
      %v2858 = vunpack.c.h.b16 %v2681
      %v2859 = vunpack.c.l.b16 %v2682
      %v2860 = vunpack.c.l.b16 %v2683
      %v2861 = vunpack.c.h.b16 %v2683
      %v2862 = vunpack.c.l.b16 %v2684
      %v2863 = vunpack.c.h.b16 %v2684
      %v2864 = vunpack.c.l.b16 %v2685
      %v2865 = vunpack.c.h.b16 %v2685
      %v2866 = vunpack.c.l.b16 %v2686
      %v2867 = vunpack.c.l.b16 %v2687
      %v2868 = vunpack.c.h.b16 %v2687
      %v2869 = vunpack.c.l.b16 %v2688
      %v2870 = vunpack.c.h.b16 %v2688
      %v2871 = vunpack.c.l.b16 %v2689
      %v2872 = vunpack.c.h.b16 %v2689
      %v2873 = vunpack.c.l.b16 %v2690
      %v2874 = vunpack.c.l.b16 %v2691
      %v2875 = vunpack.c.h.b16 %v2691
      %v2876 = vunpack.c.l.b16 %v2692
      %v2877 = vunpack.c.h.b16 %v2692
      %v2878 = vunpack.c.l.b16 %v2693
      %v2879 = vunpack.c.h.b16 %v2693
      %v2880 = vunpack.c.l.b16 %v2694
      %v2881 = vunpack.c.l.b16 %v2695
      %v2882 = vunpack.c.h.b16 %v2695
      %v2883 = vunpack.c.l.b16 %v2696
      %v2884 = vunpack.c.h.b16 %v2696
      %v2885 = vunpack.c.l.b16 %v2697
      %v2886 = vunpack.c.h.b16 %v2697
      %v2887 = vunpack.c.l.b16 %v2698
      %v2888 = vunpack.c.l.b16 %v2699
      %v2889 = vunpack.c.h.b16 %v2699
      %v2890 = vunpack.c.l.b16 %v2700
      %v2891 = vunpack.c.h.b16 %v2700
      %v2892 = vunpack.c.l.b16 %v2701
      %v2893 = vunpack.c.h.b16 %v2701
      %v2894 = vunpack.c.l.b16 %v2702
      %v2895 = vunpack.c.l.b16 %v2703
      %v2896 = vunpack.c.h.b16 %v2703
      %v2897 = vunpack.c.l.b16 %v2704
      %v2898 = vunpack.c.h.b16 %v2704
      %v2899 = vunpack.c.l.b16 %v2705
      %v2900 = vunpack.c.h.b16 %v2705
      %v2901 = vunpack.c.l.b16 %v2706
      %v2902 = vunpack.c.l.b16 %v2707
      %v2903 = vunpack.c.h.b16 %v2707
      %v2904 = vunpack.c.l.b16 %v2708
      %v2905 = vunpack.c.h.b16 %v2708
      %v2906 = vunpack.c.l.b16 %v2709
      %v2907 = vunpack.c.h.b16 %v2709
      %v2908 = vunpack.c.l.b16 %v2710
      %v2909 = vunpack.c.l.b16 %v2711
      %v2910 = vunpack.c.h.b16 %v2711
      %v2911 = vunpack.c.l.b16 %v2712
      %v2912 = vunpack.c.h.b16 %v2712
      %v2913 = vunpack.c.l.b16 %v2713
      %v2914 = vunpack.c.h.b16 %v2713
      %v2915 = vunpack.c.l.b16 %v2714
      %v2916 = vunpack.c.l.b16 %v2715
      %v2917 = vunpack.c.h.b16 %v2715
      %v2918 = vunpack.c.l.b16 %v2716
      %v2919 = vunpack.c.h.b16 %v2716
      %v2920 = vunpack.c.l.b16 %v2717
      %v2921 = vunpack.c.h.b16 %v2717
      %v2922 = vunpack.c.l.b16 %v2718
      %v2923 = vunpack.c.l.b16 %v2719
      %v2924 = vunpack.c.h.b16 %v2719
      %v2925 = vunpack.c.l.b16 %v2720
      %v2926 = vunpack.c.h.b16 %v2720
      %v2927 = vunpack.c.l.b16 %v2721
      %v2928 = vunpack.c.h.b16 %v2721
      %v2929 = vunpack.c.l.b16 %v2722
      %v2930 = vunpack.c.l.b16 %v2723
      %v2931 = vunpack.c.h.b16 %v2723
      %v2932 = vunpack.c.l.b16 %v2724
      %v2933 = vunpack.c.h.b16 %v2724
      %v2934 = vunpack.c.l.b16 %v2725
      %v2935 = vunpack.c.h.b16 %v2725
      %v2936 = vunpack.c.l.b16 %v2726
      %v2937 = vunpack.c.l.b16 %v2727
      %v2938 = vunpack.c.h.b16 %v2727
      %v2939 = vunpack.c.l.b16 %v2728
      %v2940 = vunpack.c.h.b16 %v2728
      %v2941 = vunpack.c.l.b16 %v2729
      %v2942 = vunpack.c.h.b16 %v2729
      %v2943 = vunpack.c.l.b16 %v2730
      %v2944 = vunpack.c.l.b16 %v2731
      %v2945 = vunpack.c.h.b16 %v2731
      %v2946 = vunpack.c.l.b16 %v2732
      %v2947 = vunpack.c.h.b16 %v2732
      %v2948 = vunpack.c.l.b16 %v2733
      %v2949 = vunpack.c.h.b16 %v2733
      %v2950 = vunpack.c.l.b16 %v2734
      %v2951 = vpack.c.b16 %v2846, %v2839
      %v2952 = vpack.c.b16 %v2847, %v2840
      %v2953 = vpack.c.b16 %v2848, %v2841
      %v2954 = vpack.c.b16 %v2849, %v2842
      %v2955 = vpack.c.b16 %v2850, %v2843
      %v2956 = vpack.c.b16 %v2851, %v2844
      %v2957 = vpack.c.b16 %v2852, %v2845
      %v2958 = vpack.c.b16 %v2860, %v2853
      %v2959 = vpack.c.b16 %v2861, %v2854
      %v2960 = vpack.c.b16 %v2862, %v2855
      %v2961 = vpack.c.b16 %v2863, %v2856
      %v2962 = vpack.c.b16 %v2864, %v2857
      %v2963 = vpack.c.b16 %v2865, %v2858
      %v2964 = vpack.c.b16 %v2866, %v2859
      %v2965 = vpack.c.b16 %v2874, %v2867
      %v2966 = vpack.c.b16 %v2875, %v2868
      %v2967 = vpack.c.b16 %v2876, %v2869
      %v2968 = vpack.c.b16 %v2877, %v2870
      %v2969 = vpack.c.b16 %v2878, %v2871
      %v2970 = vpack.c.b16 %v2879, %v2872
      %v2971 = vpack.c.b16 %v2880, %v2873
      %v2972 = vpack.c.b16 %v2888, %v2881
      %v2973 = vpack.c.b16 %v2889, %v2882
      %v2974 = vpack.c.b16 %v2890, %v2883
      %v2975 = vpack.c.b16 %v2891, %v2884
      %v2976 = vpack.c.b16 %v2892, %v2885
      %v2977 = vpack.c.b16 %v2893, %v2886
      %v2978 = vpack.c.b16 %v2894, %v2887
      %v2979 = vpack.c.b16 %v2902, %v2895
      %v2980 = vpack.c.b16 %v2903, %v2896
      %v2981 = vpack.c.b16 %v2904, %v2897
      %v2982 = vpack.c.b16 %v2905, %v2898
      %v2983 = vpack.c.b16 %v2906, %v2899
      %v2984 = vpack.c.b16 %v2907, %v2900
      %v2985 = vpack.c.b16 %v2908, %v2901
      %v2986 = vpack.c.b16 %v2916, %v2909
      %v2987 = vpack.c.b16 %v2917, %v2910
      %v2988 = vpack.c.b16 %v2918, %v2911
      %v2989 = vpack.c.b16 %v2919, %v2912
      %v2990 = vpack.c.b16 %v2920, %v2913
      %v2991 = vpack.c.b16 %v2921, %v2914
      %v2992 = vpack.c.b16 %v2922, %v2915
      %v2993 = vpack.c.b16 %v2930, %v2923
      %v2994 = vpack.c.b16 %v2931, %v2924
      %v2995 = vpack.c.b16 %v2932, %v2925
      %v2996 = vpack.c.b16 %v2933, %v2926
      %v2997 = vpack.c.b16 %v2934, %v2927
      %v2998 = vpack.c.b16 %v2935, %v2928
      %v2999 = vpack.c.b16 %v2936, %v2929
      %v3000 = vpack.c.b16 %v2944, %v2937
      %v3001 = vpack.c.b16 %v2945, %v2938
      %v3002 = vpack.c.b16 %v2946, %v2939
      %v3003 = vpack.c.b16 %v2947, %v2940
      %v3004 = vpack.c.b16 %v2948, %v2941
      %v3005 = vpack.c.b16 %v2949, %v2942
      %v3006 = vpack.c.b16 %v2950, %v2943
      %3063 = vmatprep.subr.bf16.mxu0 %v2952
      %3064 = vmatpush1.bf16.msra.mxu0 %v2951
      %3065 = vmatprep.subr.bf16.mxu0 %v2959
      %3066 = vmatpush1.bf16.msra.mxu0 %v2958
      %3067 = vmatprep.subr.bf16.mxu0 %v2966
      %3068 = vmatpush1.bf16.msra.mxu0 %v2965
      %3069 = vmatprep.subr.bf16.mxu0 %v2973
      %3070 = vmatpush1.bf16.msra.mxu0 %v2972
      %3071 = vmatprep.subr.bf16.mxu0 %v2980
      %3072 = vmatpush1.bf16.msra.mxu0 %v2979
      %3073 = vmatprep.subr.bf16.mxu0 %v2987
      %3074 = vmatpush1.bf16.msra.mxu0 %v2986
      %3075 = vmatprep.subr.bf16.mxu0 %v2994
      %3076 = vmatpush1.bf16.msra.mxu0 %v2993
      %3077 = vmatprep.subr.bf16.mxu0 %v3001
      %3078 = vmatpush1.bf16.msra.mxu0 %v3000
      %3079 = vmatprep.subr.bf16.mxu0 0
      %3080 = vmatpush1.bf16.msra.mxu0 0
      %3081 = vmatprep.subr.bf16.mxu0 0
      %3082 = vmatpush1.bf16.msra.mxu0 0
      %3083 = vmatprep.subr.bf16.mxu0 0
      %3084 = vmatpush1.bf16.msra.mxu0 0
      %3085 = vmatprep.subr.bf16.mxu0 0
      %3086 = vmatpush1.bf16.msra.mxu0 0
      %3087 = vmatprep.subr.bf16.mxu0 0
      %3088 = vmatpush1.bf16.msra.mxu0 0
      %3089 = vmatprep.subr.bf16.mxu0 0
      %3090 = vmatpush1.bf16.msra.mxu0 0
      %3091 = vmatprep.subr.bf16.mxu0 0
      %3092 = vmatpush1.bf16.msra.mxu0 0
      %3093 = vmatprep.subr.bf16.mxu0 0
      %3094 = vmatpush1.bf16.msra.mxu0 0
      %3095 = vmatprep.mubr.bf16.mxu0 0
      %3096 = vmatmul.mubr.bf16.gmra.mrb[0].mxu0 %v2663
      %v3097 = vpop.f32.mrb[0].mxu0
      %v3098 = vadd.f32 %v2743, %v3097
      %v3099 = vpop.f32.mrb[0].mxu0
      %v3100 = vadd.f32 %v2747, %v3099
      %v3101 = vpop.f32.mrb[0].mxu0
      %v3102 = vadd.f32 %v2743, %v3101
      %v3103 = vpop.f32.mrb[0].mxu0
      %v3104 = vadd.f32 %v2747, %v3103
      %3105 = vmatprep.mubr.bf16.mxu0 0
      %3106 = vmatmul.mubr.bf16.gmra.mrb[0].mxu0 %v2664
      %v3107 = vpop.f32.mrb[0].mxu0
      %v3108 = vadd.f32 %v2743, %v3107
      %v3109 = vpop.f32.mrb[0].mxu0
      %v3110 = vadd.f32 %v2747, %v3109
      %v3111 = vpop.f32.mrb[0].mxu0
      %v3112 = vadd.f32 %v2743, %v3111
      %v3113 = vpop.f32.mrb[0].mxu0
      %v3114 = vadd.f32 %v2747, %v3113
      %3115 = vmatprep.mubr.bf16.mxu0 0
      %3116 = vmatmul.mubr.bf16.gmra.mrb[0].mxu0 %v2665
      %v3117 = vpop.f32.mrb[0].mxu0
      %v3118 = vadd.f32 %v2743, %v3117
      %v3119 = vpop.f32.mrb[0].mxu0
      %v3120 = vadd.f32 %v2747, %v3119
      %v3121 = vpop.f32.mrb[0].mxu0
      %v3122 = vadd.f32 %v2743, %v3121
      %v3123 = vpop.f32.mrb[0].mxu0
      %v3124 = vadd.f32 %v2747, %v3123
      %3125 = vmatprep.mubr.bf16.mxu0 0
      %3126 = vmatmul.mubr.bf16.gmra.mrb[0].mxu0 %v2666
      %v3127 = vpop.f32.mrb[0].mxu0
      %v3128 = vadd.f32 %v2743, %v3127
      %v3129 = vpop.f32.mrb[0].mxu0
      %v3130 = vadd.f32 %v2747, %v3129
      %v3131 = vpop.f32.mrb[0].mxu0
      %v3132 = vadd.f32 %v2743, %v3131
      %v3133 = vpop.f32.mrb[0].mxu0
      %v3134 = vadd.f32 %v2747, %v3133
      %3135 = vmatprep.mubr.bf16.mxu0 0
      %3136 = vmatmul.mubr.bf16.gmra.mrb[0].mxu0 %v2667
      %v3137 = vpop.f32.mrb[0].mxu0
      %v3138 = vadd.f32 %v2743, %v3137
      %v3139 = vpop.f32.mrb[0].mxu0
      %v3140 = vadd.f32 %v2747, %v3139
      %v3141 = vpop.f32.mrb[0].mxu0
      %v3142 = vadd.f32 %v2743, %v3141
      %v3143 = vpop.f32.mrb[0].mxu0
      %v3144 = vadd.f32 %v2747, %v3143
      %3145 = vmatprep.mubr.bf16.mxu0 0
      %3146 = vmatmul.mubr.bf16.gmra.mrb[0].mxu0 %v2668
      %v3147 = vpop.f32.mrb[0].mxu0
      %v3148 = vadd.f32 %v2743, %v3147
      %v3149 = vpop.f32.mrb[0].mxu0
      %v3150 = vadd.f32 %v2747, %v3149
      %v3151 = vpop.f32.mrb[0].mxu0
      %v3152 = vadd.f32 %v2743, %v3151
      %v3153 = vpop.f32.mrb[0].mxu0
      %v3154 = vadd.f32 %v2747, %v3153
      %3155 = vmatprep.mubr.bf16.mxu0 0
      %3156 = vmatmul.mubr.bf16.gmra.mrb[0].mxu0 %v2669
      %v3157 = vpop.f32.mrb[0].mxu0
      %v3158 = vadd.f32 %v2743, %v3157
      %v3159 = vpop.f32.mrb[0].mxu0
      %v3160 = vadd.f32 %v2747, %v3159
      %v3161 = vpop.f32.mrb[0].mxu0
      %v3162 = vadd.f32 %v2743, %v3161
      %v3163 = vpop.f32.mrb[0].mxu0
      %v3164 = vadd.f32 %v2747, %v3163
      %3165 = vmatprep.mubr.bf16.mxu0 0
      %3166 = vmatmul.mubr.bf16.gmra.mrb[0].mxu0 %v2670
      %v3167 = vpop.f32.mrb[0].mxu0
      %v3168 = vadd.f32 %v2743, %v3167
      %v3169 = vpop.f32.mrb[0].mxu0
      %v3170 = vadd.f32 %v2747, %v3169
      %v3171 = vpop.f32.mrb[0].mxu0
      %v3172 = vadd.f32 %v2743, %v3171
      %v3173 = vpop.f32.mrb[0].mxu0
      %v3174 = vadd.f32 %v2747, %v3173
      %3175 = vdwg.mxu0
      %3176 = vmatprep.subr.bf16.mxu0 %v2954
      %3177 = vmatpush1.bf16.msra.mxu0 %v2953
      %3178 = vmatprep.subr.bf16.mxu0 %v2961
      %3179 = vmatpush1.bf16.msra.mxu0 %v2960
      %3180 = vmatprep.subr.bf16.mxu0 %v2968
      %3181 = vmatpush1.bf16.msra.mxu0 %v2967
      %3182 = vmatprep.subr.bf16.mxu0 %v2975
      %3183 = vmatpush1.bf16.msra.mxu0 %v2974
      %3184 = vmatprep.subr.bf16.mxu0 %v2982
      %3185 = vmatpush1.bf16.msra.mxu0 %v2981
      %3186 = vmatprep.subr.bf16.mxu0 %v2989
      %3187 = vmatpush1.bf16.msra.mxu0 %v2988
      %3188 = vmatprep.subr.bf16.mxu0 %v2996
      %3189 = vmatpush1.bf16.msra.mxu0 %v2995
      %3190 = vmatprep.subr.bf16.mxu0 %v3003
      %3191 = vmatpush1.bf16.msra.mxu0 %v3002
      %3192 = vmatprep.subr.bf16.mxu0 0
      %3193 = vmatpush1.bf16.msra.mxu0 0
      %3194 = vmatprep.subr.bf16.mxu0 0
      %3195 = vmatpush1.bf16.msra.mxu0 0
      %3196 = vmatprep.subr.bf16.mxu0 0
      %3197 = vmatpush1.bf16.msra.mxu0 0
      %3198 = vmatprep.subr.bf16.mxu0 0
      %3199 = vmatpush1.bf16.msra.mxu0 0
      %3200 = vmatprep.subr.bf16.mxu0 0
      %3201 = vmatpush1.bf16.msra.mxu0 0
      %3202 = vmatprep.subr.bf16.mxu0 0
      %3203 = vmatpush1.bf16.msra.mxu0 0
      %3204 = vmatprep.subr.bf16.mxu0 0
      %3205 = vmatpush1.bf16.msra.mxu0 0
      %3206 = vmatprep.subr.bf16.mxu0 0
      %3207 = vmatpush1.bf16.msra.mxu0 0
      %3208 = vmatprep.mubr.bf16.mxu0 0
      %3209 = vmatmul.mubr.bf16.gmra.mrb[0].mxu0 %v2663
      %v3210 = vpop.f32.mrb[0].mxu0
      %v3211 = vadd.f32 %v2751, %v3210
      %v3212 = vpop.f32.mrb[0].mxu0
      %v3213 = vadd.f32 %v2755, %v3212
      %v3214 = vpop.f32.mrb[0].mxu0
      %v3215 = vadd.f32 %v2751, %v3214
      %v3216 = vpop.f32.mrb[0].mxu0
      %v3217 = vadd.f32 %v2755, %v3216
      %3218 = vmatprep.mubr.bf16.mxu0 0
      %3219 = vmatmul.mubr.bf16.gmra.mrb[0].mxu0 %v2664
      %v3220 = vpop.f32.mrb[0].mxu0
      %v3221 = vadd.f32 %v2751, %v3220
      %v3222 = vpop.f32.mrb[0].mxu0
      %v3223 = vadd.f32 %v2755, %v3222
      %v3224 = vpop.f32.mrb[0].mxu0
      %v3225 = vadd.f32 %v2751, %v3224
      %v3226 = vpop.f32.mrb[0].mxu0
      %v3227 = vadd.f32 %v2755, %v3226
      %3228 = vmatprep.mubr.bf16.mxu0 0
      %3229 = vmatmul.mubr.bf16.gmra.mrb[0].mxu0 %v2665
      %v3230 = vpop.f32.mrb[0].mxu0
      %v3231 = vadd.f32 %v2751, %v3230
      %v3232 = vpop.f32.mrb[0].mxu0
      %v3233 = vadd.f32 %v2755, %v3232
      %v3234 = vpop.f32.mrb[0].mxu0
      %v3235 = vadd.f32 %v2751, %v3234
      %v3236 = vpop.f32.mrb[0].mxu0
      %v3237 = vadd.f32 %v2755, %v3236
      %3238 = vmatprep.mubr.bf16.mxu0 0
      %3239 = vmatmul.mubr.bf16.gmra.mrb[0].mxu0 %v2666
      %v3240 = vpop.f32.mrb[0].mxu0
      %v3241 = vadd.f32 %v2751, %v3240
      %v3242 = vpop.f32.mrb[0].mxu0
      %v3243 = vadd.f32 %v2755, %v3242
      %v3244 = vpop.f32.mrb[0].mxu0
      %v3245 = vadd.f32 %v2751, %v3244
      %v3246 = vpop.f32.mrb[0].mxu0
      %v3247 = vadd.f32 %v2755, %v3246
      %3248 = vmatprep.mubr.bf16.mxu0 0
      %3249 = vmatmul.mubr.bf16.gmra.mrb[0].mxu0 %v2667
      %v3250 = vpop.f32.mrb[0].mxu0
      %v3251 = vadd.f32 %v2751, %v3250
      %v3252 = vpop.f32.mrb[0].mxu0
      %v3253 = vadd.f32 %v2755, %v3252
      %v3254 = vpop.f32.mrb[0].mxu0
      %v3255 = vadd.f32 %v2751, %v3254
      %v3256 = vpop.f32.mrb[0].mxu0
      %v3257 = vadd.f32 %v2755, %v3256
      %3258 = vmatprep.mubr.bf16.mxu0 0
      %3259 = vmatmul.mubr.bf16.gmra.mrb[0].mxu0 %v2668
      %v3260 = vpop.f32.mrb[0].mxu0
      %v3261 = vadd.f32 %v2751, %v3260
      %v3262 = vpop.f32.mrb[0].mxu0
      %v3263 = vadd.f32 %v2755, %v3262
      %v3264 = vpop.f32.mrb[0].mxu0
      %v3265 = vadd.f32 %v2751, %v3264
      %v3266 = vpop.f32.mrb[0].mxu0
      %v3267 = vadd.f32 %v2755, %v3266
      %3268 = vmatprep.mubr.bf16.mxu0 0
      %3269 = vmatmul.mubr.bf16.gmra.mrb[0].mxu0 %v2669
      %v3270 = vpop.f32.mrb[0].mxu0
      %v3271 = vadd.f32 %v2751, %v3270
      %v3272 = vpop.f32.mrb[0].mxu0
      %v3273 = vadd.f32 %v2755, %v3272
      %v3274 = vpop.f32.mrb[0].mxu0
      %v3275 = vadd.f32 %v2751, %v3274
      %v3276 = vpop.f32.mrb[0].mxu0
      %v3277 = vadd.f32 %v2755, %v3276
      %3278 = vmatprep.mubr.bf16.mxu0 0
      %3279 = vmatmul.mubr.bf16.gmra.mrb[0].mxu0 %v2670
      %v3280 = vpop.f32.mrb[0].mxu0
      %v3281 = vadd.f32 %v2751, %v3280
      %v3282 = vpop.f32.mrb[0].mxu0
      %v3283 = vadd.f32 %v2755, %v3282
      %v3284 = vpop.f32.mrb[0].mxu0
      %v3285 = vadd.f32 %v2751, %v3284
      %v3286 = vpop.f32.mrb[0].mxu0
      %v3287 = vadd.f32 %v2755, %v3286
      %3288 = vdwg.mxu0
      %3289 = vmatprep.subr.bf16.mxu0 %v2956
      %3290 = vmatpush1.bf16.msra.mxu0 %v2955
      %3291 = vmatprep.subr.bf16.mxu0 %v2963
      %3292 = vmatpush1.bf16.msra.mxu0 %v2962
      %3293 = vmatprep.subr.bf16.mxu0 %v2970
      %3294 = vmatpush1.bf16.msra.mxu0 %v2969
      %3295 = vmatprep.subr.bf16.mxu0 %v2977
      %3296 = vmatpush1.bf16.msra.mxu0 %v2976
      %3297 = vmatprep.subr.bf16.mxu0 %v2984
      %3298 = vmatpush1.bf16.msra.mxu0 %v2983
      %3299 = vmatprep.subr.bf16.mxu0 %v2991
      %3300 = vmatpush1.bf16.msra.mxu0 %v2990
      %3301 = vmatprep.subr.bf16.mxu0 %v2998
      %3302 = vmatpush1.bf16.msra.mxu0 %v2997
      %3303 = vmatprep.subr.bf16.mxu0 %v3005
      %3304 = vmatpush1.bf16.msra.mxu0 %v3004
      %3305 = vmatprep.subr.bf16.mxu0 0
      %3306 = vmatpush1.bf16.msra.mxu0 0
      %3307 = vmatprep.subr.bf16.mxu0 0
      %3308 = vmatpush1.bf16.msra.mxu0 0
      %3309 = vmatprep.subr.bf16.mxu0 0
      %3310 = vmatpush1.bf16.msra.mxu0 0
      %3311 = vmatprep.subr.bf16.mxu0 0
      %3312 = vmatpush1.bf16.msra.mxu0 0
      %3313 = vmatprep.subr.bf16.mxu0 0
      %3314 = vmatpush1.bf16.msra.mxu0 0
      %3315 = vmatprep.subr.bf16.mxu0 0
      %3316 = vmatpush1.bf16.msra.mxu0 0
      %3317 = vmatprep.subr.bf16.mxu0 0
      %3318 = vmatpush1.bf16.msra.mxu0 0
      %3319 = vmatprep.subr.bf16.mxu0 0
      %3320 = vmatpush1.bf16.msra.mxu0 0
      %3321 = vmatprep.mubr.bf16.mxu0 0
      %3322 = vmatmul.mubr.bf16.gmra.mrb[0].mxu0 %v2663
      %v3323 = vpop.f32.mrb[0].mxu0
      %v3324 = vadd.f32 %v2759, %v3323
      %v3325 = vpop.f32.mrb[0].mxu0
      %v3326 = vadd.f32 %v2763, %v3325
      %v3327 = vpop.f32.mrb[0].mxu0
      %v3328 = vadd.f32 %v2759, %v3327
      %v3329 = vpop.f32.mrb[0].mxu0
      %v3330 = vadd.f32 %v2763, %v3329
      %3331 = vmatprep.mubr.bf16.mxu0 0
      %3332 = vmatmul.mubr.bf16.gmra.mrb[0].mxu0 %v2664
      %v3333 = vpop.f32.mrb[0].mxu0
      %v3334 = vadd.f32 %v2759, %v3333
      %v3335 = vpop.f32.mrb[0].mxu0
      %v3336 = vadd.f32 %v2763, %v3335
      %v3337 = vpop.f32.mrb[0].mxu0
      %v3338 = vadd.f32 %v2759, %v3337
      %v3339 = vpop.f32.mrb[0].mxu0
      %v3340 = vadd.f32 %v2763, %v3339
      %3341 = vmatprep.mubr.bf16.mxu0 0
      %3342 = vmatmul.mubr.bf16.gmra.mrb[0].mxu0 %v2665
      %v3343 = vpop.f32.mrb[0].mxu0
      %v3344 = vadd.f32 %v2759, %v3343
      %v3345 = vpop.f32.mrb[0].mxu0
      %v3346 = vadd.f32 %v2763, %v3345
      %v3347 = vpop.f32.mrb[0].mxu0
      %v3348 = vadd.f32 %v2759, %v3347
      %v3349 = vpop.f32.mrb[0].mxu0
      %v3350 = vadd.f32 %v2763, %v3349
      %3351 = vmatprep.mubr.bf16.mxu0 0
      %3352 = vmatmul.mubr.bf16.gmra.mrb[0].mxu0 %v2666
      %v3353 = vpop.f32.mrb[0].mxu0
      %v3354 = vadd.f32 %v2759, %v3353
      %v3355 = vpop.f32.mrb[0].mxu0
      %v3356 = vadd.f32 %v2763, %v3355
      %v3357 = vpop.f32.mrb[0].mxu0
      %v3358 = vadd.f32 %v2759, %v3357
      %v3359 = vpop.f32.mrb[0].mxu0
      %v3360 = vadd.f32 %v2763, %v3359
      %3361 = vmatprep.mubr.bf16.mxu0 0
      %3362 = vmatmul.mubr.bf16.gmra.mrb[0].mxu0 %v2667
      %v3363 = vpop.f32.mrb[0].mxu0
      %v3364 = vadd.f32 %v2759, %v3363
      %v3365 = vpop.f32.mrb[0].mxu0
      %v3366 = vadd.f32 %v2763, %v3365
      %v3367 = vpop.f32.mrb[0].mxu0
      %v3368 = vadd.f32 %v2759, %v3367
      %v3369 = vpop.f32.mrb[0].mxu0
      %v3370 = vadd.f32 %v2763, %v3369
      %3371 = vmatprep.mubr.bf16.mxu0 0
      %3372 = vmatmul.mubr.bf16.gmra.mrb[0].mxu0 %v2668
      %v3373 = vpop.f32.mrb[0].mxu0
      %v3374 = vadd.f32 %v2759, %v3373
      %v3375 = vpop.f32.mrb[0].mxu0
      %v3376 = vadd.f32 %v2763, %v3375
      %v3377 = vpop.f32.mrb[0].mxu0
      %v3378 = vadd.f32 %v2759, %v3377
      %v3379 = vpop.f32.mrb[0].mxu0
      %v3380 = vadd.f32 %v2763, %v3379
      %3381 = vmatprep.mubr.bf16.mxu0 0
      %3382 = vmatmul.mubr.bf16.gmra.mrb[0].mxu0 %v2669
      %v3383 = vpop.f32.mrb[0].mxu0
      %v3384 = vadd.f32 %v2759, %v3383
      %v3385 = vpop.f32.mrb[0].mxu0
      %v3386 = vadd.f32 %v2763, %v3385
      %v3387 = vpop.f32.mrb[0].mxu0
      %v3388 = vadd.f32 %v2759, %v3387
      %v3389 = vpop.f32.mrb[0].mxu0
      %v3390 = vadd.f32 %v2763, %v3389
      %3391 = vmatprep.mubr.bf16.mxu0 0
      %3392 = vmatmul.mubr.bf16.gmra.mrb[0].mxu0 %v2670
      %v3393 = vpop.f32.mrb[0].mxu0
      %v3394 = vadd.f32 %v2759, %v3393
      %v3395 = vpop.f32.mrb[0].mxu0
      %v3396 = vadd.f32 %v2763, %v3395
      %v3397 = vpop.f32.mrb[0].mxu0
      %v3398 = vadd.f32 %v2759, %v3397
      %v3399 = vpop.f32.mrb[0].mxu0
      %v3400 = vadd.f32 %v2763, %v3399
      %3401 = vdwg.mxu0
      %3402 = vmatprep.subr.bf16.mxu0 0
      %3403 = vmatpush1.bf16.msra.mxu0 %v2957
      %3404 = vmatprep.subr.bf16.mxu0 0
      %3405 = vmatpush1.bf16.msra.mxu0 %v2964
      %3406 = vmatprep.subr.bf16.mxu0 0
      %3407 = vmatpush1.bf16.msra.mxu0 %v2971
      %3408 = vmatprep.subr.bf16.mxu0 0
      %3409 = vmatpush1.bf16.msra.mxu0 %v2978
      %3410 = vmatprep.subr.bf16.mxu0 0
      %3411 = vmatpush1.bf16.msra.mxu0 %v2985
      %3412 = vmatprep.subr.bf16.mxu0 0
      %3413 = vmatpush1.bf16.msra.mxu0 %v2992
      %3414 = vmatprep.subr.bf16.mxu0 0
      %3415 = vmatpush1.bf16.msra.mxu0 %v2999
      %3416 = vmatprep.subr.bf16.mxu0 0
      %3417 = vmatpush1.bf16.msra.mxu0 %v3006
      %3418 = vmatprep.subr.bf16.mxu0 0
      %3419 = vmatpush1.bf16.msra.mxu0 0
      %3420 = vmatprep.subr.bf16.mxu0 0
      %3421 = vmatpush1.bf16.msra.mxu0 0
      %3422 = vmatprep.subr.bf16.mxu0 0
      %3423 = vmatpush1.bf16.msra.mxu0 0
      %3424 = vmatprep.subr.bf16.mxu0 0
      %3425 = vmatpush1.bf16.msra.mxu0 0
      %3426 = vmatprep.subr.bf16.mxu0 0
      %3427 = vmatpush1.bf16.msra.mxu0 0
      %3428 = vmatprep.subr.bf16.mxu0 0
      %3429 = vmatpush1.bf16.msra.mxu0 0
      %3430 = vmatprep.subr.bf16.mxu0 0
      %3431 = vmatpush1.bf16.msra.mxu0 0
      %3432 = vmatprep.subr.bf16.mxu0 0
      %3433 = vmatpush1.bf16.msra.mxu0 0
      %3434 = vmatprep.mubr.bf16.mxu0 0
      %3435 = vmatmul.mubr.bf16.gmra.mrb[0].mxu0 %v2663
      %v3436 = vpop.f32.mrb[0].mxu0
      %v3437 = vadd.f32 %v2767, %v3436
      %v3438 = vpop.f32.mrb[0].mxu0
      %v3439 = vpop.f32.mrb[0].mxu0
      %v3440 = vadd.f32 %v2767, %v3439
      %v3441 = vpop.f32.mrb[0].mxu0
      %3442 = vmatprep.mubr.bf16.mxu0 0
      %3443 = vmatmul.mubr.bf16.gmra.mrb[0].mxu0 %v2664
      %v3444 = vpop.f32.mrb[0].mxu0
      %v3445 = vadd.f32 %v2767, %v3444
      %v3446 = vpop.f32.mrb[0].mxu0
      %v3447 = vpop.f32.mrb[0].mxu0
      %v3448 = vadd.f32 %v2767, %v3447
      %v3449 = vpop.f32.mrb[0].mxu0
      %3450 = vmatprep.mubr.bf16.mxu0 0
      %3451 = vmatmul.mubr.bf16.gmra.mrb[0].mxu0 %v2665
      %v3452 = vpop.f32.mrb[0].mxu0
      %v3453 = vadd.f32 %v2767, %v3452
      %v3454 = vpop.f32.mrb[0].mxu0
      %v3455 = vpop.f32.mrb[0].mxu0
      %v3456 = vadd.f32 %v2767, %v3455
      %v3457 = vpop.f32.mrb[0].mxu0
      %3458 = vmatprep.mubr.bf16.mxu0 0
      %3459 = vmatmul.mubr.bf16.gmra.mrb[0].mxu0 %v2666
      %v3460 = vpop.f32.mrb[0].mxu0
      %v3461 = vadd.f32 %v2767, %v3460
      %v3462 = vpop.f32.mrb[0].mxu0
      %v3463 = vpop.f32.mrb[0].mxu0
      %v3464 = vadd.f32 %v2767, %v3463
      %v3465 = vpop.f32.mrb[0].mxu0
      %3466 = vmatprep.mubr.bf16.mxu0 0
      %3467 = vmatmul.mubr.bf16.gmra.mrb[0].mxu0 %v2667
      %v3468 = vpop.f32.mrb[0].mxu0
      %v3469 = vadd.f32 %v2767, %v3468
      %v3470 = vpop.f32.mrb[0].mxu0
      %v3471 = vpop.f32.mrb[0].mxu0
      %v3472 = vadd.f32 %v2767, %v3471
      %v3473 = vpop.f32.mrb[0].mxu0
      %3474 = vmatprep.mubr.bf16.mxu0 0
      %3475 = vmatmul.mubr.bf16.gmra.mrb[0].mxu0 %v2668
      %v3476 = vpop.f32.mrb[0].mxu0
      %v3477 = vadd.f32 %v2767, %v3476
      %v3478 = vpop.f32.mrb[0].mxu0
      %v3479 = vpop.f32.mrb[0].mxu0
      %v3480 = vadd.f32 %v2767, %v3479
      %v3481 = vpop.f32.mrb[0].mxu0
      %3482 = vmatprep.mubr.bf16.mxu0 0
      %3483 = vmatmul.mubr.bf16.gmra.mrb[0].mxu0 %v2669
      %v3484 = vpop.f32.mrb[0].mxu0
      %v3485 = vadd.f32 %v2767, %v3484
      %v3486 = vpop.f32.mrb[0].mxu0
      %v3487 = vpop.f32.mrb[0].mxu0
      %v3488 = vadd.f32 %v2767, %v3487
      %v3489 = vpop.f32.mrb[0].mxu0
      %3490 = vmatprep.mubr.bf16.mxu0 0
      %3491 = vmatmul.mubr.bf16.gmra.mrb[0].mxu0 %v2670
      %v3492 = vpop.f32.mrb[0].mxu0
      %v3493 = vadd.f32 %v2767, %v3492
      %v3494 = vpop.f32.mrb[0].mxu0
      %v3495 = vpop.f32.mrb[0].mxu0
      %v3496 = vadd.f32 %v2767, %v3495
      %v3497 = vpop.f32.mrb[0].mxu0
      %3498 = vdwg.mxu0
      %v3499 = vmul.f32 %v3098, 0.5
      %v3500 = vmul.f32 %v3100, 0.5
      %v3501 = vmul.f32 %v3211, 0.5
      %v3502 = vmul.f32 %v3213, 0.5
      %v3503 = vmul.f32 %v3324, 0.5
      %v3504 = vmul.f32 %v3326, 0.5
      %v3505 = vmul.f32 %v3437, 0.5
      %v3506 = vmul.f32 %v3102, 0.5
      %v3507 = vmul.f32 %v3104, 0.5
      %v3508 = vmul.f32 %v3215, 0.5
      %v3509 = vmul.f32 %v3217, 0.5
      %v3510 = vmul.f32 %v3328, 0.5
      %v3511 = vmul.f32 %v3330, 0.5
      %v3512 = vmul.f32 %v3440, 0.5
      %v3513 = vmul.f32 %v3108, 0.5
      %v3514 = vmul.f32 %v3110, 0.5
      %v3515 = vmul.f32 %v3221, 0.5
      %v3516 = vmul.f32 %v3223, 0.5
      %v3517 = vmul.f32 %v3334, 0.5
      %v3518 = vmul.f32 %v3336, 0.5
      %v3519 = vmul.f32 %v3445, 0.5
      %v3520 = vmul.f32 %v3112, 0.5
      %v3521 = vmul.f32 %v3114, 0.5
      %v3522 = vmul.f32 %v3225, 0.5
      %v3523 = vmul.f32 %v3227, 0.5
      %v3524 = vmul.f32 %v3338, 0.5
      %v3525 = vmul.f32 %v3340, 0.5
      %v3526 = vmul.f32 %v3448, 0.5
      %v3527 = vmul.f32 %v3118, 0.5
      %v3528 = vmul.f32 %v3120, 0.5
      %v3529 = vmul.f32 %v3231, 0.5
      %v3530 = vmul.f32 %v3233, 0.5
      %v3531 = vmul.f32 %v3344, 0.5
      %v3532 = vmul.f32 %v3346, 0.5
      %v3533 = vmul.f32 %v3453, 0.5
      %v3534 = vmul.f32 %v3122, 0.5
      %v3535 = vmul.f32 %v3124, 0.5
      %v3536 = vmul.f32 %v3235, 0.5
      %v3537 = vmul.f32 %v3237, 0.5
      %v3538 = vmul.f32 %v3348, 0.5
      %v3539 = vmul.f32 %v3350, 0.5
      %v3540 = vmul.f32 %v3456, 0.5
      %v3541 = vmul.f32 %v3128, 0.5
      %v3542 = vmul.f32 %v3130, 0.5
      %v3543 = vmul.f32 %v3241, 0.5
      %v3544 = vmul.f32 %v3243, 0.5
      %v3545 = vmul.f32 %v3354, 0.5
      %v3546 = vmul.f32 %v3356, 0.5
      %v3547 = vmul.f32 %v3461, 0.5
      %v3548 = vmul.f32 %v3132, 0.5
      %v3549 = vmul.f32 %v3134, 0.5
      %v3550 = vmul.f32 %v3245, 0.5
      %v3551 = vmul.f32 %v3247, 0.5
      %v3552 = vmul.f32 %v3358, 0.5
      %v3553 = vmul.f32 %v3360, 0.5
      %v3554 = vmul.f32 %v3464, 0.5
      %v3555 = vmul.f32 %v3138, 0.5
      %v3556 = vmul.f32 %v3140, 0.5
      %v3557 = vmul.f32 %v3251, 0.5
      %v3558 = vmul.f32 %v3253, 0.5
      %v3559 = vmul.f32 %v3364, 0.5
      %v3560 = vmul.f32 %v3366, 0.5
      %v3561 = vmul.f32 %v3469, 0.5
      %v3562 = vmul.f32 %v3142, 0.5
      %v3563 = vmul.f32 %v3144, 0.5
      %v3564 = vmul.f32 %v3255, 0.5
      %v3565 = vmul.f32 %v3257, 0.5
      %v3566 = vmul.f32 %v3368, 0.5
      %v3567 = vmul.f32 %v3370, 0.5
      %v3568 = vmul.f32 %v3472, 0.5
      %v3569 = vmul.f32 %v3148, 0.5
      %v3570 = vmul.f32 %v3150, 0.5
      %v3571 = vmul.f32 %v3261, 0.5
      %v3572 = vmul.f32 %v3263, 0.5
      %v3573 = vmul.f32 %v3374, 0.5
      %v3574 = vmul.f32 %v3376, 0.5
      %v3575 = vmul.f32 %v3477, 0.5
      %v3576 = vmul.f32 %v3152, 0.5
      %v3577 = vmul.f32 %v3154, 0.5
      %v3578 = vmul.f32 %v3265, 0.5
      %v3579 = vmul.f32 %v3267, 0.5
      %v3580 = vmul.f32 %v3378, 0.5
      %v3581 = vmul.f32 %v3380, 0.5
      %v3582 = vmul.f32 %v3480, 0.5
      %v3583 = vmul.f32 %v3158, 0.5
      %v3584 = vmul.f32 %v3160, 0.5
      %v3585 = vmul.f32 %v3271, 0.5
      %v3586 = vmul.f32 %v3273, 0.5
      %v3587 = vmul.f32 %v3384, 0.5
      %v3588 = vmul.f32 %v3386, 0.5
      %v3589 = vmul.f32 %v3485, 0.5
      %v3590 = vmul.f32 %v3162, 0.5
      %v3591 = vmul.f32 %v3164, 0.5
      %v3592 = vmul.f32 %v3275, 0.5
      %v3593 = vmul.f32 %v3277, 0.5
      %v3594 = vmul.f32 %v3388, 0.5
      %v3595 = vmul.f32 %v3390, 0.5
      %v3596 = vmul.f32 %v3488, 0.5
      %v3597 = vmul.f32 %v3168, 0.5
      %v3598 = vmul.f32 %v3170, 0.5
      %v3599 = vmul.f32 %v3281, 0.5
      %v3600 = vmul.f32 %v3283, 0.5
      %v3601 = vmul.f32 %v3394, 0.5
      %v3602 = vmul.f32 %v3396, 0.5
      %v3603 = vmul.f32 %v3493, 0.5
      %v3604 = vmul.f32 %v3172, 0.5
      %v3605 = vmul.f32 %v3174, 0.5
      %v3606 = vmul.f32 %v3285, 0.5
      %v3607 = vmul.f32 %v3287, 0.5
      %v3608 = vmul.f32 %v3398, 0.5
      %v3609 = vmul.f32 %v3400, 0.5
      %v3610 = vmul.f32 %v3496, 0.5
      %v3611 = vtanh.pop %v3499
      %v3612 = vtanh.pop %v3500
      %v3613 = vtanh.pop %v3501
      %v3614 = vtanh.pop %v3502
      %v3615 = vtanh.pop %v3503
      %v3616 = vtanh.pop %v3504
      %v3617 = vtanh.pop %v3505
      %v3618 = vtanh.pop %v3506
      %v3619 = vtanh.pop %v3507
      %v3620 = vtanh.pop %v3508
      %v3621 = vtanh.pop %v3509
      %v3622 = vtanh.pop %v3510
      %v3623 = vtanh.pop %v3511
      %v3624 = vtanh.pop %v3512
      %v3625 = vtanh.pop %v3513
      %v3626 = vtanh.pop %v3514
      %v3627 = vtanh.pop %v3515
      %v3628 = vtanh.pop %v3516
      %v3629 = vtanh.pop %v3517
      %v3630 = vtanh.pop %v3518
      %v3631 = vtanh.pop %v3519
      %v3632 = vtanh.pop %v3520
      %v3633 = vtanh.pop %v3521
      %v3634 = vtanh.pop %v3522
      %v3635 = vtanh.pop %v3523
      %v3636 = vtanh.pop %v3524
      %v3637 = vtanh.pop %v3525
      %v3638 = vtanh.pop %v3526
      %v3639 = vtanh.pop %v3527
      %v3640 = vtanh.pop %v3528
      %v3641 = vtanh.pop %v3529
      %v3642 = vtanh.pop %v3530
      %v3643 = vtanh.pop %v3531
      %v3644 = vtanh.pop %v3532
      %v3645 = vtanh.pop %v3533
      %v3646 = vtanh.pop %v3534
      %v3647 = vtanh.pop %v3535
      %v3648 = vtanh.pop %v3536
      %v3649 = vtanh.pop %v3537
      %v3650 = vtanh.pop %v3538
      %v3651 = vtanh.pop %v3539
      %v3652 = vtanh.pop %v3540
      %v3653 = vtanh.pop %v3541
      %v3654 = vtanh.pop %v3542
      %v3655 = vtanh.pop %v3543
      %v3656 = vtanh.pop %v3544
      %v3657 = vtanh.pop %v3545
      %v3658 = vtanh.pop %v3546
      %v3659 = vtanh.pop %v3547
      %v3660 = vtanh.pop %v3548
      %v3661 = vtanh.pop %v3549
      %v3662 = vtanh.pop %v3550
      %v3663 = vtanh.pop %v3551
      %v3664 = vtanh.pop %v3552
      %v3665 = vtanh.pop %v3553
      %v3666 = vtanh.pop %v3554
      %v3667 = vtanh.pop %v3555
      %v3668 = vtanh.pop %v3556
      %v3669 = vtanh.pop %v3557
      %v3670 = vtanh.pop %v3558
      %v3671 = vtanh.pop %v3559
      %v3672 = vtanh.pop %v3560
      %v3673 = vtanh.pop %v3561
      %v3674 = vtanh.pop %v3562
      %v3675 = vtanh.pop %v3563
      %v3676 = vtanh.pop %v3564
      %v3677 = vtanh.pop %v3565
      %v3678 = vtanh.pop %v3566
      %v3679 = vtanh.pop %v3567
      %v3680 = vtanh.pop %v3568
      %v3681 = vtanh.pop %v3569
      %v3682 = vtanh.pop %v3570
      %v3683 = vtanh.pop %v3571
      %v3684 = vtanh.pop %v3572
      %v3685 = vtanh.pop %v3573
      %v3686 = vtanh.pop %v3574
      %v3687 = vtanh.pop %v3575
      %v3688 = vtanh.pop %v3576
      %v3689 = vtanh.pop %v3577
      %v3690 = vtanh.pop %v3578
      %v3691 = vtanh.pop %v3579
      %v3692 = vtanh.pop %v3580
      %v3693 = vtanh.pop %v3581
      %v3694 = vtanh.pop %v3582
      %v3695 = vtanh.pop %v3583
      %v3696 = vtanh.pop %v3584
      %v3697 = vtanh.pop %v3585
      %v3698 = vtanh.pop %v3586
      %v3699 = vtanh.pop %v3587
      %v3700 = vtanh.pop %v3588
      %v3701 = vtanh.pop %v3589
      %v3702 = vtanh.pop %v3590
      %v3703 = vtanh.pop %v3591
      %v3704 = vtanh.pop %v3592
      %v3705 = vtanh.pop %v3593
      %v3706 = vtanh.pop %v3594
      %v3707 = vtanh.pop %v3595
      %v3708 = vtanh.pop %v3596
      %v3709 = vtanh.pop %v3597
      %v3710 = vtanh.pop %v3598
      %v3711 = vtanh.pop %v3599
      %v3712 = vtanh.pop %v3600
      %v3713 = vtanh.pop %v3601
      %v3714 = vtanh.pop %v3602
      %v3715 = vtanh.pop %v3603
      %v3716 = vtanh.pop %v3604
      %v3717 = vtanh.pop %v3605
      %v3718 = vtanh.pop %v3606
      %v3719 = vtanh.pop %v3607
      %v3720 = vtanh.pop %v3608
      %v3721 = vtanh.pop %v3609
      %v3722 = vtanh.pop %v3610
      %v3723 = vmul.f32 %v3611, 0.5
      %v3724 = vmul.f32 %v3612, 0.5
      %v3725 = vmul.f32 %v3613, 0.5
      %v3726 = vmul.f32 %v3614, 0.5
      %v3727 = vmul.f32 %v3615, 0.5
      %v3728 = vmul.f32 %v3616, 0.5
      %v3729 = vmul.f32 %v3617, 0.5
      %v3730 = vmul.f32 %v3618, 0.5
      %v3731 = vmul.f32 %v3619, 0.5
      %v3732 = vmul.f32 %v3620, 0.5
      %v3733 = vmul.f32 %v3621, 0.5
      %v3734 = vmul.f32 %v3622, 0.5
      %v3735 = vmul.f32 %v3623, 0.5
      %v3736 = vmul.f32 %v3624, 0.5
      %v3737 = vmul.f32 %v3625, 0.5
      %v3738 = vmul.f32 %v3626, 0.5
      %v3739 = vmul.f32 %v3627, 0.5
      %v3740 = vmul.f32 %v3628, 0.5
      %v3741 = vmul.f32 %v3629, 0.5
      %v3742 = vmul.f32 %v3630, 0.5
      %v3743 = vmul.f32 %v3631, 0.5
      %v3744 = vmul.f32 %v3632, 0.5
      %v3745 = vmul.f32 %v3633, 0.5
      %v3746 = vmul.f32 %v3634, 0.5
      %v3747 = vmul.f32 %v3635, 0.5
      %v3748 = vmul.f32 %v3636, 0.5
      %v3749 = vmul.f32 %v3637, 0.5
      %v3750 = vmul.f32 %v3638, 0.5
      %v3751 = vmul.f32 %v3639, 0.5
      %v3752 = vmul.f32 %v3640, 0.5
      %v3753 = vmul.f32 %v3641, 0.5
      %v3754 = vmul.f32 %v3642, 0.5
      %v3755 = vmul.f32 %v3643, 0.5
      %v3756 = vmul.f32 %v3644, 0.5
      %v3757 = vmul.f32 %v3645, 0.5
      %v3758 = vmul.f32 %v3646, 0.5
      %v3759 = vmul.f32 %v3647, 0.5
      %v3760 = vmul.f32 %v3648, 0.5
      %v3761 = vmul.f32 %v3649, 0.5
      %v3762 = vmul.f32 %v3650, 0.5
      %v3763 = vmul.f32 %v3651, 0.5
      %v3764 = vmul.f32 %v3652, 0.5
      %v3765 = vmul.f32 %v3653, 0.5
      %v3766 = vmul.f32 %v3654, 0.5
      %v3767 = vmul.f32 %v3655, 0.5
      %v3768 = vmul.f32 %v3656, 0.5
      %v3769 = vmul.f32 %v3657, 0.5
      %v3770 = vmul.f32 %v3658, 0.5
      %v3771 = vmul.f32 %v3659, 0.5
      %v3772 = vmul.f32 %v3660, 0.5
      %v3773 = vmul.f32 %v3661, 0.5
      %v3774 = vmul.f32 %v3662, 0.5
      %v3775 = vmul.f32 %v3663, 0.5
      %v3776 = vmul.f32 %v3664, 0.5
      %v3777 = vmul.f32 %v3665, 0.5
      %v3778 = vmul.f32 %v3666, 0.5
      %v3779 = vmul.f32 %v3667, 0.5
      %v3780 = vmul.f32 %v3668, 0.5
      %v3781 = vmul.f32 %v3669, 0.5
      %v3782 = vmul.f32 %v3670, 0.5
      %v3783 = vmul.f32 %v3671, 0.5
      %v3784 = vmul.f32 %v3672, 0.5
      %v3785 = vmul.f32 %v3673, 0.5
      %v3786 = vmul.f32 %v3674, 0.5
      %v3787 = vmul.f32 %v3675, 0.5
      %v3788 = vmul.f32 %v3676, 0.5
      %v3789 = vmul.f32 %v3677, 0.5
      %v3790 = vmul.f32 %v3678, 0.5
      %v3791 = vmul.f32 %v3679, 0.5
      %v3792 = vmul.f32 %v3680, 0.5
      %v3793 = vmul.f32 %v3681, 0.5
      %v3794 = vmul.f32 %v3682, 0.5
      %v3795 = vmul.f32 %v3683, 0.5
      %v3796 = vmul.f32 %v3684, 0.5
      %v3797 = vmul.f32 %v3685, 0.5
      %v3798 = vmul.f32 %v3686, 0.5
      %v3799 = vmul.f32 %v3687, 0.5
      %v3800 = vmul.f32 %v3688, 0.5
      %v3801 = vmul.f32 %v3689, 0.5
      %v3802 = vmul.f32 %v3690, 0.5
      %v3803 = vmul.f32 %v3691, 0.5
      %v3804 = vmul.f32 %v3692, 0.5
      %v3805 = vmul.f32 %v3693, 0.5
      %v3806 = vmul.f32 %v3694, 0.5
      %v3807 = vmul.f32 %v3695, 0.5
      %v3808 = vmul.f32 %v3696, 0.5
      %v3809 = vmul.f32 %v3697, 0.5
      %v3810 = vmul.f32 %v3698, 0.5
      %v3811 = vmul.f32 %v3699, 0.5
      %v3812 = vmul.f32 %v3700, 0.5
      %v3813 = vmul.f32 %v3701, 0.5
      %v3814 = vmul.f32 %v3702, 0.5
      %v3815 = vmul.f32 %v3703, 0.5
      %v3816 = vmul.f32 %v3704, 0.5
      %v3817 = vmul.f32 %v3705, 0.5
      %v3818 = vmul.f32 %v3706, 0.5
      %v3819 = vmul.f32 %v3707, 0.5
      %v3820 = vmul.f32 %v3708, 0.5
      %v3821 = vmul.f32 %v3709, 0.5
      %v3822 = vmul.f32 %v3710, 0.5
      %v3823 = vmul.f32 %v3711, 0.5
      %v3824 = vmul.f32 %v3712, 0.5
      %v3825 = vmul.f32 %v3713, 0.5
      %v3826 = vmul.f32 %v3714, 0.5
      %v3827 = vmul.f32 %v3715, 0.5
      %v3828 = vmul.f32 %v3716, 0.5
      %v3829 = vmul.f32 %v3717, 0.5
      %v3830 = vmul.f32 %v3718, 0.5
      %v3831 = vmul.f32 %v3719, 0.5
      %v3832 = vmul.f32 %v3720, 0.5
      %v3833 = vmul.f32 %v3721, 0.5
      %v3834 = vmul.f32 %v3722, 0.5
      %v3835 = vadd.f32 %v3723, 0.5
      %v3836 = vadd.f32 %v3724, 0.5
      %v3837 = vadd.f32 %v3725, 0.5
      %v3838 = vadd.f32 %v3726, 0.5
      %v3839 = vadd.f32 %v3727, 0.5
      %v3840 = vadd.f32 %v3728, 0.5
      %v3841 = vadd.f32 %v3729, 0.5
      %v3842 = vadd.f32 %v3730, 0.5
      %v3843 = vadd.f32 %v3731, 0.5
      %v3844 = vadd.f32 %v3732, 0.5
      %v3845 = vadd.f32 %v3733, 0.5
      %v3846 = vadd.f32 %v3734, 0.5
      %v3847 = vadd.f32 %v3735, 0.5
      %v3848 = vadd.f32 %v3736, 0.5
      %v3849 = vadd.f32 %v3737, 0.5
      %v3850 = vadd.f32 %v3738, 0.5
      %v3851 = vadd.f32 %v3739, 0.5
      %v3852 = vadd.f32 %v3740, 0.5
      %v3853 = vadd.f32 %v3741, 0.5
      %v3854 = vadd.f32 %v3742, 0.5
      %v3855 = vadd.f32 %v3743, 0.5
      %v3856 = vadd.f32 %v3744, 0.5
      %v3857 = vadd.f32 %v3745, 0.5
      %v3858 = vadd.f32 %v3746, 0.5
      %v3859 = vadd.f32 %v3747, 0.5
      %v3860 = vadd.f32 %v3748, 0.5
      %v3861 = vadd.f32 %v3749, 0.5
      %v3862 = vadd.f32 %v3750, 0.5
      %v3863 = vadd.f32 %v3751, 0.5
      %v3864 = vadd.f32 %v3752, 0.5
      %v3865 = vadd.f32 %v3753, 0.5
      %v3866 = vadd.f32 %v3754, 0.5
      %v3867 = vadd.f32 %v3755, 0.5
      %v3868 = vadd.f32 %v3756, 0.5
      %v3869 = vadd.f32 %v3757, 0.5
      %v3870 = vadd.f32 %v3758, 0.5
      %v3871 = vadd.f32 %v3759, 0.5
      %v3872 = vadd.f32 %v3760, 0.5
      %v3873 = vadd.f32 %v3761, 0.5
      %v3874 = vadd.f32 %v3762, 0.5
      %v3875 = vadd.f32 %v3763, 0.5
      %v3876 = vadd.f32 %v3764, 0.5
      %v3877 = vadd.f32 %v3765, 0.5
      %v3878 = vadd.f32 %v3766, 0.5
      %v3879 = vadd.f32 %v3767, 0.5
      %v3880 = vadd.f32 %v3768, 0.5
      %v3881 = vadd.f32 %v3769, 0.5
      %v3882 = vadd.f32 %v3770, 0.5
      %v3883 = vadd.f32 %v3771, 0.5
      %v3884 = vadd.f32 %v3772, 0.5
      %v3885 = vadd.f32 %v3773, 0.5
      %v3886 = vadd.f32 %v3774, 0.5
      %v3887 = vadd.f32 %v3775, 0.5
      %v3888 = vadd.f32 %v3776, 0.5
      %v3889 = vadd.f32 %v3777, 0.5
      %v3890 = vadd.f32 %v3778, 0.5
      %v3891 = vadd.f32 %v3779, 0.5
      %v3892 = vadd.f32 %v3780, 0.5
      %v3893 = vadd.f32 %v3781, 0.5
      %v3894 = vadd.f32 %v3782, 0.5
      %v3895 = vadd.f32 %v3783, 0.5
      %v3896 = vadd.f32 %v3784, 0.5
      %v3897 = vadd.f32 %v3785, 0.5
      %v3898 = vadd.f32 %v3786, 0.5
      %v3899 = vadd.f32 %v3787, 0.5
      %v3900 = vadd.f32 %v3788, 0.5
      %v3901 = vadd.f32 %v3789, 0.5
      %v3902 = vadd.f32 %v3790, 0.5
      %v3903 = vadd.f32 %v3791, 0.5
      %v3904 = vadd.f32 %v3792, 0.5
      %v3905 = vadd.f32 %v3793, 0.5
      %v3906 = vadd.f32 %v3794, 0.5
      %v3907 = vadd.f32 %v3795, 0.5
      %v3908 = vadd.f32 %v3796, 0.5
      %v3909 = vadd.f32 %v3797, 0.5
      %v3910 = vadd.f32 %v3798, 0.5
      %v3911 = vadd.f32 %v3799, 0.5
      %v3912 = vadd.f32 %v3800, 0.5
      %v3913 = vadd.f32 %v3801, 0.5
      %v3914 = vadd.f32 %v3802, 0.5
      %v3915 = vadd.f32 %v3803, 0.5
      %v3916 = vadd.f32 %v3804, 0.5
      %v3917 = vadd.f32 %v3805, 0.5
      %v3918 = vadd.f32 %v3806, 0.5
      %v3919 = vadd.f32 %v3807, 0.5
      %v3920 = vadd.f32 %v3808, 0.5
      %v3921 = vadd.f32 %v3809, 0.5
      %v3922 = vadd.f32 %v3810, 0.5
      %v3923 = vadd.f32 %v3811, 0.5
      %v3924 = vadd.f32 %v3812, 0.5
      %v3925 = vadd.f32 %v3813, 0.5
      %v3926 = vadd.f32 %v3814, 0.5
      %v3927 = vadd.f32 %v3815, 0.5
      %v3928 = vadd.f32 %v3816, 0.5
      %v3929 = vadd.f32 %v3817, 0.5
      %v3930 = vadd.f32 %v3818, 0.5
      %v3931 = vadd.f32 %v3819, 0.5
      %v3932 = vadd.f32 %v3820, 0.5
      %v3933 = vadd.f32 %v3821, 0.5
      %v3934 = vadd.f32 %v3822, 0.5
      %v3935 = vadd.f32 %v3823, 0.5
      %v3936 = vadd.f32 %v3824, 0.5
      %v3937 = vadd.f32 %v3825, 0.5
      %v3938 = vadd.f32 %v3826, 0.5
      %v3939 = vadd.f32 %v3827, 0.5
      %v3940 = vadd.f32 %v3828, 0.5
      %v3941 = vadd.f32 %v3829, 0.5
      %v3942 = vadd.f32 %v3830, 0.5
      %v3943 = vadd.f32 %v3831, 0.5
      %v3944 = vadd.f32 %v3832, 0.5
      %v3945 = vadd.f32 %v3833, 0.5
      %v3946 = vadd.f32 %v3834, 0.5
      %v3947 = vpack.c.bf16 %v3842, %v3835
      %v3948 = vpack.c.bf16 %v3843, %v3836
      %v3949 = vpack.c.bf16 %v3844, %v3837
      %v3950 = vpack.c.bf16 %v3845, %v3838
      %v3951 = vpack.c.bf16 %v3846, %v3839
      %v3952 = vpack.c.bf16 %v3847, %v3840
      %v3953 = vpack.c.bf16 %v3848, %v3841
      %v3954 = vpack.c.bf16 %v3856, %v3849
      %v3955 = vpack.c.bf16 %v3857, %v3850
      %v3956 = vpack.c.bf16 %v3858, %v3851
      %v3957 = vpack.c.bf16 %v3859, %v3852
      %v3958 = vpack.c.bf16 %v3860, %v3853
      %v3959 = vpack.c.bf16 %v3861, %v3854
      %v3960 = vpack.c.bf16 %v3862, %v3855
      %v3961 = vpack.c.bf16 %v3870, %v3863
      %v3962 = vpack.c.bf16 %v3871, %v3864
      %v3963 = vpack.c.bf16 %v3872, %v3865
      %v3964 = vpack.c.bf16 %v3873, %v3866
      %v3965 = vpack.c.bf16 %v3874, %v3867
      %v3966 = vpack.c.bf16 %v3875, %v3868
      %v3967 = vpack.c.bf16 %v3876, %v3869
      %v3968 = vpack.c.bf16 %v3884, %v3877
      %v3969 = vpack.c.bf16 %v3885, %v3878
      %v3970 = vpack.c.bf16 %v3886, %v3879
      %v3971 = vpack.c.bf16 %v3887, %v3880
      %v3972 = vpack.c.bf16 %v3888, %v3881
      %v3973 = vpack.c.bf16 %v3889, %v3882
      %v3974 = vpack.c.bf16 %v3890, %v3883
      %v3975 = vpack.c.bf16 %v3898, %v3891
      %v3976 = vpack.c.bf16 %v3899, %v3892
      %v3977 = vpack.c.bf16 %v3900, %v3893
      %v3978 = vpack.c.bf16 %v3901, %v3894
      %v3979 = vpack.c.bf16 %v3902, %v3895
      %v3980 = vpack.c.bf16 %v3903, %v3896
      %v3981 = vpack.c.bf16 %v3904, %v3897
      %v3982 = vpack.c.bf16 %v3912, %v3905
      %v3983 = vpack.c.bf16 %v3913, %v3906
      %v3984 = vpack.c.bf16 %v3914, %v3907
      %v3985 = vpack.c.bf16 %v3915, %v3908
      %v3986 = vpack.c.bf16 %v3916, %v3909
      %v3987 = vpack.c.bf16 %v3917, %v3910
      %v3988 = vpack.c.bf16 %v3918, %v3911
      %v3989 = vpack.c.bf16 %v3926, %v3919
      %v3990 = vpack.c.bf16 %v3927, %v3920
      %v3991 = vpack.c.bf16 %v3928, %v3921
      %v3992 = vpack.c.bf16 %v3929, %v3922
      %v3993 = vpack.c.bf16 %v3930, %v3923
      %v3994 = vpack.c.bf16 %v3931, %v3924
      %v3995 = vpack.c.bf16 %v3932, %v3925
      %v3996 = vpack.c.bf16 %v3940, %v3933
      %v3997 = vpack.c.bf16 %v3941, %v3934
      %v3998 = vpack.c.bf16 %v3942, %v3935
      %v3999 = vpack.c.bf16 %v3943, %v3936
      %v4000 = vpack.c.bf16 %v3944, %v3937
      %v4001 = vpack.c.bf16 %v3945, %v3938
      %v4002 = vpack.c.bf16 %v3946, %v3939
      %v4059 = vunpack.c.l.b16 %v3947
      %v4060 = vunpack.c.l.b16 %v3948
      %v4061 = vunpack.c.l.b16 %v3949
      %v4062 = vunpack.c.l.b16 %v3950
      %v4063 = vunpack.c.l.b16 %v3951
      %v4064 = vunpack.c.l.b16 %v3952
      %v4065 = vunpack.c.l.b16 %v3953
      %v4066 = vunpack.c.h.b16 %v3947
      %v4067 = vunpack.c.h.b16 %v3948
      %v4068 = vunpack.c.h.b16 %v3949
      %v4069 = vunpack.c.h.b16 %v3950
      %v4070 = vunpack.c.h.b16 %v3951
      %v4071 = vunpack.c.h.b16 %v3952
      %v4072 = vunpack.c.h.b16 %v3953
      %v4073 = vunpack.c.l.b16 %v3954
      %v4074 = vunpack.c.l.b16 %v3955
      %v4075 = vunpack.c.l.b16 %v3956
      %v4076 = vunpack.c.l.b16 %v3957
      %v4077 = vunpack.c.l.b16 %v3958
      %v4078 = vunpack.c.l.b16 %v3959
      %v4079 = vunpack.c.l.b16 %v3960
      %v4080 = vunpack.c.h.b16 %v3954
      %v4081 = vunpack.c.h.b16 %v3955
      %v4082 = vunpack.c.h.b16 %v3956
      %v4083 = vunpack.c.h.b16 %v3957
      %v4084 = vunpack.c.h.b16 %v3958
      %v4085 = vunpack.c.h.b16 %v3959
      %v4086 = vunpack.c.h.b16 %v3960
      %v4087 = vunpack.c.l.b16 %v3961
      %v4088 = vunpack.c.l.b16 %v3962
      %v4089 = vunpack.c.l.b16 %v3963
      %v4090 = vunpack.c.l.b16 %v3964
      %v4091 = vunpack.c.l.b16 %v3965
      %v4092 = vunpack.c.l.b16 %v3966
      %v4093 = vunpack.c.l.b16 %v3967
      %v4094 = vunpack.c.h.b16 %v3961
      %v4095 = vunpack.c.h.b16 %v3962
      %v4096 = vunpack.c.h.b16 %v3963
      %v4097 = vunpack.c.h.b16 %v3964
      %v4098 = vunpack.c.h.b16 %v3965
      %v4099 = vunpack.c.h.b16 %v3966
      %v4100 = vunpack.c.h.b16 %v3967
      %v4101 = vunpack.c.l.b16 %v3968
      %v4102 = vunpack.c.l.b16 %v3969
      %v4103 = vunpack.c.l.b16 %v3970
      %v4104 = vunpack.c.l.b16 %v3971
      %v4105 = vunpack.c.l.b16 %v3972
      %v4106 = vunpack.c.l.b16 %v3973
      %v4107 = vunpack.c.l.b16 %v3974
      %v4108 = vunpack.c.h.b16 %v3968
      %v4109 = vunpack.c.h.b16 %v3969
      %v4110 = vunpack.c.h.b16 %v3970
      %v4111 = vunpack.c.h.b16 %v3971
      %v4112 = vunpack.c.h.b16 %v3972
      %v4113 = vunpack.c.h.b16 %v3973
      %v4114 = vunpack.c.h.b16 %v3974
      %v4115 = vunpack.c.l.b16 %v3975
      %v4116 = vunpack.c.l.b16 %v3976
      %v4117 = vunpack.c.l.b16 %v3977
      %v4118 = vunpack.c.l.b16 %v3978
      %v4119 = vunpack.c.l.b16 %v3979
      %v4120 = vunpack.c.l.b16 %v3980
      %v4121 = vunpack.c.l.b16 %v3981
      %v4122 = vunpack.c.h.b16 %v3975
      %v4123 = vunpack.c.h.b16 %v3976
      %v4124 = vunpack.c.h.b16 %v3977
      %v4125 = vunpack.c.h.b16 %v3978
      %v4126 = vunpack.c.h.b16 %v3979
      %v4127 = vunpack.c.h.b16 %v3980
      %v4128 = vunpack.c.h.b16 %v3981
      %v4129 = vunpack.c.l.b16 %v3982
      %v4130 = vunpack.c.l.b16 %v3983
      %v4131 = vunpack.c.l.b16 %v3984
      %v4132 = vunpack.c.l.b16 %v3985
      %v4133 = vunpack.c.l.b16 %v3986
      %v4134 = vunpack.c.l.b16 %v3987
      %v4135 = vunpack.c.l.b16 %v3988
      %v4136 = vunpack.c.h.b16 %v3982
      %v4137 = vunpack.c.h.b16 %v3983
      %v4138 = vunpack.c.h.b16 %v3984
      %v4139 = vunpack.c.h.b16 %v3985
      %v4140 = vunpack.c.h.b16 %v3986
      %v4141 = vunpack.c.h.b16 %v3987
      %v4142 = vunpack.c.h.b16 %v3988
      %v4143 = vunpack.c.l.b16 %v3989
      %v4144 = vunpack.c.l.b16 %v3990
      %v4145 = vunpack.c.l.b16 %v3991
      %v4146 = vunpack.c.l.b16 %v3992
      %v4147 = vunpack.c.l.b16 %v3993
      %v4148 = vunpack.c.l.b16 %v3994
      %v4149 = vunpack.c.l.b16 %v3995
      %v4150 = vunpack.c.h.b16 %v3989
      %v4151 = vunpack.c.h.b16 %v3990
      %v4152 = vunpack.c.h.b16 %v3991
      %v4153 = vunpack.c.h.b16 %v3992
      %v4154 = vunpack.c.h.b16 %v3993
      %v4155 = vunpack.c.h.b16 %v3994
      %v4156 = vunpack.c.h.b16 %v3995
      %v4157 = vunpack.c.l.b16 %v3996
      %v4158 = vunpack.c.l.b16 %v3997
      %v4159 = vunpack.c.l.b16 %v3998
      %v4160 = vunpack.c.l.b16 %v3999
      %v4161 = vunpack.c.l.b16 %v4000
      %v4162 = vunpack.c.l.b16 %v4001
      %v4163 = vunpack.c.l.b16 %v4002
      %v4164 = vunpack.c.h.b16 %v3996
      %v4165 = vunpack.c.h.b16 %v3997
      %v4166 = vunpack.c.h.b16 %v3998
      %v4167 = vunpack.c.h.b16 %v3999
      %v4168 = vunpack.c.h.b16 %v4000
      %v4169 = vunpack.c.h.b16 %v4001
      %v4170 = vunpack.c.h.b16 %v4002
      %v4171 = vpack.c.b16 %v4060, %v4059
      %v4172 = vpack.c.b16 %v4062, %v4061
      %v4173 = vpack.c.b16 %v4064, %v4063
      %v4174 = vpack.c.b16 %v4065, %v4065
      %v4175 = vpack.c.b16 %v4067, %v4066
      %v4176 = vpack.c.b16 %v4069, %v4068
      %v4177 = vpack.c.b16 %v4071, %v4070
      %v4178 = vpack.c.b16 %v4072, %v4072
      %v4179 = vpack.c.b16 %v4074, %v4073
      %v4180 = vpack.c.b16 %v4076, %v4075
      %v4181 = vpack.c.b16 %v4078, %v4077
      %v4182 = vpack.c.b16 %v4079, %v4079
      %v4183 = vpack.c.b16 %v4081, %v4080
      %v4184 = vpack.c.b16 %v4083, %v4082
      %v4185 = vpack.c.b16 %v4085, %v4084
      %v4186 = vpack.c.b16 %v4086, %v4086
      %v4187 = vpack.c.b16 %v4088, %v4087
      %v4188 = vpack.c.b16 %v4090, %v4089
      %v4189 = vpack.c.b16 %v4092, %v4091
      %v4190 = vpack.c.b16 %v4093, %v4093
      %v4191 = vpack.c.b16 %v4095, %v4094
      %v4192 = vpack.c.b16 %v4097, %v4096
      %v4193 = vpack.c.b16 %v4099, %v4098
      %v4194 = vpack.c.b16 %v4100, %v4100
      %v4195 = vpack.c.b16 %v4102, %v4101
      %v4196 = vpack.c.b16 %v4104, %v4103
      %v4197 = vpack.c.b16 %v4106, %v4105
      %v4198 = vpack.c.b16 %v4107, %v4107
      %v4199 = vpack.c.b16 %v4109, %v4108
      %v4200 = vpack.c.b16 %v4111, %v4110
      %v4201 = vpack.c.b16 %v4113, %v4112
      %v4202 = vpack.c.b16 %v4114, %v4114
      %v4203 = vpack.c.b16 %v4116, %v4115
      %v4204 = vpack.c.b16 %v4118, %v4117
      %v4205 = vpack.c.b16 %v4120, %v4119
      %v4206 = vpack.c.b16 %v4121, %v4121
      %v4207 = vpack.c.b16 %v4123, %v4122
      %v4208 = vpack.c.b16 %v4125, %v4124
      %v4209 = vpack.c.b16 %v4127, %v4126
      %v4210 = vpack.c.b16 %v4128, %v4128
      %v4211 = vpack.c.b16 %v4130, %v4129
      %v4212 = vpack.c.b16 %v4132, %v4131
      %v4213 = vpack.c.b16 %v4134, %v4133
      %v4214 = vpack.c.b16 %v4135, %v4135
      %v4215 = vpack.c.b16 %v4137, %v4136
      %v4216 = vpack.c.b16 %v4139, %v4138
      %v4217 = vpack.c.b16 %v4141, %v4140
      %v4218 = vpack.c.b16 %v4142, %v4142
      %v4219 = vpack.c.b16 %v4144, %v4143
      %v4220 = vpack.c.b16 %v4146, %v4145
      %v4221 = vpack.c.b16 %v4148, %v4147
      %v4222 = vpack.c.b16 %v4149, %v4149
      %v4223 = vpack.c.b16 %v4151, %v4150
      %v4224 = vpack.c.b16 %v4153, %v4152
      %v4225 = vpack.c.b16 %v4155, %v4154
      %v4226 = vpack.c.b16 %v4156, %v4156
      %v4227 = vpack.c.b16 %v4158, %v4157
      %v4228 = vpack.c.b16 %v4160, %v4159
      %v4229 = vpack.c.b16 %v4162, %v4161
      %v4230 = vpack.c.b16 %v4163, %v4163
      %v4231 = vpack.c.b16 %v4165, %v4164
      %v4232 = vpack.c.b16 %v4167, %v4166
      %v4233 = vpack.c.b16 %v4169, %v4168
      %v4234 = vpack.c.b16 %v4170, %v4170
      %4299 = vst [vmem:[%s407] sm:$0xff] %v4171
      %4300 = vst [vmem:[%s407 + $0x8] sm:$0xff] %v4172
      %4301 = vst [vmem:[%s407 + $0x10] sm:$0xff] %v4173
      %vm4302 = vcmask 125952
      %4303 = vst.msk [vmem:[%s407 + $0x18] sm:$0xf] %vm4302, %v4174
      %4304 = vst [vmem:[%s407 + $0x1c] sm:$0xff] %v4175
      %4305 = vst [vmem:[%s407 + $0x24] sm:$0xff] %v4176
      %4306 = vst [vmem:[%s407 + $0x2c] sm:$0xff] %v4177
      %4307 = vst.msk [vmem:[%s407 + $0x34] sm:$0xf] %vm4302, %v4178
      %4308 = vst [vmem:[%s407 + $0x38] sm:$0xff] %v4179
      %4309 = vst [vmem:[%s407 + $0x40] sm:$0xff] %v4180
      %4310 = vst [vmem:[%s407 + $0x48] sm:$0xff] %v4181
      %4311 = vst.msk [vmem:[%s407 + $0x50] sm:$0xf] %vm4302, %v4182
      %4312 = vst [vmem:[%s407 + $0x54] sm:$0xff] %v4183
      %4313 = vst [vmem:[%s407 + $0x5c] sm:$0xff] %v4184
      %4314 = vst [vmem:[%s407 + $0x64] sm:$0xff] %v4185
      %4315 = vst.msk [vmem:[%s407 + $0x6c] sm:$0xf] %vm4302, %v4186
      %4316 = vst [vmem:[%s407 + $0x70] sm:$0xff] %v4187
      %4317 = vst [vmem:[%s407 + $0x78] sm:$0xff] %v4188
      %4318 = vst [vmem:[%s407 + $0x80] sm:$0xff] %v4189
      %4319 = vst.msk [vmem:[%s407 + $0x88] sm:$0xf] %vm4302, %v4190
      %4320 = vst [vmem:[%s407 + $0x8c] sm:$0xff] %v4191
      %4321 = vst [vmem:[%s407 + $0x94] sm:$0xff] %v4192
      %4322 = vst [vmem:[%s407 + $0x9c] sm:$0xff] %v4193
      %4323 = vst.msk [vmem:[%s407 + $0xa4] sm:$0xf] %vm4302, %v4194
      %4324 = vst [vmem:[%s407 + $0xa8] sm:$0xff] %v4195
      %4325 = vst [vmem:[%s407 + $0xb0] sm:$0xff] %v4196
      %4326 = vst [vmem:[%s407 + $0xb8] sm:$0xff] %v4197
      %4327 = vst.msk [vmem:[%s407 + $0xc0] sm:$0xf] %vm4302, %v4198
      %4328 = vst [vmem:[%s407 + $0xc4] sm:$0xff] %v4199
      %4329 = vst [vmem:[%s407 + $0xcc] sm:$0xff] %v4200
      %4330 = vst [vmem:[%s407 + $0xd4] sm:$0xff] %v4201
      %4331 = vst.msk [vmem:[%s407 + $0xdc] sm:$0xf] %vm4302, %v4202
      %4332 = vst [vmem:[%s407 + $0xe0] sm:$0xff] %v4203
      %4333 = vst [vmem:[%s407 + $0xe8] sm:$0xff] %v4204
      %4334 = vst [vmem:[%s407 + $0xf0] sm:$0xff] %v4205
      %4335 = vst.msk [vmem:[%s407 + $0xf8] sm:$0xf] %vm4302, %v4206
      %4336 = vst [vmem:[%s407 + $0xfc] sm:$0xff] %v4207
      %4337 = vst [vmem:[%s407 + $0x104] sm:$0xff] %v4208
      %4338 = vst [vmem:[%s407 + $0x10c] sm:$0xff] %v4209
      %4339 = vst.msk [vmem:[%s407 + $0x114] sm:$0xf] %vm4302, %v4210
      %4340 = vst [vmem:[%s407 + $0x118] sm:$0xff] %v4211
      %4341 = vst [vmem:[%s407 + $0x120] sm:$0xff] %v4212
      %4342 = vst [vmem:[%s407 + $0x128] sm:$0xff] %v4213
      %4343 = vst.msk [vmem:[%s407 + $0x130] sm:$0xf] %vm4302, %v4214
      %4344 = vst [vmem:[%s407 + $0x134] sm:$0xff] %v4215
      %4345 = vst [vmem:[%s407 + $0x13c] sm:$0xff] %v4216
      %4346 = vst [vmem:[%s407 + $0x144] sm:$0xff] %v4217
      %4347 = vst.msk [vmem:[%s407 + $0x14c] sm:$0xf] %vm4302, %v4218
      %4348 = vst [vmem:[%s407 + $0x150] sm:$0xff] %v4219
      %4349 = vst [vmem:[%s407 + $0x158] sm:$0xff] %v4220
      %4350 = vst [vmem:[%s407 + $0x160] sm:$0xff] %v4221
      %4351 = vst.msk [vmem:[%s407 + $0x168] sm:$0xf] %vm4302, %v4222
      %4352 = vst [vmem:[%s407 + $0x16c] sm:$0xff] %v4223
      %4353 = vst [vmem:[%s407 + $0x174] sm:$0xff] %v4224
      %4354 = vst [vmem:[%s407 + $0x17c] sm:$0xff] %v4225
      %4355 = vst.msk [vmem:[%s407 + $0x184] sm:$0xf] %vm4302, %v4226
      %4356 = vst [vmem:[%s407 + $0x188] sm:$0xff] %v4227
      %4357 = vst [vmem:[%s407 + $0x190] sm:$0xff] %v4228
      %4358 = vst [vmem:[%s407 + $0x198] sm:$0xff] %v4229
      %4359 = vst.msk [vmem:[%s407 + $0x1a0] sm:$0xf] %vm4302, %v4230
      %4360 = vst [vmem:[%s407 + $0x1a4] sm:$0xff] %v4231
      %4361 = vst [vmem:[%s407 + $0x1ac] sm:$0xff] %v4232
      %4362 = vst [vmem:[%s407 + $0x1b4] sm:$0xff] %v4233
      %4363 = vst.msk [vmem:[%s407 + $0x1bc] sm:$0xf] %vm4302, %v4234
      %s4364 = smul.u32 16, %s23
      %p4365 = scmp.lt.s32.totalorder %s4364, 31
      %s4366 = scalar_select %p4365, %s4364, 31
      %s4367 = smul.addr %s4366, 8
      %s4368 = scalar_lea.vmem %s10, %s4367
      %s4369 = smul.u32 16, %s23
      %p4370 = scmp.lt.s32.totalorder %s4369, 31
      %s4371 = scalar_select %p4370, %s4369, 31
      %s4372 = smul.addr %s4371, 7
      %s4373 = smul.addr %s4372, 4
      %s4374 = scalar_lea.vmem %s11, %s4373
      // Predicated region
      $region61: #{autoencoder_forward.1} parent=59 // pred_check
        %p4375 = pneg %p256
      $region62: #{autoencoder_forward.1} parent=59 // pred_check_branch
        %4377 = sbr.rel (%p4375) target = $region64
      $region63: #{autoencoder_forward.1} parent=59 // pred_region
        %s4378 = smul.u32 16, %s23
      $region64: #{autoencoder_forward.1} parent=59 // pred_fallthru
        _
      // Predicated region
      $region65: #{autoencoder_forward.1} parent=59 // pred_check
        %p4379 = pneg %p282
      $region66: #{autoencoder_forward.1} parent=59 // pred_check_branch
        %4381 = sbr.rel (%p4379) target = $region68
      $region67: #{autoencoder_forward.1} parent=59 // pred_region
        %s4382 = smul.u32 16, %s23
      $region68: #{autoencoder_forward.1} parent=59 // pred_fallthru
        _
    $region60: #{autoencoder_forward.1} parent=5 // pred_fallthru
      _
    %p4383 = scmp.le.s32.totalorder 2, %s18
    // Predicated region
    $region69: #{autoencoder_forward.1} parent=5 // pred_check
      %p4384 = pneg %p4383
    $region70: #{autoencoder_forward.1} parent=5 // pred_check_branch
      %4386 = sbr.rel (%p4384) target = $region72
    $region71: #{autoencoder_forward.1} parent=5 // pred_region
      %s4387 = ssub.s32 %s18, 2
      // Predicated region
      $region73: #{autoencoder_forward.1} parent=71 // pred_check
        %p4388 = pneg %p262
      $region74: #{autoencoder_forward.1} parent=71 // pred_check_branch
        %4390 = sbr.rel (%p4388) target = $region76
      $region75: #{autoencoder_forward.1} parent=71 // pred_region
        %s4391 = smul.u32 16, %s24
        %p4392 = scmp.lt.s32.totalorder %s4391, 31
        %s4393 = scalar_select %p4392, %s4391, 31
        %s4394 = smul.addr %s4393, 8
        %s4395 = scalar_lea.vmem %s10, %s4394
      $region76: #{autoencoder_forward.1} parent=71 // pred_fallthru
        _
      // Predicated region
      $region77: #{autoencoder_forward.1} parent=71 // pred_check
        %p4396 = pneg %p288
      $region78: #{autoencoder_forward.1} parent=71 // pred_check_branch
        %4398 = sbr.rel (%p4396) target = $region80
      $region79: #{autoencoder_forward.1} parent=71 // pred_region
        %s4399 = smul.u32 16, %s24
        %p4400 = scmp.lt.s32.totalorder %s4399, 31
        %s4401 = scalar_select %p4400, %s4399, 31
        %s4402 = smul.addr %s4401, 7
        %s4403 = smul.addr %s4402, 4
        %s4404 = scalar_lea.vmem %s11, %s4403
      $region80: #{autoencoder_forward.1} parent=71 // pred_fallthru
        _
    $region72: #{autoencoder_forward.1} parent=5 // pred_fallthru
      _
  $region6: #{autoencoder_forward.1} parent=0 // loop_footer
    %s22 = sadd.s32 1, %s18
  $region7: #{autoencoder_forward.1} parent=0 // loop_footer_branch
    %17 = sbr.rel target = $region3
  $region8: #{autoencoder_forward.1} parent=0 // loop_exit
    _

</llo_original>
